<compile_context>
chip_gen: v6e
topology: v6e:2x2x1
jax: 0.10.0
libtpu: 0.0.40
codegen_flags: <defaults>
</compile_context>

<pallas_src>
import math
import jax
import jax.numpy as jnp
from jax.experimental import pallas as pl
from jax.experimental.pallas import tpu as pltpu

BOTTLENECK = 2
IN_DIM = 784


def _vae_kernel(x_ref, eps_ref,
                w1, b1, w2, b2, w3, b3, wh, bh,
                dw1, db1, dw2, db2, dw3, db3, dw4, db4,
                xprime_ref, mulogvar_ref):
    f32 = jnp.float32
    bf16 = jnp.bfloat16

    def dense(a, w_ref, b_ref):
        # bf16 MXU inputs, f32 accumulation, f32 bias add / elementwise.
        return jnp.dot(a.astype(bf16), w_ref[...],
                       preferred_element_type=f32) + b_ref[...]

    # ---------------- encoder ----------------
    x = x_ref[...]                                   # (TB, 784) f32
    h = jnp.maximum(dense(x, w1, b1), 0.0)
    h = jnp.maximum(dense(h, w2, b2), 0.0)
    h = jnp.maximum(dense(h, w3, b3), 0.0)           # (TB, 64)

    # Fused mean_head || std_head: one (64, 2*BOTTLENECK) matmul.
    head = dense(h, wh, bh)                          # (TB, 4) f32
    mu = head[:, :BOTTLENECK]
    logvar = head[:, BOTTLENECK:]

    # ---------------- reparameterization ----------------
    z = mu + eps_ref[...] * jnp.exp(0.5 * logvar)    # (TB, 2) f32

    # ---------------- decoder ----------------
    # K=2 first layer as a VPU outer product (skips a latency-bound MXU pass).
    dw1f = dw1[...].astype(f32)                      # (2, 64)
    d = z[:, 0:1] * dw1f[0:1, :] + z[:, 1:2] * dw1f[1:2, :] + db1[...]
    d = jnp.maximum(d, 0.0)
    d = jnp.maximum(dense(d, dw2, db2), 0.0)
    d = jnp.maximum(dense(d, dw3, db3), 0.0)
    logits = dense(d, dw4, db4)                      # (TB, 784) f32
    # Sigmoid with the reciprocal on the EUP slot.
    x_prime = pl.reciprocal(1.0 + jnp.exp(-logits), approx=True)

    xprime_ref[...] = x_prime.astype(xprime_ref.dtype)
    mulogvar_ref[...] = head.astype(mulogvar_ref.dtype)


def _prepare_params(params_f32):
    """Cast weights to bf16 (MXU inputs), keep biases f32, fuse the two heads."""
    (w1, b1, w2, b2, w3, b3, wm, bm, ws, bs,
     dw1, db1, dw2, db2, dw3, db3, dw4, db4) = params_f32
    bf = jnp.bfloat16
    wh = jnp.concatenate([wm, ws], axis=1).astype(bf)     # (64, 2*BOTTLENECK)
    bh = jnp.concatenate([bm, bs], axis=1)                # (1, 2*BOTTLENECK) f32
    return (w1.astype(bf), b1, w2.astype(bf), b2, w3.astype(bf), b3,
            wh, bh,
            dw1.astype(bf), db1, dw2.astype(bf), db2,
            dw3.astype(bf), db3, dw4.astype(bf), db4)


def _round_up(n, m):
    return ((n + m - 1) // m) * m


def adversarial_vae_forward(x, eps, params, *, batch_tile=256):
    """x: (B, ...) image tensor (flattened to 784), eps: (B, BOTTLENECK) f32.

    Returns (x_prime, mu, logvar) in float32. For best throughput on v7x use
    B >= 2 * batch_tile so the parallel batch grid spans both TensorCores.
    """
    x = x.reshape(-1, IN_DIM).astype(jnp.float32)
    eps = eps.astype(jnp.float32)
    B = x.shape[0]

    # Shrink the tile for small batches so we never compute on hundreds of
    # padding rows; keep the sublane-multiple-of-8 requirement.
    TB = min(_round_up(batch_tile, 8), _round_up(B, 8))
    n_blocks = pl.cdiv(B, TB)
    B_pad = n_blocks * TB
    if B_pad != B:
        x = jnp.pad(x, ((0, B_pad - B), (0, 0)))
        eps = jnp.pad(eps, ((0, B_pad - B), (0, 0)))

    kp = _prepare_params(params)

    def act_spec(feat):
        return pl.BlockSpec((TB, feat), lambda i: (i, 0))

    def const_spec(shape):
        # Weights/biases never change across grid steps: single-buffer them so
        # the constant blocks aren't duplicated in VMEM.
        return pl.BlockSpec(shape, lambda i: (0,) * len(shape),
                            pipeline_mode=pl.Buffered(1))

    in_specs = [act_spec(IN_DIM), act_spec(BOTTLENECK)]
    in_specs += [const_spec(p.shape) for p in kp]

    out_specs = [act_spec(IN_DIM), act_spec(2 * BOTTLENECK)]
    out_shape = (
        jax.ShapeDtypeStruct((B_pad, IN_DIM), jnp.float32),
        jax.ShapeDtypeStruct((B_pad, 2 * BOTTLENECK), jnp.float32),
    )

    x_prime, mulogvar = pl.pallas_call(
        _vae_kernel,
        out_shape=out_shape,
        grid_spec=pltpu.PrefetchScalarGridSpec(
            num_scalar_prefetch=0,
            grid=(n_blocks,),
            in_specs=in_specs,
            out_specs=out_specs,
        ),
        compiler_params=pltpu.CompilerParams(
            dimension_semantics=("parallel",),
            vmem_limit_bytes=48 * 1024 * 1024,   # <= v7x 64 MiB physical VMEM
        ),
    )(x, eps, *kp)

    return (x_prime[:B],
            mulogvar[:B, :BOTTLENECK],
            mulogvar[:B, BOTTLENECK:])


def init_params(key):
    """Deterministic init mimicking nn.Linear (uniform +-1/sqrt(fan_in)).
    Weights are stored as (in_features, out_features), float32."""
    layer_dims = [
        (784, 512), (512, 128), (128, 64),                     # fc1, fc2, fc3
        (64, BOTTLENECK), (64, BOTTLENECK),                    # mean_head, std_head
        (BOTTLENECK, 64), (64, 128), (128, 512), (512, 784),   # d_fc1..d_fc4
    ]
    params = []
    for (fan_in, fan_out) in layer_dims:
        key, kw, kb = jax.random.split(key, 3)
        bound = 1.0 / math.sqrt(fan_in)
        w = jax.random.uniform(kw, (fan_in, fan_out), jnp.float32, -bound, bound)
        b = jax.random.uniform(kb, (1, fan_out), jnp.float32, -bound, bound)
        params.append(w)
        params.append(b)
    return tuple(params)


if __name__ == "__main__":
    key = jax.random.PRNGKey(0)
    k_params, k_x, k_eps = jax.random.split(key, 3)

    params = init_params(k_params)

    B = 8  # small self-test; production batches should be >= 2 * batch_tile
    # Input shaped like MNIST images (B, 1, 28, 28); forward flattens to (B, 784).
    x_img = jax.random.uniform(k_x, (B, 1, 28, 28), jnp.float32)
    eps = jax.random.normal(k_eps, (B, BOTTLENECK), jnp.float32)

    x_prime, mu, logvar = adversarial_vae_forward(x_img, eps, params)
    jax.block_until_ready((x_prime, mu, logvar))

    assert x_prime.shape == (B, IN_DIM)
    assert mu.shape == (B, BOTTLENECK) and logvar.shape == (B, BOTTLENECK)

    # Pure-JAX reference mirroring the kernel's bf16-input / f32-accumulate
    # matmuls (so tolerances stay tight).
    def ref(x, eps, p):
        (w1, b1, w2, b2, w3, b3, wm, bm, ws, bs,
         dw1, db1, dw2, db2, dw3, db3, dw4, db4) = p
        bf = lambda a: a.astype(jnp.bfloat16)
        dot = lambda a, w: jnp.dot(bf(a), bf(w),
                                   preferred_element_type=jnp.float32)
        x = x.reshape(-1, IN_DIM)
        h = jax.nn.relu(dot(x, w1) + b1)
        h = jax.nn.relu(dot(h, w2) + b2)
        h = jax.nn.relu(dot(h, w3) + b3)
        mu = dot(h, wm) + bm
        logvar = dot(h, ws) + bs
        z = mu + eps * jnp.exp(0.5 * logvar)
        dw1q = bf(dw1).astype(jnp.float32)
        d = jax.nn.relu(z @ dw1q + db1)
        d = jax.nn.relu(dot(d, dw2) + db2)
        d = jax.nn.relu(dot(d, dw3) + db3)
        xp = jax.nn.sigmoid(dot(d, dw4) + db4)
        return xp, mu, logvar

    xp_r, mu_r, lv_r = ref(x_img, eps, params)
    # x_prime tolerance is looser because the kernel uses the EUP approximate
    # reciprocal for the sigmoid; outputs are bounded in (0, 1).
    assert jnp.allclose(x_prime, xp_r, atol=1e-2), "x_prime mismatch"
    assert jnp.allclose(mu, mu_r, atol=2e-3), "mu mismatch"
    assert jnp.allclose(logvar, lv_r, atol=2e-3), "logvar mismatch"

    print("KERNEL_OK")
</pallas_src>

<mosaic_0001>
module attributes {stable_mosaic.version = 11 : i64} {
  func.func @_vae_kernel(%arg0: i32, %arg1: memref<8x784xf32, #tpu.memory_space<vmem>>, %arg2: memref<8x2xf32, #tpu.memory_space<vmem>>, %arg3: memref<784x512xbf16, #tpu.memory_space<vmem>>, %arg4: memref<1x512xf32, #tpu.memory_space<vmem>>, %arg5: memref<512x128xbf16, #tpu.memory_space<vmem>>, %arg6: memref<1x128xf32, #tpu.memory_space<vmem>>, %arg7: memref<128x64xbf16, #tpu.memory_space<vmem>>, %arg8: memref<1x64xf32, #tpu.memory_space<vmem>>, %arg9: memref<64x4xbf16, #tpu.memory_space<vmem>>, %arg10: memref<1x4xf32, #tpu.memory_space<vmem>>, %arg11: memref<2x64xbf16, #tpu.memory_space<vmem>>, %arg12: memref<1x64xf32, #tpu.memory_space<vmem>>, %arg13: memref<64x128xbf16, #tpu.memory_space<vmem>>, %arg14: memref<1x128xf32, #tpu.memory_space<vmem>>, %arg15: memref<128x512xbf16, #tpu.memory_space<vmem>>, %arg16: memref<1x512xf32, #tpu.memory_space<vmem>>, %arg17: memref<512x784xbf16, #tpu.memory_space<vmem>>, %arg18: memref<1x784xf32, #tpu.memory_space<vmem>>, %arg19: memref<8x784xf32, #tpu.memory_space<vmem>>, %arg20: memref<8x4xf32, #tpu.memory_space<vmem>>) attributes {dimension_semantics = [#tpu.dimension_semantics<parallel>], iteration_bounds = array<i64: 1>, scalar_prefetch = 0 : i64, scratch_operands = 0 : i64, tpu.core_type = #tpu.core_type<tc>, window_params = [{transform_indices = @transform_0, window_bounds = array<i64: 8, 784>}, {transform_indices = @transform_1, window_bounds = array<i64: 8, 2>}, {pipeline_mode = #tpu.pipeline_mode<synchronous>, transform_indices = @transform_2, window_bounds = array<i64: 784, 512>}, {pipeline_mode = #tpu.pipeline_mode<synchronous>, transform_indices = @transform_3, window_bounds = array<i64: 1, 512>}, {pipeline_mode = #tpu.pipeline_mode<synchronous>, transform_indices = @transform_4, window_bounds = array<i64: 512, 128>}, {pipeline_mode = #tpu.pipeline_mode<synchronous>, transform_indices = @transform_5, window_bounds = array<i64: 1, 128>}, {pipeline_mode = #tpu.pipeline_mode<synchronous>, transform_indices = @transform_6, window_bounds = array<i64: 128, 64>}, {pipeline_mode = #tpu.pipeline_mode<synchronous>, transform_indices = @transform_7, window_bounds = array<i64: 1, 64>}, {pipeline_mode = #tpu.pipeline_mode<synchronous>, transform_indices = @transform_8, window_bounds = array<i64: 64, 4>}, {pipeline_mode = #tpu.pipeline_mode<synchronous>, transform_indices = @transform_9, window_bounds = array<i64: 1, 4>}, {pipeline_mode = #tpu.pipeline_mode<synchronous>, transform_indices = @transform_10, window_bounds = array<i64: 2, 64>}, {pipeline_mode = #tpu.pipeline_mode<synchronous>, transform_indices = @transform_11, window_bounds = array<i64: 1, 64>}, {pipeline_mode = #tpu.pipeline_mode<synchronous>, transform_indices = @transform_12, window_bounds = array<i64: 64, 128>}, {pipeline_mode = #tpu.pipeline_mode<synchronous>, transform_indices = @transform_13, window_bounds = array<i64: 1, 128>}, {pipeline_mode = #tpu.pipeline_mode<synchronous>, transform_indices = @transform_14, window_bounds = array<i64: 128, 512>}, {pipeline_mode = #tpu.pipeline_mode<synchronous>, transform_indices = @transform_15, window_bounds = array<i64: 1, 512>}, {pipeline_mode = #tpu.pipeline_mode<synchronous>, transform_indices = @transform_16, window_bounds = array<i64: 512, 784>}, {pipeline_mode = #tpu.pipeline_mode<synchronous>, transform_indices = @transform_17, window_bounds = array<i64: 1, 784>}, {transform_indices = @transform_18, window_bounds = array<i64: 8, 784>}, {transform_indices = @transform_19, window_bounds = array<i64: 8, 4>}]} {
    %c0 = arith.constant 0 : index
    %c0_0 = arith.constant 0 : index
    %0 = vector.load %arg1[%c0, %c0_0] : memref<8x784xf32, #tpu.memory_space<vmem>>, vector<8x784xf32>
    %1 = arith.truncf %0 : vector<8x784xf32> to vector<8x784xbf16>
    %c0_1 = arith.constant 0 : index
    %c0_2 = arith.constant 0 : index
    %2 = vector.load %arg3[%c0_1, %c0_2] : memref<784x512xbf16, #tpu.memory_space<vmem>>, vector<784x512xbf16>
    %cst = arith.constant dense<0.000000e+00> : vector<8x512xf32>
    %3 = tpu.matmul %1, %2, %cst {dimension_numbers = #tpu.dot_dimension_numbers<[1], [0], [0], [1], [0, 0, 1, 1], [], []>} : vector<8x784xbf16>, vector<784x512xbf16>, vector<8x512xf32> -> vector<8x512xf32>
    %c0_3 = arith.constant 0 : index
    %c0_4 = arith.constant 0 : index
    %4 = vector.load %arg4[%c0_3, %c0_4] : memref<1x512xf32, #tpu.memory_space<vmem>>, vector<1x512xf32>
    %5 = vector.broadcast %4 : vector<1x512xf32> to vector<8x512xf32>
    %6 = arith.addf %3, %5 : vector<8x512xf32>
    %cst_5 = arith.constant 0.000000e+00 : f32
    %7 = vector.broadcast %cst_5 : f32 to vector<8x512xf32>
    %8 = arith.maximumf %6, %7 : vector<8x512xf32>
    %9 = arith.truncf %8 : vector<8x512xf32> to vector<8x512xbf16>
    %c0_6 = arith.constant 0 : index
    %c0_7 = arith.constant 0 : index
    %10 = vector.load %arg5[%c0_6, %c0_7] : memref<512x128xbf16, #tpu.memory_space<vmem>>, vector<512x128xbf16>
    %cst_8 = arith.constant dense<0.000000e+00> : vector<8x128xf32>
    %11 = tpu.matmul %9, %10, %cst_8 {dimension_numbers = #tpu.dot_dimension_numbers<[1], [0], [0], [1], [0, 0, 1, 1], [], []>} : vector<8x512xbf16>, vector<512x128xbf16>, vector<8x128xf32> -> vector<8x128xf32>
    %c0_9 = arith.constant 0 : index
    %c0_10 = arith.constant 0 : index
    %12 = vector.load %arg6[%c0_9, %c0_10] : memref<1x128xf32, #tpu.memory_space<vmem>>, vector<1x128xf32>
    %13 = vector.broadcast %12 : vector<1x128xf32> to vector<8x128xf32>
    %14 = arith.addf %11, %13 : vector<8x128xf32>
    %cst_11 = arith.constant 0.000000e+00 : f32
    %15 = vector.broadcast %cst_11 : f32 to vector<8x128xf32>
    %16 = arith.maximumf %14, %15 : vector<8x128xf32>
    %17 = arith.truncf %16 : vector<8x128xf32> to vector<8x128xbf16>
    %c0_12 = arith.constant 0 : index
    %c0_13 = arith.constant 0 : index
    %18 = vector.load %arg7[%c0_12, %c0_13] : memref<128x64xbf16, #tpu.memory_space<vmem>>, vector<128x64xbf16>
    %cst_14 = arith.constant dense<0.000000e+00> : vector<8x64xf32>
    %19 = tpu.matmul %17, %18, %cst_14 {dimension_numbers = #tpu.dot_dimension_numbers<[1], [0], [0], [1], [0, 0, 1, 1], [], []>} : vector<8x128xbf16>, vector<128x64xbf16>, vector<8x64xf32> -> vector<8x64xf32>
    %c0_15 = arith.constant 0 : index
    %c0_16 = arith.constant 0 : index
    %20 = vector.load %arg8[%c0_15, %c0_16] : memref<1x64xf32, #tpu.memory_space<vmem>>, vector<1x64xf32>
    %21 = vector.broadcast %20 : vector<1x64xf32> to vector<8x64xf32>
    %22 = arith.addf %19, %21 : vector<8x64xf32>
    %cst_17 = arith.constant 0.000000e+00 : f32
    %23 = vector.broadcast %cst_17 : f32 to vector<8x64xf32>
    %24 = arith.maximumf %22, %23 : vector<8x64xf32>
    %25 = arith.truncf %24 : vector<8x64xf32> to vector<8x64xbf16>
    %c0_18 = arith.constant 0 : index
    %c0_19 = arith.constant 0 : index
    %26 = vector.load %arg9[%c0_18, %c0_19] : memref<64x4xbf16, #tpu.memory_space<vmem>>, vector<64x4xbf16>
    %cst_20 = arith.constant dense<0.000000e+00> : vector<8x4xf32>
    %27 = tpu.matmul %25, %26, %cst_20 {dimension_numbers = #tpu.dot_dimension_numbers<[1], [0], [0], [1], [0, 0, 1, 1], [], []>} : vector<8x64xbf16>, vector<64x4xbf16>, vector<8x4xf32> -> vector<8x4xf32>
    %c0_21 = arith.constant 0 : index
    %c0_22 = arith.constant 0 : index
    %28 = vector.load %arg10[%c0_21, %c0_22] : memref<1x4xf32, #tpu.memory_space<vmem>>, vector<1x4xf32>
    %29 = vector.broadcast %28 : vector<1x4xf32> to vector<8x4xf32>
    %30 = arith.addf %27, %29 : vector<8x4xf32>
    %31 = vector.extract_strided_slice %30 {offsets = [0, 0], sizes = [8, 2], strides = [1, 1]} : vector<8x4xf32> to vector<8x2xf32>
    %32 = vector.extract_strided_slice %30 {offsets = [0, 2], sizes = [8, 2], strides = [1, 1]} : vector<8x4xf32> to vector<8x2xf32>
    %c0_23 = arith.constant 0 : index
    %c0_24 = arith.constant 0 : index
    %33 = vector.load %arg2[%c0_23, %c0_24] : memref<8x2xf32, #tpu.memory_space<vmem>>, vector<8x2xf32>
    %cst_25 = arith.constant 5.000000e-01 : f32
    %34 = vector.broadcast %cst_25 : f32 to vector<8x2xf32>
    %35 = arith.mulf %34, %32 : vector<8x2xf32>
    %36 = math.exp %35 : vector<8x2xf32>
    %37 = arith.mulf %33, %36 : vector<8x2xf32>
    %38 = arith.addf %31, %37 : vector<8x2xf32>
    %c0_26 = arith.constant 0 : index
    %c0_27 = arith.constant 0 : index
    %39 = vector.load %arg11[%c0_26, %c0_27] : memref<2x64xbf16, #tpu.memory_space<vmem>>, vector<2x64xbf16>
    %40 = arith.extf %39 : vector<2x64xbf16> to vector<2x64xf32>
    %41 = vector.extract_strided_slice %38 {offsets = [0, 0], sizes = [8, 1], strides = [1, 1]} : vector<8x2xf32> to vector<8x1xf32>
    %42 = vector.extract_strided_slice %40 {offsets = [0, 0], sizes = [1, 64], strides = [1, 1]} : vector<2x64xf32> to vector<1x64xf32>
    %43 = vector.broadcast %41 : vector<8x1xf32> to vector<8x64xf32>
    %44 = vector.broadcast %42 : vector<1x64xf32> to vector<8x64xf32>
    %45 = arith.mulf %43, %44 : vector<8x64xf32>
    %46 = vector.extract_strided_slice %38 {offsets = [0, 1], sizes = [8, 1], strides = [1, 1]} : vector<8x2xf32> to vector<8x1xf32>
    %47 = vector.extract_strided_slice %40 {offsets = [1, 0], sizes = [1, 64], strides = [1, 1]} : vector<2x64xf32> to vector<1x64xf32>
    %48 = vector.broadcast %46 : vector<8x1xf32> to vector<8x64xf32>
    %49 = vector.broadcast %47 : vector<1x64xf32> to vector<8x64xf32>
    %50 = arith.mulf %48, %49 : vector<8x64xf32>
    %51 = arith.addf %45, %50 : vector<8x64xf32>
    %c0_28 = arith.constant 0 : index
    %c0_29 = arith.constant 0 : index
    %52 = vector.load %arg12[%c0_28, %c0_29] : memref<1x64xf32, #tpu.memory_space<vmem>>, vector<1x64xf32>
    %53 = vector.broadcast %52 : vector<1x64xf32> to vector<8x64xf32>
    %54 = arith.addf %51, %53 : vector<8x64xf32>
    %cst_30 = arith.constant 0.000000e+00 : f32
    %55 = vector.broadcast %cst_30 : f32 to vector<8x64xf32>
    %56 = arith.maximumf %54, %55 : vector<8x64xf32>
    %57 = arith.truncf %56 : vector<8x64xf32> to vector<8x64xbf16>
    %c0_31 = arith.constant 0 : index
    %c0_32 = arith.constant 0 : index
    %58 = vector.load %arg13[%c0_31, %c0_32] : memref<64x128xbf16, #tpu.memory_space<vmem>>, vector<64x128xbf16>
    %cst_33 = arith.constant dense<0.000000e+00> : vector<8x128xf32>
    %59 = tpu.matmul %57, %58, %cst_33 {dimension_numbers = #tpu.dot_dimension_numbers<[1], [0], [0], [1], [0, 0, 1, 1], [], []>} : vector<8x64xbf16>, vector<64x128xbf16>, vector<8x128xf32> -> vector<8x128xf32>
    %c0_34 = arith.constant 0 : index
    %c0_35 = arith.constant 0 : index
    %60 = vector.load %arg14[%c0_34, %c0_35] : memref<1x128xf32, #tpu.memory_space<vmem>>, vector<1x128xf32>
    %61 = vector.broadcast %60 : vector<1x128xf32> to vector<8x128xf32>
    %62 = arith.addf %59, %61 : vector<8x128xf32>
    %cst_36 = arith.constant 0.000000e+00 : f32
    %63 = vector.broadcast %cst_36 : f32 to vector<8x128xf32>
    %64 = arith.maximumf %62, %63 : vector<8x128xf32>
    %65 = arith.truncf %64 : vector<8x128xf32> to vector<8x128xbf16>
    %c0_37 = arith.constant 0 : index
    %c0_38 = arith.constant 0 : index
    %66 = vector.load %arg15[%c0_37, %c0_38] : memref<128x512xbf16, #tpu.memory_space<vmem>>, vector<128x512xbf16>
    %cst_39 = arith.constant dense<0.000000e+00> : vector<8x512xf32>
    %67 = tpu.matmul %65, %66, %cst_39 {dimension_numbers = #tpu.dot_dimension_numbers<[1], [0], [0], [1], [0, 0, 1, 1], [], []>} : vector<8x128xbf16>, vector<128x512xbf16>, vector<8x512xf32> -> vector<8x512xf32>
    %c0_40 = arith.constant 0 : index
    %c0_41 = arith.constant 0 : index
    %68 = vector.load %arg16[%c0_40, %c0_41] : memref<1x512xf32, #tpu.memory_space<vmem>>, vector<1x512xf32>
    %69 = vector.broadcast %68 : vector<1x512xf32> to vector<8x512xf32>
    %70 = arith.addf %67, %69 : vector<8x512xf32>
    %cst_42 = arith.constant 0.000000e+00 : f32
    %71 = vector.broadcast %cst_42 : f32 to vector<8x512xf32>
    %72 = arith.maximumf %70, %71 : vector<8x512xf32>
    %73 = arith.truncf %72 : vector<8x512xf32> to vector<8x512xbf16>
    %c0_43 = arith.constant 0 : index
    %c0_44 = arith.constant 0 : index
    %74 = vector.load %arg17[%c0_43, %c0_44] : memref<512x784xbf16, #tpu.memory_space<vmem>>, vector<512x784xbf16>
    %cst_45 = arith.constant dense<0.000000e+00> : vector<8x784xf32>
    %75 = tpu.matmul %73, %74, %cst_45 {dimension_numbers = #tpu.dot_dimension_numbers<[1], [0], [0], [1], [0, 0, 1, 1], [], []>} : vector<8x512xbf16>, vector<512x784xbf16>, vector<8x784xf32> -> vector<8x784xf32>
    %c0_46 = arith.constant 0 : index
    %c0_47 = arith.constant 0 : index
    %76 = vector.load %arg18[%c0_46, %c0_47] : memref<1x784xf32, #tpu.memory_space<vmem>>, vector<1x784xf32>
    %77 = vector.broadcast %76 : vector<1x784xf32> to vector<8x784xf32>
    %78 = arith.addf %75, %77 : vector<8x784xf32>
    %cst_48 = arith.constant 0.000000e+00 : f32
    %79 = vector.broadcast %cst_48 : f32 to vector<8x784xf32>
    %80 = arith.subf %79, %78 : vector<8x784xf32>
    %81 = math.exp %80 : vector<8x784xf32>
    %cst_49 = arith.constant 1.000000e+00 : f32
    %82 = vector.broadcast %cst_49 : f32 to vector<8x784xf32>
    %83 = arith.addf %82, %81 : vector<8x784xf32>
    %84 = tpu.reciprocal %83 {approx = true} : vector<8x784xf32> -> vector<8x784xf32>
    %c0_50 = arith.constant 0 : index
    %c0_51 = arith.constant 0 : index
    %85 = vector.load %arg19[%c0_50, %c0_51] : memref<8x784xf32, #tpu.memory_space<vmem>>, vector<8x784xf32>
    tpu.vector_store %arg19[%c0_50, %c0_51], %84 {strides = array<i32>} : memref<8x784xf32, #tpu.memory_space<vmem>>, vector<8x784xf32>,
    %c0_52 = arith.constant 0 : index
    %c0_53 = arith.constant 0 : index
    %86 = vector.load %arg20[%c0_52, %c0_53] : memref<8x4xf32, #tpu.memory_space<vmem>>, vector<8x4xf32>
    tpu.vector_store %arg20[%c0_52, %c0_53], %30 {strides = array<i32>} : memref<8x4xf32, #tpu.memory_space<vmem>>, vector<8x4xf32>,
    return
  }
  func.func @transform_0(%arg0: i32) -> (i32, i32) {
    %c0_i32 = arith.constant 0 : i32
    %c0_i32_0 = arith.constant 0 : i32
    return %arg0, %c0_i32 : i32, i32
  }
  func.func @transform_1(%arg0: i32) -> (i32, i32) {
    %c0_i32 = arith.constant 0 : i32
    %c0_i32_0 = arith.constant 0 : i32
    return %arg0, %c0_i32 : i32, i32
  }
  func.func @transform_2(%arg0: i32) -> (i32, i32) {
    %c0_i32 = arith.constant 0 : i32
    %c0_i32_0 = arith.constant 0 : i32
    %c0_i32_1 = arith.constant 0 : i32
    return %c0_i32, %c0_i32_0 : i32, i32
  }
  func.func @transform_3(%arg0: i32) -> (i32, i32) {
    %c0_i32 = arith.constant 0 : i32
    %c0_i32_0 = arith.constant 0 : i32
    %c0_i32_1 = arith.constant 0 : i32
    return %c0_i32, %c0_i32_0 : i32, i32
  }
  func.func @transform_4(%arg0: i32) -> (i32, i32) {
    %c0_i32 = arith.constant 0 : i32
    %c0_i32_0 = arith.constant 0 : i32
    %c0_i32_1 = arith.constant 0 : i32
    return %c0_i32, %c0_i32_0 : i32, i32
  }
  func.func @transform_5(%arg0: i32) -> (i32, i32) {
    %c0_i32 = arith.constant 0 : i32
    %c0_i32_0 = arith.constant 0 : i32
    %c0_i32_1 = arith.constant 0 : i32
    return %c0_i32, %c0_i32_0 : i32, i32
  }
  func.func @transform_6(%arg0: i32) -> (i32, i32) {
    %c0_i32 = arith.constant 0 : i32
    %c0_i32_0 = arith.constant 0 : i32
    %c0_i32_1 = arith.constant 0 : i32
    return %c0_i32, %c0_i32_0 : i32, i32
  }
  func.func @transform_7(%arg0: i32) -> (i32, i32) {
    %c0_i32 = arith.constant 0 : i32
    %c0_i32_0 = arith.constant 0 : i32
    %c0_i32_1 = arith.constant 0 : i32
    return %c0_i32, %c0_i32_0 : i32, i32
  }
  func.func @transform_8(%arg0: i32) -> (i32, i32) {
    %c0_i32 = arith.constant 0 : i32
    %c0_i32_0 = arith.constant 0 : i32
    %c0_i32_1 = arith.constant 0 : i32
    return %c0_i32, %c0_i32_0 : i32, i32
  }
  func.func @transform_9(%arg0: i32) -> (i32, i32) {
    %c0_i32 = arith.constant 0 : i32
    %c0_i32_0 = arith.constant 0 : i32
    %c0_i32_1 = arith.constant 0 : i32
    return %c0_i32, %c0_i32_0 : i32, i32
  }
  func.func @transform_10(%arg0: i32) -> (i32, i32) {
    %c0_i32 = arith.constant 0 : i32
    %c0_i32_0 = arith.constant 0 : i32
    %c0_i32_1 = arith.constant 0 : i32
    return %c0_i32, %c0_i32_0 : i32, i32
  }
  func.func @transform_11(%arg0: i32) -> (i32, i32) {
    %c0_i32 = arith.constant 0 : i32
    %c0_i32_0 = arith.constant 0 : i32
    %c0_i32_1 = arith.constant 0 : i32
    return %c0_i32, %c0_i32_0 : i32, i32
  }
  func.func @transform_12(%arg0: i32) -> (i32, i32) {
    %c0_i32 = arith.constant 0 : i32
    %c0_i32_0 = arith.constant 0 : i32
    %c0_i32_1 = arith.constant 0 : i32
    return %c0_i32, %c0_i32_0 : i32, i32
  }
  func.func @transform_13(%arg0: i32) -> (i32, i32) {
    %c0_i32 = arith.constant 0 : i32
    %c0_i32_0 = arith.constant 0 : i32
    %c0_i32_1 = arith.constant 0 : i32
    return %c0_i32, %c0_i32_0 : i32, i32
  }
  func.func @transform_14(%arg0: i32) -> (i32, i32) {
    %c0_i32 = arith.constant 0 : i32
    %c0_i32_0 = arith.constant 0 : i32
    %c0_i32_1 = arith.constant 0 : i32
    return %c0_i32, %c0_i32_0 : i32, i32
  }
  func.func @transform_15(%arg0: i32) -> (i32, i32) {
    %c0_i32 = arith.constant 0 : i32
    %c0_i32_0 = arith.constant 0 : i32
    %c0_i32_1 = arith.constant 0 : i32
    return %c0_i32, %c0_i32_0 : i32, i32
  }
  func.func @transform_16(%arg0: i32) -> (i32, i32) {
    %c0_i32 = arith.constant 0 : i32
    %c0_i32_0 = arith.constant 0 : i32
    %c0_i32_1 = arith.constant 0 : i32
    return %c0_i32, %c0_i32_0 : i32, i32
  }
  func.func @transform_17(%arg0: i32) -> (i32, i32) {
    %c0_i32 = arith.constant 0 : i32
    %c0_i32_0 = arith.constant 0 : i32
    %c0_i32_1 = arith.constant 0 : i32
    return %c0_i32, %c0_i32_0 : i32, i32
  }
  func.func @transform_18(%arg0: i32) -> (i32, i32) {
    %c0_i32 = arith.constant 0 : i32
    %c0_i32_0 = arith.constant 0 : i32
    return %arg0, %c0_i32 : i32, i32
  }
  func.func @transform_19(%arg0: i32) -> (i32, i32) {
    %c0_i32 = arith.constant 0 : i32
    %c0_i32_0 = arith.constant 0 : i32
    return %arg0, %c0_i32 : i32, i32
  }
}

</mosaic_0001>

<llo_original>
// kernel: tpu_custom_call.1
$region0: #{tpu_custom_call.1}
  #allocation0 [shape = 'u32[]', space=smem, size = 0x4, offset = 0x4, fixed_abs, tag = 'smem constant byte address 0x4 - core index']
  #allocation1 [shape = 'u32[144,128]{1,0:T(1,128)}', space=vmem, size = 0x12000, scoped, tag = 'internal scratch']
  %s0 = inlined_call_operand.vmem [shape: f32[8,784], index: 0, kind: input, shape index: {}]
  %s1 = inlined_call_operand.vmem [shape: f32[8,2], index: 1, kind: input, shape index: {}]
  %s2 = inlined_call_operand.vmem [shape: bf16[784,512], index: 2, kind: input, shape index: {}]
  %s3 = inlined_call_operand.vmem [shape: f32[1,512], index: 3, kind: input, shape index: {}]
  %s4 = inlined_call_operand.vmem [shape: bf16[512,128], index: 4, kind: input, shape index: {}]
  %s5 = inlined_call_operand.vmem [shape: f32[1,128], index: 5, kind: input, shape index: {}]
  %s6 = inlined_call_operand.vmem [shape: bf16[128,64], index: 6, kind: input, shape index: {}]
  %s7 = inlined_call_operand.vmem [shape: f32[1,64], index: 7, kind: input, shape index: {}]
  %s8 = inlined_call_operand.vmem [shape: bf16[64,4], index: 8, kind: input, shape index: {}]
  %s9 = inlined_call_operand.vmem [shape: f32[1,4], index: 9, kind: input, shape index: {}]
  %s10 = inlined_call_operand.vmem [shape: bf16[2,64], index: 10, kind: input, shape index: {}]
  %s11 = inlined_call_operand.vmem [shape: f32[1,64], index: 11, kind: input, shape index: {}]
  %s12 = inlined_call_operand.vmem [shape: bf16[64,128], index: 12, kind: input, shape index: {}]
  %s13 = inlined_call_operand.vmem [shape: f32[1,128], index: 13, kind: input, shape index: {}]
  %s14 = inlined_call_operand.vmem [shape: bf16[128,512], index: 14, kind: input, shape index: {}]
  %s15 = inlined_call_operand.vmem [shape: f32[1,512], index: 15, kind: input, shape index: {}]
  %s16 = inlined_call_operand.vmem [shape: bf16[512,784], index: 16, kind: input, shape index: {}]
  %s17 = inlined_call_operand.vmem [shape: f32[1,784], index: 17, kind: input, shape index: {}]
  %s18 = inlined_call_operand.hbm [shape: f32[8,784], index: 18, kind: output, shape index: {0}]
  %s19 = inlined_call_operand.vmem [shape: f32[8,4], index: 19, kind: output, shape index: {1}]
  %20 = xla_tuple %s18, %s19
  %s21 = sld [smem:[#allocation0]]
  $region90: #{tpu_custom_call.1} parent=0
    _
  %s23 = ssub.s32 1, %s21
  %s24 = scalar_select 0, %s23, %s21
  $region1: #{tpu_custom_call.1} parent=0
    #allocation2 [shape = 'u8[28672]{0}', space=vmem, size = 0x7000, scoped, tag = 'output window, operand 0, single buffered']
    #allocation3 [shape = 's32[1]{0}', space=sflag, size = 0x4, scoped, tag = 'scoped memory for tpu_custom_call.1']
    %25 = vsyncpa [#allocation3], 0
    // Predicated region
    $region2: #{tpu_custom_call.1} parent=1 // pred_check
      _
    $region3: #{tpu_custom_call.1} parent=1 // pred_check_branch
      %27 = sbr.rel (0) target = $region5
    $region4: #{tpu_custom_call.1} parent=1 // pred_region
      _
    $region5: #{tpu_custom_call.1} parent=1 // pred_fallthru
      _
    // Predicated region
    $region6: #{tpu_custom_call.1} parent=1 // pred_check
      _
    $region7: #{tpu_custom_call.1} parent=1 // pred_check_branch
      %29 = sbr.rel (0) target = $region9
    $region8: #{tpu_custom_call.1} parent=1 // pred_region
      _
    $region9: #{tpu_custom_call.1} parent=1 // pred_fallthru
      _
    // Predicated region
    $region10: #{tpu_custom_call.1} parent=1 // pred_check
      _
    $region11: #{tpu_custom_call.1} parent=1 // pred_check_branch
      %31 = sbr.rel (0) target = $region13
    $region12: #{tpu_custom_call.1} parent=1 // pred_region
      _
    $region13: #{tpu_custom_call.1} parent=1 // pred_fallthru
      _
    // Predicated region
    $region14: #{tpu_custom_call.1} parent=1 // pred_check
      _
    $region15: #{tpu_custom_call.1} parent=1 // pred_check_branch
      %33 = sbr.rel (0) target = $region17
    $region16: #{tpu_custom_call.1} parent=1 // pred_region
      _
    $region17: #{tpu_custom_call.1} parent=1 // pred_fallthru
      _
    // Predicated region
    $region18: #{tpu_custom_call.1} parent=1 // pred_check
      _
    $region19: #{tpu_custom_call.1} parent=1 // pred_check_branch
      %35 = sbr.rel (0) target = $region21
    $region20: #{tpu_custom_call.1} parent=1 // pred_region
      _
    $region21: #{tpu_custom_call.1} parent=1 // pred_fallthru
      _
    // Predicated region
    $region22: #{tpu_custom_call.1} parent=1 // pred_check
      _
    $region23: #{tpu_custom_call.1} parent=1 // pred_check_branch
      %37 = sbr.rel (0) target = $region25
    $region24: #{tpu_custom_call.1} parent=1 // pred_region
      _
    $region25: #{tpu_custom_call.1} parent=1 // pred_fallthru
      _
    // Predicated region
    $region26: #{tpu_custom_call.1} parent=1 // pred_check
      _
    $region27: #{tpu_custom_call.1} parent=1 // pred_check_branch
      %39 = sbr.rel (0) target = $region29
    $region28: #{tpu_custom_call.1} parent=1 // pred_region
      _
    $region29: #{tpu_custom_call.1} parent=1 // pred_fallthru
      _
    // Predicated region
    $region30: #{tpu_custom_call.1} parent=1 // pred_check
      _
    $region31: #{tpu_custom_call.1} parent=1 // pred_check_branch
      %41 = sbr.rel (0) target = $region33
    $region32: #{tpu_custom_call.1} parent=1 // pred_region
      _
    $region33: #{tpu_custom_call.1} parent=1 // pred_fallthru
      _
    // Predicated region
    $region34: #{tpu_custom_call.1} parent=1 // pred_check
      _
    $region35: #{tpu_custom_call.1} parent=1 // pred_check_branch
      %43 = sbr.rel (0) target = $region37
    $region36: #{tpu_custom_call.1} parent=1 // pred_region
      _
    $region37: #{tpu_custom_call.1} parent=1 // pred_fallthru
      _
    // Predicated region
    $region38: #{tpu_custom_call.1} parent=1 // pred_check
      _
    $region39: #{tpu_custom_call.1} parent=1 // pred_check_branch
      %45 = sbr.rel (0) target = $region41
    $region40: #{tpu_custom_call.1} parent=1 // pred_region
      _
    $region41: #{tpu_custom_call.1} parent=1 // pred_fallthru
      _
    // Predicated region
    $region42: #{tpu_custom_call.1} parent=1 // pred_check
      _
    $region43: #{tpu_custom_call.1} parent=1 // pred_check_branch
      %47 = sbr.rel (0) target = $region45
    $region44: #{tpu_custom_call.1} parent=1 // pred_region
      _
    $region45: #{tpu_custom_call.1} parent=1 // pred_fallthru
      _
    // Predicated region
    $region46: #{tpu_custom_call.1} parent=1 // pred_check
      _
    $region47: #{tpu_custom_call.1} parent=1 // pred_check_branch
      %49 = sbr.rel (0) target = $region49
    $region48: #{tpu_custom_call.1} parent=1 // pred_region
      _
    $region49: #{tpu_custom_call.1} parent=1 // pred_fallthru
      _
    // Predicated region
    $region50: #{tpu_custom_call.1} parent=1 // pred_check
      _
    $region51: #{tpu_custom_call.1} parent=1 // pred_check_branch
      %51 = sbr.rel (0) target = $region53
    $region52: #{tpu_custom_call.1} parent=1 // pred_region
      _
    $region53: #{tpu_custom_call.1} parent=1 // pred_fallthru
      _
    // Predicated region
    $region54: #{tpu_custom_call.1} parent=1 // pred_check
      _
    $region55: #{tpu_custom_call.1} parent=1 // pred_check_branch
      %53 = sbr.rel (0) target = $region57
    $region56: #{tpu_custom_call.1} parent=1 // pred_region
      _
    $region57: #{tpu_custom_call.1} parent=1 // pred_fallthru
      _
    // Predicated region
    $region58: #{tpu_custom_call.1} parent=1 // pred_check
      _
    $region59: #{tpu_custom_call.1} parent=1 // pred_check_branch
      %55 = sbr.rel (0) target = $region61
    $region60: #{tpu_custom_call.1} parent=1 // pred_region
      _
    $region61: #{tpu_custom_call.1} parent=1 // pred_fallthru
      _
    // Predicated region
    $region62: #{tpu_custom_call.1} parent=1 // pred_check
      _
    $region63: #{tpu_custom_call.1} parent=1 // pred_check_branch
      %57 = sbr.rel (0) target = $region65
    $region64: #{tpu_custom_call.1} parent=1 // pred_region
      _
    $region65: #{tpu_custom_call.1} parent=1 // pred_fallthru
      _
    // Predicated region
    $region66: #{tpu_custom_call.1} parent=1 // pred_check
      _
    $region67: #{tpu_custom_call.1} parent=1 // pred_check_branch
      %59 = sbr.rel (0) target = $region69
    $region68: #{tpu_custom_call.1} parent=1 // pred_region
      _
    $region69: #{tpu_custom_call.1} parent=1 // pred_fallthru
      _
    // Predicated region
    $region70: #{tpu_custom_call.1} parent=1 // pred_check
      _
    $region71: #{tpu_custom_call.1} parent=1 // pred_check_branch
      %61 = sbr.rel (0) target = $region73
    $region72: #{tpu_custom_call.1} parent=1 // pred_region
      _
    $region73: #{tpu_custom_call.1} parent=1 // pred_fallthru
      _
    %v63 = vld [vmem:[%s0] sm:$0xff]
    %v64 = vld [vmem:[%s0 + $0x8] sm:$0xff]
    %v65 = vld [vmem:[%s0 + $0x10] sm:$0xff]
    %v66 = vld [vmem:[%s0 + $0x18] sm:$0xff]
    %v67 = vld [vmem:[%s0 + $0x20] sm:$0xff]
    %v68 = vld [vmem:[%s0 + $0x28] sm:$0xff]
    %v69 = vld [vmem:[%s0 + $0x30] sm:$0xff]
    %v70 = vpack.c.bf16 %v63, %v63
    %v71 = vpack.c.bf16 %v64, %v64
    %v72 = vpack.c.bf16 %v65, %v65
    %v73 = vpack.c.bf16 %v66, %v66
    %v74 = vpack.c.bf16 %v67, %v67
    %v75 = vpack.c.bf16 %v68, %v68
    %v76 = vpack.c.bf16 %v69, %v69
    %v77 = vld [vmem:[%s2] sm:$0xff]
    %v78 = vld [vmem:[%s2 + $0x8] sm:$0xff]
    %v79 = vld [vmem:[%s2 + $0x10] sm:$0xff]
    %v80 = vld [vmem:[%s2 + $0x18] sm:$0xff]
    %v81 = vld [vmem:[%s2 + $0x20] sm:$0xff]
    %v82 = vld [vmem:[%s2 + $0x28] sm:$0xff]
    %v83 = vld [vmem:[%s2 + $0x30] sm:$0xff]
    %v84 = vld [vmem:[%s2 + $0x38] sm:$0xff]
    %v85 = vld [vmem:[%s2 + $0x40] sm:$0xff]
    %v86 = vld [vmem:[%s2 + $0x48] sm:$0xff]
    %v87 = vld [vmem:[%s2 + $0x50] sm:$0xff]
    %v88 = vld [vmem:[%s2 + $0x58] sm:$0xff]
    %v89 = vld [vmem:[%s2 + $0x60] sm:$0xff]
    %v90 = vld [vmem:[%s2 + $0x68] sm:$0xff]
    %v91 = vld [vmem:[%s2 + $0x70] sm:$0xff]
    %v92 = vld [vmem:[%s2 + $0x78] sm:$0xff]
    %v93 = vld [vmem:[%s2 + $0x80] sm:$0xff]
    %v94 = vld [vmem:[%s2 + $0x88] sm:$0xff]
    %v95 = vld [vmem:[%s2 + $0x90] sm:$0xff]
    %v96 = vld [vmem:[%s2 + $0x98] sm:$0xff]
    %v97 = vld [vmem:[%s2 + $0xa0] sm:$0xff]
    %v98 = vld [vmem:[%s2 + $0xa8] sm:$0xff]
    %v99 = vld [vmem:[%s2 + $0xb0] sm:$0xff]
    %v100 = vld [vmem:[%s2 + $0xb8] sm:$0xff]
    %v101 = vld [vmem:[%s2 + $0xc0] sm:$0xff]
    %v102 = vld [vmem:[%s2 + $0xc8] sm:$0xff]
    %v103 = vld [vmem:[%s2 + $0xd0] sm:$0xff]
    %v104 = vld [vmem:[%s2 + $0xd8] sm:$0xff]
    %v105 = vld [vmem:[%s2 + $0xe0] sm:$0xff]
    %v106 = vld [vmem:[%s2 + $0xe8] sm:$0xff]
    %v107 = vld [vmem:[%s2 + $0xf0] sm:$0xff]
    %v108 = vld [vmem:[%s2 + $0xf8] sm:$0xff]
    %v109 = vld [vmem:[%s2 + $0x100] sm:$0xff]
    %v110 = vld [vmem:[%s2 + $0x108] sm:$0xff]
    %v111 = vld [vmem:[%s2 + $0x110] sm:$0xff]
    %v112 = vld [vmem:[%s2 + $0x118] sm:$0xff]
    %v113 = vld [vmem:[%s2 + $0x120] sm:$0xff]
    %v114 = vld [vmem:[%s2 + $0x128] sm:$0xff]
    %v115 = vld [vmem:[%s2 + $0x130] sm:$0xff]
    %v116 = vld [vmem:[%s2 + $0x138] sm:$0xff]
    %v117 = vld [vmem:[%s2 + $0x140] sm:$0xff]
    %v118 = vld [vmem:[%s2 + $0x148] sm:$0xff]
    %v119 = vld [vmem:[%s2 + $0x150] sm:$0xff]
    %v120 = vld [vmem:[%s2 + $0x158] sm:$0xff]
    %v121 = vld [vmem:[%s2 + $0x160] sm:$0xff]
    %v122 = vld [vmem:[%s2 + $0x168] sm:$0xff]
    %v123 = vld [vmem:[%s2 + $0x170] sm:$0xff]
    %v124 = vld [vmem:[%s2 + $0x178] sm:$0xff]
    %v125 = vld [vmem:[%s2 + $0x180] sm:$0xff]
    %v126 = vld [vmem:[%s2 + $0x188] sm:$0xff]
    %v127 = vld [vmem:[%s2 + $0x190] sm:$0xff]
    %v128 = vld [vmem:[%s2 + $0x198] sm:$0xff]
    %v129 = vld [vmem:[%s2 + $0x1a0] sm:$0xff]
    %v130 = vld [vmem:[%s2 + $0x1a8] sm:$0xff]
    %v131 = vld [vmem:[%s2 + $0x1b0] sm:$0xff]
    %v132 = vld [vmem:[%s2 + $0x1b8] sm:$0xff]
    %v133 = vld [vmem:[%s2 + $0x1c0] sm:$0xff]
    %v134 = vld [vmem:[%s2 + $0x1c8] sm:$0xff]
    %v135 = vld [vmem:[%s2 + $0x1d0] sm:$0xff]
    %v136 = vld [vmem:[%s2 + $0x1d8] sm:$0xff]
    %v137 = vld [vmem:[%s2 + $0x1e0] sm:$0xff]
    %v138 = vld [vmem:[%s2 + $0x1e8] sm:$0xff]
    %v139 = vld [vmem:[%s2 + $0x1f0] sm:$0xff]
    %v140 = vld [vmem:[%s2 + $0x1f8] sm:$0xff]
    %v141 = vld [vmem:[%s2 + $0x200] sm:$0xff]
    %v142 = vld [vmem:[%s2 + $0x208] sm:$0xff]
    %v143 = vld [vmem:[%s2 + $0x210] sm:$0xff]
    %v144 = vld [vmem:[%s2 + $0x218] sm:$0xff]
    %v145 = vld [vmem:[%s2 + $0x220] sm:$0xff]
    %v146 = vld [vmem:[%s2 + $0x228] sm:$0xff]
    %v147 = vld [vmem:[%s2 + $0x230] sm:$0xff]
    %v148 = vld [vmem:[%s2 + $0x238] sm:$0xff]
    %v149 = vld [vmem:[%s2 + $0x240] sm:$0xff]
    %v150 = vld [vmem:[%s2 + $0x248] sm:$0xff]
    %v151 = vld [vmem:[%s2 + $0x250] sm:$0xff]
    %v152 = vld [vmem:[%s2 + $0x258] sm:$0xff]
    %v153 = vld [vmem:[%s2 + $0x260] sm:$0xff]
    %v154 = vld [vmem:[%s2 + $0x268] sm:$0xff]
    %v155 = vld [vmem:[%s2 + $0x270] sm:$0xff]
    %v156 = vld [vmem:[%s2 + $0x278] sm:$0xff]
    %v157 = vld [vmem:[%s2 + $0x280] sm:$0xff]
    %v158 = vld [vmem:[%s2 + $0x288] sm:$0xff]
    %v159 = vld [vmem:[%s2 + $0x290] sm:$0xff]
    %v160 = vld [vmem:[%s2 + $0x298] sm:$0xff]
    %v161 = vld [vmem:[%s2 + $0x2a0] sm:$0xff]
    %v162 = vld [vmem:[%s2 + $0x2a8] sm:$0xff]
    %v163 = vld [vmem:[%s2 + $0x2b0] sm:$0xff]
    %v164 = vld [vmem:[%s2 + $0x2b8] sm:$0xff]
    %v165 = vld [vmem:[%s2 + $0x2c0] sm:$0xff]
    %v166 = vld [vmem:[%s2 + $0x2c8] sm:$0xff]
    %v167 = vld [vmem:[%s2 + $0x2d0] sm:$0xff]
    %v168 = vld [vmem:[%s2 + $0x2d8] sm:$0xff]
    %v169 = vld [vmem:[%s2 + $0x2e0] sm:$0xff]
    %v170 = vld [vmem:[%s2 + $0x2e8] sm:$0xff]
    %v171 = vld [vmem:[%s2 + $0x2f0] sm:$0xff]
    %v172 = vld [vmem:[%s2 + $0x2f8] sm:$0xff]
    %v173 = vld [vmem:[%s2 + $0x300] sm:$0xff]
    %v174 = vld [vmem:[%s2 + $0x308] sm:$0xff]
    %v175 = vld [vmem:[%s2 + $0x310] sm:$0xff]
    %v176 = vld [vmem:[%s2 + $0x318] sm:$0xff]
    %v177 = vld [vmem:[%s2 + $0x320] sm:$0xff]
    %v178 = vld [vmem:[%s2 + $0x328] sm:$0xff]
    %v179 = vld [vmem:[%s2 + $0x330] sm:$0xff]
    %v180 = vld [vmem:[%s2 + $0x338] sm:$0xff]
    %v181 = vld [vmem:[%s2 + $0x340] sm:$0xff]
    %v182 = vld [vmem:[%s2 + $0x348] sm:$0xff]
    %v183 = vld [vmem:[%s2 + $0x350] sm:$0xff]
    %v184 = vld [vmem:[%s2 + $0x358] sm:$0xff]
    %v185 = vld [vmem:[%s2 + $0x360] sm:$0xff]
    %v186 = vld [vmem:[%s2 + $0x368] sm:$0xff]
    %v187 = vld [vmem:[%s2 + $0x370] sm:$0xff]
    %v188 = vld [vmem:[%s2 + $0x378] sm:$0xff]
    %v189 = vld [vmem:[%s2 + $0x380] sm:$0xff]
    %v190 = vld [vmem:[%s2 + $0x388] sm:$0xff]
    %v191 = vld [vmem:[%s2 + $0x390] sm:$0xff]
    %v192 = vld [vmem:[%s2 + $0x398] sm:$0xff]
    %v193 = vld [vmem:[%s2 + $0x3a0] sm:$0xff]
    %v194 = vld [vmem:[%s2 + $0x3a8] sm:$0xff]
    %v195 = vld [vmem:[%s2 + $0x3b0] sm:$0xff]
    %v196 = vld [vmem:[%s2 + $0x3b8] sm:$0xff]
    %v197 = vld [vmem:[%s2 + $0x3c0] sm:$0xff]
    %v198 = vld [vmem:[%s2 + $0x3c8] sm:$0xff]
    %v199 = vld [vmem:[%s2 + $0x3d0] sm:$0xff]
    %v200 = vld [vmem:[%s2 + $0x3d8] sm:$0xff]
    %v201 = vld [vmem:[%s2 + $0x3e0] sm:$0xff]
    %v202 = vld [vmem:[%s2 + $0x3e8] sm:$0xff]
    %v203 = vld [vmem:[%s2 + $0x3f0] sm:$0xff]
    %v204 = vld [vmem:[%s2 + $0x3f8] sm:$0xff]
    %v205 = vld [vmem:[%s2 + $0x400] sm:$0xff]
    %v206 = vld [vmem:[%s2 + $0x408] sm:$0xff]
    %v207 = vld [vmem:[%s2 + $0x410] sm:$0xff]
    %v208 = vld [vmem:[%s2 + $0x418] sm:$0xff]
    %v209 = vld [vmem:[%s2 + $0x420] sm:$0xff]
    %v210 = vld [vmem:[%s2 + $0x428] sm:$0xff]
    %v211 = vld [vmem:[%s2 + $0x430] sm:$0xff]
    %v212 = vld [vmem:[%s2 + $0x438] sm:$0xff]
    %v213 = vld [vmem:[%s2 + $0x440] sm:$0xff]
    %v214 = vld [vmem:[%s2 + $0x448] sm:$0xff]
    %v215 = vld [vmem:[%s2 + $0x450] sm:$0xff]
    %v216 = vld [vmem:[%s2 + $0x458] sm:$0xff]
    %v217 = vld [vmem:[%s2 + $0x460] sm:$0xff]
    %v218 = vld [vmem:[%s2 + $0x468] sm:$0xff]
    %v219 = vld [vmem:[%s2 + $0x470] sm:$0xff]
    %v220 = vld [vmem:[%s2 + $0x478] sm:$0xff]
    %v221 = vld [vmem:[%s2 + $0x480] sm:$0xff]
    %v222 = vld [vmem:[%s2 + $0x488] sm:$0xff]
    %v223 = vld [vmem:[%s2 + $0x490] sm:$0xff]
    %v224 = vld [vmem:[%s2 + $0x498] sm:$0xff]
    %v225 = vld [vmem:[%s2 + $0x4a0] sm:$0xff]
    %v226 = vld [vmem:[%s2 + $0x4a8] sm:$0xff]
    %v227 = vld [vmem:[%s2 + $0x4b0] sm:$0xff]
    %v228 = vld [vmem:[%s2 + $0x4b8] sm:$0xff]
    %v229 = vld [vmem:[%s2 + $0x4c0] sm:$0xff]
    %v230 = vld [vmem:[%s2 + $0x4c8] sm:$0xff]
    %v231 = vld [vmem:[%s2 + $0x4d0] sm:$0xff]
    %v232 = vld [vmem:[%s2 + $0x4d8] sm:$0xff]
    %v233 = vld [vmem:[%s2 + $0x4e0] sm:$0xff]
    %v234 = vld [vmem:[%s2 + $0x4e8] sm:$0xff]
    %v235 = vld [vmem:[%s2 + $0x4f0] sm:$0xff]
    %v236 = vld [vmem:[%s2 + $0x4f8] sm:$0xff]
    %v237 = vld [vmem:[%s2 + $0x500] sm:$0xff]
    %v238 = vld [vmem:[%s2 + $0x508] sm:$0xff]
    %v239 = vld [vmem:[%s2 + $0x510] sm:$0xff]
    %v240 = vld [vmem:[%s2 + $0x518] sm:$0xff]
    %v241 = vld [vmem:[%s2 + $0x520] sm:$0xff]
    %v242 = vld [vmem:[%s2 + $0x528] sm:$0xff]
    %v243 = vld [vmem:[%s2 + $0x530] sm:$0xff]
    %v244 = vld [vmem:[%s2 + $0x538] sm:$0xff]
    %v245 = vld [vmem:[%s2 + $0x540] sm:$0xff]
    %v246 = vld [vmem:[%s2 + $0x548] sm:$0xff]
    %v247 = vld [vmem:[%s2 + $0x550] sm:$0xff]
    %v248 = vld [vmem:[%s2 + $0x558] sm:$0xff]
    %v249 = vld [vmem:[%s2 + $0x560] sm:$0xff]
    %v250 = vld [vmem:[%s2 + $0x568] sm:$0xff]
    %v251 = vld [vmem:[%s2 + $0x570] sm:$0xff]
    %v252 = vld [vmem:[%s2 + $0x578] sm:$0xff]
    %v253 = vld [vmem:[%s2 + $0x580] sm:$0xff]
    %v254 = vld [vmem:[%s2 + $0x588] sm:$0xff]
    %v255 = vld [vmem:[%s2 + $0x590] sm:$0xff]
    %v256 = vld [vmem:[%s2 + $0x598] sm:$0xff]
    %v257 = vld [vmem:[%s2 + $0x5a0] sm:$0xff]
    %v258 = vld [vmem:[%s2 + $0x5a8] sm:$0xff]
    %v259 = vld [vmem:[%s2 + $0x5b0] sm:$0xff]
    %v260 = vld [vmem:[%s2 + $0x5b8] sm:$0xff]
    %v261 = vld [vmem:[%s2 + $0x5c0] sm:$0xff]
    %v262 = vld [vmem:[%s2 + $0x5c8] sm:$0xff]
    %v263 = vld [vmem:[%s2 + $0x5d0] sm:$0xff]
    %v264 = vld [vmem:[%s2 + $0x5d8] sm:$0xff]
    %v265 = vld [vmem:[%s2 + $0x5e0] sm:$0xff]
    %v266 = vld [vmem:[%s2 + $0x5e8] sm:$0xff]
    %v267 = vld [vmem:[%s2 + $0x5f0] sm:$0xff]
    %v268 = vld [vmem:[%s2 + $0x5f8] sm:$0xff]
    %v269 = vld [vmem:[%s2 + $0x600] sm:$0xff]
    %v270 = vld [vmem:[%s2 + $0x608] sm:$0xff]
    %v271 = vld [vmem:[%s2 + $0x610] sm:$0xff]
    %v272 = vld [vmem:[%s2 + $0x618] sm:$0xff]
    %v273 = vld [vmem:[%s3] sm:$0xf]
    %v275 = vlaneseq
    %v276 = vshrl.u32 %v275, 7
    %v277 = vsub.s32 0, %v276
    %v278 = vrot.slane %v273, %v277
    %v279 = vlaneseq
    %v280 = vshrl.u32 %v279, 7
    %v281 = vsub.s32 1, %v280
    %v282 = vrot.slane %v273, %v281
    %v283 = vlaneseq
    %v284 = vshrl.u32 %v283, 7
    %v285 = vsub.s32 2, %v284
    %v286 = vrot.slane %v273, %v285
    %v287 = vlaneseq
    %v288 = vshrl.u32 %v287, 7
    %v289 = vsub.s32 3, %v288
    %v290 = vrot.slane %v273, %v289
    %v491 = vunpack.c.l.b16 %v77
    %v492 = vunpack.c.h.b16 %v77
    %v493 = vunpack.c.l.b16 %v78
    %v494 = vunpack.c.h.b16 %v78
    %v495 = vunpack.c.l.b16 %v79
    %v496 = vunpack.c.h.b16 %v79
    %v497 = vunpack.c.l.b16 %v80
    %v498 = vunpack.c.h.b16 %v80
    %v499 = vunpack.c.l.b16 %v81
    %v500 = vunpack.c.h.b16 %v81
    %v501 = vunpack.c.l.b16 %v82
    %v502 = vunpack.c.h.b16 %v82
    %v503 = vunpack.c.l.b16 %v83
    %v504 = vunpack.c.h.b16 %v83
    %v505 = vunpack.c.l.b16 %v84
    %v506 = vunpack.c.h.b16 %v84
    %v507 = vunpack.c.l.b16 %v85
    %v508 = vunpack.c.h.b16 %v85
    %v509 = vunpack.c.l.b16 %v86
    %v510 = vunpack.c.h.b16 %v86
    %v511 = vunpack.c.l.b16 %v87
    %v512 = vunpack.c.h.b16 %v87
    %v513 = vunpack.c.l.b16 %v88
    %v514 = vunpack.c.h.b16 %v88
    %v515 = vunpack.c.l.b16 %v89
    %v516 = vunpack.c.h.b16 %v89
    %v517 = vunpack.c.l.b16 %v90
    %v518 = vunpack.c.h.b16 %v90
    %v519 = vunpack.c.l.b16 %v91
    %v520 = vunpack.c.h.b16 %v91
    %v521 = vunpack.c.l.b16 %v92
    %v522 = vunpack.c.h.b16 %v92
    %v523 = vunpack.c.l.b16 %v93
    %v524 = vunpack.c.h.b16 %v93
    %v525 = vunpack.c.l.b16 %v94
    %v526 = vunpack.c.h.b16 %v94
    %v527 = vunpack.c.l.b16 %v95
    %v528 = vunpack.c.h.b16 %v95
    %v529 = vunpack.c.l.b16 %v96
    %v530 = vunpack.c.h.b16 %v96
    %v531 = vunpack.c.l.b16 %v97
    %v532 = vunpack.c.h.b16 %v97
    %v533 = vunpack.c.l.b16 %v98
    %v534 = vunpack.c.h.b16 %v98
    %v535 = vunpack.c.l.b16 %v99
    %v536 = vunpack.c.h.b16 %v99
    %v537 = vunpack.c.l.b16 %v100
    %v538 = vunpack.c.h.b16 %v100
    %v539 = vunpack.c.l.b16 %v101
    %v540 = vunpack.c.h.b16 %v101
    %v541 = vunpack.c.l.b16 %v102
    %v542 = vunpack.c.h.b16 %v102
    %v543 = vunpack.c.l.b16 %v103
    %v544 = vunpack.c.h.b16 %v103
    %v545 = vunpack.c.l.b16 %v104
    %v546 = vunpack.c.h.b16 %v104
    %v547 = vunpack.c.l.b16 %v105
    %v548 = vunpack.c.h.b16 %v105
    %v549 = vunpack.c.l.b16 %v106
    %v550 = vunpack.c.h.b16 %v106
    %v551 = vunpack.c.l.b16 %v107
    %v552 = vunpack.c.h.b16 %v107
    %v553 = vunpack.c.l.b16 %v108
    %v554 = vunpack.c.h.b16 %v108
    %v555 = vunpack.c.l.b16 %v109
    %v556 = vunpack.c.h.b16 %v109
    %v557 = vunpack.c.l.b16 %v110
    %v558 = vunpack.c.h.b16 %v110
    %v559 = vunpack.c.l.b16 %v111
    %v560 = vunpack.c.h.b16 %v111
    %v561 = vunpack.c.l.b16 %v112
    %v562 = vunpack.c.h.b16 %v112
    %v563 = vunpack.c.l.b16 %v113
    %v564 = vunpack.c.h.b16 %v113
    %v565 = vunpack.c.l.b16 %v114
    %v566 = vunpack.c.h.b16 %v114
    %v567 = vunpack.c.l.b16 %v115
    %v568 = vunpack.c.h.b16 %v115
    %v569 = vunpack.c.l.b16 %v116
    %v570 = vunpack.c.h.b16 %v116
    %v571 = vunpack.c.l.b16 %v117
    %v572 = vunpack.c.h.b16 %v117
    %v573 = vunpack.c.l.b16 %v118
    %v574 = vunpack.c.h.b16 %v118
    %v575 = vunpack.c.l.b16 %v119
    %v576 = vunpack.c.h.b16 %v119
    %v577 = vunpack.c.l.b16 %v120
    %v578 = vunpack.c.h.b16 %v120
    %v579 = vunpack.c.l.b16 %v121
    %v580 = vunpack.c.h.b16 %v121
    %v581 = vunpack.c.l.b16 %v122
    %v582 = vunpack.c.h.b16 %v122
    %v583 = vunpack.c.l.b16 %v123
    %v584 = vunpack.c.h.b16 %v123
    %v585 = vunpack.c.l.b16 %v124
    %v586 = vunpack.c.h.b16 %v124
    %v587 = vunpack.c.l.b16 %v125
    %v588 = vunpack.c.h.b16 %v125
    %v589 = vunpack.c.l.b16 %v126
    %v590 = vunpack.c.h.b16 %v126
    %v591 = vunpack.c.l.b16 %v127
    %v592 = vunpack.c.h.b16 %v127
    %v593 = vunpack.c.l.b16 %v128
    %v594 = vunpack.c.h.b16 %v128
    %v595 = vunpack.c.l.b16 %v129
    %v596 = vunpack.c.h.b16 %v129
    %v597 = vunpack.c.l.b16 %v130
    %v598 = vunpack.c.h.b16 %v130
    %v599 = vunpack.c.l.b16 %v131
    %v600 = vunpack.c.h.b16 %v131
    %v601 = vunpack.c.l.b16 %v132
    %v602 = vunpack.c.h.b16 %v132
    %v603 = vunpack.c.l.b16 %v133
    %v604 = vunpack.c.h.b16 %v133
    %v605 = vunpack.c.l.b16 %v134
    %v606 = vunpack.c.h.b16 %v134
    %v607 = vunpack.c.l.b16 %v135
    %v608 = vunpack.c.h.b16 %v135
    %v609 = vunpack.c.l.b16 %v136
    %v610 = vunpack.c.h.b16 %v136
    %v611 = vunpack.c.l.b16 %v137
    %v612 = vunpack.c.h.b16 %v137
    %v613 = vunpack.c.l.b16 %v138
    %v614 = vunpack.c.h.b16 %v138
    %v615 = vunpack.c.l.b16 %v139
    %v616 = vunpack.c.h.b16 %v139
    %v617 = vunpack.c.l.b16 %v140
    %v618 = vunpack.c.h.b16 %v140
    %v619 = vunpack.c.l.b16 %v141
    %v620 = vunpack.c.h.b16 %v141
    %v621 = vunpack.c.l.b16 %v142
    %v622 = vunpack.c.h.b16 %v142
    %v623 = vunpack.c.l.b16 %v143
    %v624 = vunpack.c.h.b16 %v143
    %v625 = vunpack.c.l.b16 %v144
    %v626 = vunpack.c.h.b16 %v144
    %v627 = vunpack.c.l.b16 %v145
    %v628 = vunpack.c.h.b16 %v145
    %v629 = vunpack.c.l.b16 %v146
    %v630 = vunpack.c.h.b16 %v146
    %v631 = vunpack.c.l.b16 %v147
    %v632 = vunpack.c.h.b16 %v147
    %v633 = vunpack.c.l.b16 %v148
    %v634 = vunpack.c.h.b16 %v148
    %v635 = vunpack.c.l.b16 %v149
    %v636 = vunpack.c.h.b16 %v149
    %v637 = vunpack.c.l.b16 %v150
    %v638 = vunpack.c.h.b16 %v150
    %v639 = vunpack.c.l.b16 %v151
    %v640 = vunpack.c.h.b16 %v151
    %v641 = vunpack.c.l.b16 %v152
    %v642 = vunpack.c.h.b16 %v152
    %v643 = vunpack.c.l.b16 %v153
    %v644 = vunpack.c.h.b16 %v153
    %v645 = vunpack.c.l.b16 %v154
    %v646 = vunpack.c.h.b16 %v154
    %v647 = vunpack.c.l.b16 %v155
    %v648 = vunpack.c.h.b16 %v155
    %v649 = vunpack.c.l.b16 %v156
    %v650 = vunpack.c.h.b16 %v156
    %v651 = vunpack.c.l.b16 %v157
    %v652 = vunpack.c.h.b16 %v157
    %v653 = vunpack.c.l.b16 %v158
    %v654 = vunpack.c.h.b16 %v158
    %v655 = vunpack.c.l.b16 %v159
    %v656 = vunpack.c.h.b16 %v159
    %v657 = vunpack.c.l.b16 %v160
    %v658 = vunpack.c.h.b16 %v160
    %v659 = vunpack.c.l.b16 %v161
    %v660 = vunpack.c.h.b16 %v161
    %v661 = vunpack.c.l.b16 %v162
    %v662 = vunpack.c.h.b16 %v162
    %v663 = vunpack.c.l.b16 %v163
    %v664 = vunpack.c.h.b16 %v163
    %v665 = vunpack.c.l.b16 %v164
    %v666 = vunpack.c.h.b16 %v164
    %v667 = vunpack.c.l.b16 %v165
    %v668 = vunpack.c.h.b16 %v165
    %v669 = vunpack.c.l.b16 %v166
    %v670 = vunpack.c.h.b16 %v166
    %v671 = vunpack.c.l.b16 %v167
    %v672 = vunpack.c.h.b16 %v167
    %v673 = vunpack.c.l.b16 %v168
    %v674 = vunpack.c.h.b16 %v168
    %v675 = vunpack.c.l.b16 %v169
    %v676 = vunpack.c.h.b16 %v169
    %v677 = vunpack.c.l.b16 %v170
    %v678 = vunpack.c.h.b16 %v170
    %v679 = vunpack.c.l.b16 %v171
    %v680 = vunpack.c.h.b16 %v171
    %v681 = vunpack.c.l.b16 %v172
    %v682 = vunpack.c.h.b16 %v172
    %v683 = vunpack.c.l.b16 %v173
    %v684 = vunpack.c.h.b16 %v173
    %v685 = vunpack.c.l.b16 %v174
    %v686 = vunpack.c.h.b16 %v174
    %v687 = vunpack.c.l.b16 %v175
    %v688 = vunpack.c.h.b16 %v175
    %v689 = vunpack.c.l.b16 %v176
    %v690 = vunpack.c.h.b16 %v176
    %v691 = vunpack.c.l.b16 %v177
    %v692 = vunpack.c.h.b16 %v177
    %v693 = vunpack.c.l.b16 %v178
    %v694 = vunpack.c.h.b16 %v178
    %v695 = vunpack.c.l.b16 %v179
    %v696 = vunpack.c.h.b16 %v179
    %v697 = vunpack.c.l.b16 %v180
    %v698 = vunpack.c.h.b16 %v180
    %v699 = vunpack.c.l.b16 %v181
    %v700 = vunpack.c.h.b16 %v181
    %v701 = vunpack.c.l.b16 %v182
    %v702 = vunpack.c.h.b16 %v182
    %v703 = vunpack.c.l.b16 %v183
    %v704 = vunpack.c.h.b16 %v183
    %v705 = vunpack.c.l.b16 %v184
    %v706 = vunpack.c.h.b16 %v184
    %v707 = vunpack.c.l.b16 %v185
    %v708 = vunpack.c.h.b16 %v185
    %v709 = vunpack.c.l.b16 %v186
    %v710 = vunpack.c.h.b16 %v186
    %v711 = vunpack.c.l.b16 %v187
    %v712 = vunpack.c.h.b16 %v187
    %v713 = vunpack.c.l.b16 %v188
    %v714 = vunpack.c.h.b16 %v188
    %v715 = vunpack.c.l.b16 %v189
    %v716 = vunpack.c.h.b16 %v189
    %v717 = vunpack.c.l.b16 %v190
    %v718 = vunpack.c.h.b16 %v190
    %v719 = vunpack.c.l.b16 %v191
    %v720 = vunpack.c.h.b16 %v191
    %v721 = vunpack.c.l.b16 %v192
    %v722 = vunpack.c.h.b16 %v192
    %v723 = vunpack.c.l.b16 %v193
    %v724 = vunpack.c.h.b16 %v193
    %v725 = vunpack.c.l.b16 %v194
    %v726 = vunpack.c.h.b16 %v194
    %v727 = vunpack.c.l.b16 %v195
    %v728 = vunpack.c.h.b16 %v195
    %v729 = vunpack.c.l.b16 %v196
    %v730 = vunpack.c.h.b16 %v196
    %v731 = vunpack.c.l.b16 %v197
    %v732 = vunpack.c.h.b16 %v197
    %v733 = vunpack.c.l.b16 %v198
    %v734 = vunpack.c.h.b16 %v198
    %v735 = vunpack.c.l.b16 %v199
    %v736 = vunpack.c.h.b16 %v199
    %v737 = vunpack.c.l.b16 %v200
    %v738 = vunpack.c.h.b16 %v200
    %v739 = vunpack.c.l.b16 %v201
    %v740 = vunpack.c.h.b16 %v201
    %v741 = vunpack.c.l.b16 %v202
    %v742 = vunpack.c.h.b16 %v202
    %v743 = vunpack.c.l.b16 %v203
    %v744 = vunpack.c.h.b16 %v203
    %v745 = vunpack.c.l.b16 %v204
    %v746 = vunpack.c.h.b16 %v204
    %v747 = vunpack.c.l.b16 %v205
    %v748 = vunpack.c.h.b16 %v205
    %v749 = vunpack.c.l.b16 %v206
    %v750 = vunpack.c.h.b16 %v206
    %v751 = vunpack.c.l.b16 %v207
    %v752 = vunpack.c.h.b16 %v207
    %v753 = vunpack.c.l.b16 %v208
    %v754 = vunpack.c.h.b16 %v208
    %v755 = vunpack.c.l.b16 %v209
    %v756 = vunpack.c.h.b16 %v209
    %v757 = vunpack.c.l.b16 %v210
    %v758 = vunpack.c.h.b16 %v210
    %v759 = vunpack.c.l.b16 %v211
    %v760 = vunpack.c.h.b16 %v211
    %v761 = vunpack.c.l.b16 %v212
    %v762 = vunpack.c.h.b16 %v212
    %v763 = vunpack.c.l.b16 %v213
    %v764 = vunpack.c.h.b16 %v213
    %v765 = vunpack.c.l.b16 %v214
    %v766 = vunpack.c.h.b16 %v214
    %v767 = vunpack.c.l.b16 %v215
    %v768 = vunpack.c.h.b16 %v215
    %v769 = vunpack.c.l.b16 %v216
    %v770 = vunpack.c.h.b16 %v216
    %v771 = vunpack.c.l.b16 %v217
    %v772 = vunpack.c.h.b16 %v217
    %v773 = vunpack.c.l.b16 %v218
    %v774 = vunpack.c.h.b16 %v218
    %v775 = vunpack.c.l.b16 %v219
    %v776 = vunpack.c.h.b16 %v219
    %v777 = vunpack.c.l.b16 %v220
    %v778 = vunpack.c.h.b16 %v220
    %v779 = vunpack.c.l.b16 %v221
    %v780 = vunpack.c.h.b16 %v221
    %v781 = vunpack.c.l.b16 %v222
    %v782 = vunpack.c.h.b16 %v222
    %v783 = vunpack.c.l.b16 %v223
    %v784 = vunpack.c.h.b16 %v223
    %v785 = vunpack.c.l.b16 %v224
    %v786 = vunpack.c.h.b16 %v224
    %v787 = vunpack.c.l.b16 %v225
    %v788 = vunpack.c.h.b16 %v225
    %v789 = vunpack.c.l.b16 %v226
    %v790 = vunpack.c.h.b16 %v226
    %v791 = vunpack.c.l.b16 %v227
    %v792 = vunpack.c.h.b16 %v227
    %v793 = vunpack.c.l.b16 %v228
    %v794 = vunpack.c.h.b16 %v228
    %v795 = vunpack.c.l.b16 %v229
    %v796 = vunpack.c.h.b16 %v229
    %v797 = vunpack.c.l.b16 %v230
    %v798 = vunpack.c.h.b16 %v230
    %v799 = vunpack.c.l.b16 %v231
    %v800 = vunpack.c.h.b16 %v231
    %v801 = vunpack.c.l.b16 %v232
    %v802 = vunpack.c.h.b16 %v232
    %v803 = vunpack.c.l.b16 %v233
    %v804 = vunpack.c.h.b16 %v233
    %v805 = vunpack.c.l.b16 %v234
    %v806 = vunpack.c.h.b16 %v234
    %v807 = vunpack.c.l.b16 %v235
    %v808 = vunpack.c.h.b16 %v235
    %v809 = vunpack.c.l.b16 %v236
    %v810 = vunpack.c.h.b16 %v236
    %v811 = vunpack.c.l.b16 %v237
    %v812 = vunpack.c.h.b16 %v237
    %v813 = vunpack.c.l.b16 %v238
    %v814 = vunpack.c.h.b16 %v238
    %v815 = vunpack.c.l.b16 %v239
    %v816 = vunpack.c.h.b16 %v239
    %v817 = vunpack.c.l.b16 %v240
    %v818 = vunpack.c.h.b16 %v240
    %v819 = vunpack.c.l.b16 %v241
    %v820 = vunpack.c.h.b16 %v241
    %v821 = vunpack.c.l.b16 %v242
    %v822 = vunpack.c.h.b16 %v242
    %v823 = vunpack.c.l.b16 %v243
    %v824 = vunpack.c.h.b16 %v243
    %v825 = vunpack.c.l.b16 %v244
    %v826 = vunpack.c.h.b16 %v244
    %v827 = vunpack.c.l.b16 %v245
    %v828 = vunpack.c.h.b16 %v245
    %v829 = vunpack.c.l.b16 %v246
    %v830 = vunpack.c.h.b16 %v246
    %v831 = vunpack.c.l.b16 %v247
    %v832 = vunpack.c.h.b16 %v247
    %v833 = vunpack.c.l.b16 %v248
    %v834 = vunpack.c.h.b16 %v248
    %v835 = vunpack.c.l.b16 %v249
    %v836 = vunpack.c.h.b16 %v249
    %v837 = vunpack.c.l.b16 %v250
    %v838 = vunpack.c.h.b16 %v250
    %v839 = vunpack.c.l.b16 %v251
    %v840 = vunpack.c.h.b16 %v251
    %v841 = vunpack.c.l.b16 %v252
    %v842 = vunpack.c.h.b16 %v252
    %v843 = vunpack.c.l.b16 %v253
    %v844 = vunpack.c.h.b16 %v253
    %v845 = vunpack.c.l.b16 %v254
    %v846 = vunpack.c.h.b16 %v254
    %v847 = vunpack.c.l.b16 %v255
    %v848 = vunpack.c.h.b16 %v255
    %v849 = vunpack.c.l.b16 %v256
    %v850 = vunpack.c.h.b16 %v256
    %v851 = vunpack.c.l.b16 %v257
    %v852 = vunpack.c.h.b16 %v257
    %v853 = vunpack.c.l.b16 %v258
    %v854 = vunpack.c.h.b16 %v258
    %v855 = vunpack.c.l.b16 %v259
    %v856 = vunpack.c.h.b16 %v259
    %v857 = vunpack.c.l.b16 %v260
    %v858 = vunpack.c.h.b16 %v260
    %v859 = vunpack.c.l.b16 %v261
    %v860 = vunpack.c.h.b16 %v261
    %v861 = vunpack.c.l.b16 %v262
    %v862 = vunpack.c.h.b16 %v262
    %v863 = vunpack.c.l.b16 %v263
    %v864 = vunpack.c.h.b16 %v263
    %v865 = vunpack.c.l.b16 %v264
    %v866 = vunpack.c.h.b16 %v264
    %v867 = vunpack.c.l.b16 %v265
    %v868 = vunpack.c.h.b16 %v265
    %v869 = vunpack.c.l.b16 %v266
    %v870 = vunpack.c.h.b16 %v266
    %v871 = vunpack.c.l.b16 %v267
    %v872 = vunpack.c.h.b16 %v267
    %v873 = vunpack.c.l.b16 %v268
    %v874 = vunpack.c.h.b16 %v268
    %v875 = vunpack.c.l.b16 %v269
    %v876 = vunpack.c.h.b16 %v269
    %v877 = vunpack.c.l.b16 %v270
    %v878 = vunpack.c.h.b16 %v270
    %v879 = vunpack.c.l.b16 %v271
    %v880 = vunpack.c.h.b16 %v271
    %v881 = vunpack.c.l.b16 %v272
    %v882 = vunpack.c.h.b16 %v272
    %v883 = vpack.c.b16 %v495, %v491
    %v884 = vpack.c.b16 %v496, %v492
    %v885 = vpack.c.b16 %v497, %v493
    %v886 = vpack.c.b16 %v498, %v494
    %v887 = vpack.c.b16 %v503, %v499
    %v888 = vpack.c.b16 %v504, %v500
    %v889 = vpack.c.b16 %v505, %v501
    %v890 = vpack.c.b16 %v506, %v502
    %v891 = vpack.c.b16 %v511, %v507
    %v892 = vpack.c.b16 %v512, %v508
    %v893 = vpack.c.b16 %v513, %v509
    %v894 = vpack.c.b16 %v514, %v510
    %v895 = vpack.c.b16 %v519, %v515
    %v896 = vpack.c.b16 %v520, %v516
    %v897 = vpack.c.b16 %v521, %v517
    %v898 = vpack.c.b16 %v522, %v518
    %v899 = vpack.c.b16 %v527, %v523
    %v900 = vpack.c.b16 %v528, %v524
    %v901 = vpack.c.b16 %v529, %v525
    %v902 = vpack.c.b16 %v530, %v526
    %v903 = vpack.c.b16 %v535, %v531
    %v904 = vpack.c.b16 %v536, %v532
    %v905 = vpack.c.b16 %v537, %v533
    %v906 = vpack.c.b16 %v538, %v534
    %v907 = vpack.c.b16 %v543, %v539
    %v908 = vpack.c.b16 %v544, %v540
    %v909 = vpack.c.b16 %v545, %v541
    %v910 = vpack.c.b16 %v546, %v542
    %v911 = vpack.c.b16 %v551, %v547
    %v912 = vpack.c.b16 %v552, %v548
    %v913 = vpack.c.b16 %v553, %v549
    %v914 = vpack.c.b16 %v554, %v550
    %v915 = vpack.c.b16 %v559, %v555
    %v916 = vpack.c.b16 %v560, %v556
    %v917 = vpack.c.b16 %v561, %v557
    %v918 = vpack.c.b16 %v562, %v558
    %v919 = vpack.c.b16 %v567, %v563
    %v920 = vpack.c.b16 %v568, %v564
    %v921 = vpack.c.b16 %v569, %v565
    %v922 = vpack.c.b16 %v570, %v566
    %v923 = vpack.c.b16 %v575, %v571
    %v924 = vpack.c.b16 %v576, %v572
    %v925 = vpack.c.b16 %v577, %v573
    %v926 = vpack.c.b16 %v578, %v574
    %v927 = vpack.c.b16 %v583, %v579
    %v928 = vpack.c.b16 %v584, %v580
    %v929 = vpack.c.b16 %v585, %v581
    %v930 = vpack.c.b16 %v586, %v582
    %v931 = vpack.c.b16 %v591, %v587
    %v932 = vpack.c.b16 %v592, %v588
    %v933 = vpack.c.b16 %v593, %v589
    %v934 = vpack.c.b16 %v594, %v590
    %v935 = vpack.c.b16 %v599, %v595
    %v936 = vpack.c.b16 %v600, %v596
    %v937 = vpack.c.b16 %v601, %v597
    %v938 = vpack.c.b16 %v602, %v598
    %v939 = vpack.c.b16 %v607, %v603
    %v940 = vpack.c.b16 %v608, %v604
    %v941 = vpack.c.b16 %v609, %v605
    %v942 = vpack.c.b16 %v610, %v606
    %v943 = vpack.c.b16 %v615, %v611
    %v944 = vpack.c.b16 %v616, %v612
    %v945 = vpack.c.b16 %v617, %v613
    %v946 = vpack.c.b16 %v618, %v614
    %v947 = vpack.c.b16 %v623, %v619
    %v948 = vpack.c.b16 %v624, %v620
    %v949 = vpack.c.b16 %v625, %v621
    %v950 = vpack.c.b16 %v626, %v622
    %v951 = vpack.c.b16 %v631, %v627
    %v952 = vpack.c.b16 %v632, %v628
    %v953 = vpack.c.b16 %v633, %v629
    %v954 = vpack.c.b16 %v634, %v630
    %v955 = vpack.c.b16 %v639, %v635
    %v956 = vpack.c.b16 %v640, %v636
    %v957 = vpack.c.b16 %v641, %v637
    %v958 = vpack.c.b16 %v642, %v638
    %v959 = vpack.c.b16 %v647, %v643
    %v960 = vpack.c.b16 %v648, %v644
    %v961 = vpack.c.b16 %v649, %v645
    %v962 = vpack.c.b16 %v650, %v646
    %v963 = vpack.c.b16 %v655, %v651
    %v964 = vpack.c.b16 %v656, %v652
    %v965 = vpack.c.b16 %v657, %v653
    %v966 = vpack.c.b16 %v658, %v654
    %v967 = vpack.c.b16 %v663, %v659
    %v968 = vpack.c.b16 %v664, %v660
    %v969 = vpack.c.b16 %v665, %v661
    %v970 = vpack.c.b16 %v666, %v662
    %v971 = vpack.c.b16 %v671, %v667
    %v972 = vpack.c.b16 %v672, %v668
    %v973 = vpack.c.b16 %v673, %v669
    %v974 = vpack.c.b16 %v674, %v670
    %v975 = vpack.c.b16 %v679, %v675
    %v976 = vpack.c.b16 %v680, %v676
    %v977 = vpack.c.b16 %v681, %v677
    %v978 = vpack.c.b16 %v682, %v678
    %v979 = vpack.c.b16 %v687, %v683
    %v980 = vpack.c.b16 %v688, %v684
    %v981 = vpack.c.b16 %v689, %v685
    %v982 = vpack.c.b16 %v690, %v686
    %v983 = vpack.c.b16 %v695, %v691
    %v984 = vpack.c.b16 %v696, %v692
    %v985 = vpack.c.b16 %v697, %v693
    %v986 = vpack.c.b16 %v698, %v694
    %v987 = vpack.c.b16 %v703, %v699
    %v988 = vpack.c.b16 %v704, %v700
    %v989 = vpack.c.b16 %v705, %v701
    %v990 = vpack.c.b16 %v706, %v702
    %v991 = vpack.c.b16 %v711, %v707
    %v992 = vpack.c.b16 %v712, %v708
    %v993 = vpack.c.b16 %v713, %v709
    %v994 = vpack.c.b16 %v714, %v710
    %v995 = vpack.c.b16 %v719, %v715
    %v996 = vpack.c.b16 %v720, %v716
    %v997 = vpack.c.b16 %v721, %v717
    %v998 = vpack.c.b16 %v722, %v718
    %v999 = vpack.c.b16 %v727, %v723
    %v1000 = vpack.c.b16 %v728, %v724
    %v1001 = vpack.c.b16 %v729, %v725
    %v1002 = vpack.c.b16 %v730, %v726
    %v1003 = vpack.c.b16 %v735, %v731
    %v1004 = vpack.c.b16 %v736, %v732
    %v1005 = vpack.c.b16 %v737, %v733
    %v1006 = vpack.c.b16 %v738, %v734
    %v1007 = vpack.c.b16 %v743, %v739
    %v1008 = vpack.c.b16 %v744, %v740
    %v1009 = vpack.c.b16 %v745, %v741
    %v1010 = vpack.c.b16 %v746, %v742
    %v1011 = vpack.c.b16 %v751, %v747
    %v1012 = vpack.c.b16 %v752, %v748
    %v1013 = vpack.c.b16 %v753, %v749
    %v1014 = vpack.c.b16 %v754, %v750
    %v1015 = vpack.c.b16 %v759, %v755
    %v1016 = vpack.c.b16 %v760, %v756
    %v1017 = vpack.c.b16 %v761, %v757
    %v1018 = vpack.c.b16 %v762, %v758
    %v1019 = vpack.c.b16 %v767, %v763
    %v1020 = vpack.c.b16 %v768, %v764
    %v1021 = vpack.c.b16 %v769, %v765
    %v1022 = vpack.c.b16 %v770, %v766
    %v1023 = vpack.c.b16 %v775, %v771
    %v1024 = vpack.c.b16 %v776, %v772
    %v1025 = vpack.c.b16 %v777, %v773
    %v1026 = vpack.c.b16 %v778, %v774
    %v1027 = vpack.c.b16 %v783, %v779
    %v1028 = vpack.c.b16 %v784, %v780
    %v1029 = vpack.c.b16 %v785, %v781
    %v1030 = vpack.c.b16 %v786, %v782
    %v1031 = vpack.c.b16 %v791, %v787
    %v1032 = vpack.c.b16 %v792, %v788
    %v1033 = vpack.c.b16 %v793, %v789
    %v1034 = vpack.c.b16 %v794, %v790
    %v1035 = vpack.c.b16 %v799, %v795
    %v1036 = vpack.c.b16 %v800, %v796
    %v1037 = vpack.c.b16 %v801, %v797
    %v1038 = vpack.c.b16 %v802, %v798
    %v1039 = vpack.c.b16 %v807, %v803
    %v1040 = vpack.c.b16 %v808, %v804
    %v1041 = vpack.c.b16 %v809, %v805
    %v1042 = vpack.c.b16 %v810, %v806
    %v1043 = vpack.c.b16 %v815, %v811
    %v1044 = vpack.c.b16 %v816, %v812
    %v1045 = vpack.c.b16 %v817, %v813
    %v1046 = vpack.c.b16 %v818, %v814
    %v1047 = vpack.c.b16 %v823, %v819
    %v1048 = vpack.c.b16 %v824, %v820
    %v1049 = vpack.c.b16 %v825, %v821
    %v1050 = vpack.c.b16 %v826, %v822
    %v1051 = vpack.c.b16 %v831, %v827
    %v1052 = vpack.c.b16 %v832, %v828
    %v1053 = vpack.c.b16 %v833, %v829
    %v1054 = vpack.c.b16 %v834, %v830
    %v1055 = vpack.c.b16 %v839, %v835
    %v1056 = vpack.c.b16 %v840, %v836
    %v1057 = vpack.c.b16 %v841, %v837
    %v1058 = vpack.c.b16 %v842, %v838
    %v1059 = vpack.c.b16 %v847, %v843
    %v1060 = vpack.c.b16 %v848, %v844
    %v1061 = vpack.c.b16 %v849, %v845
    %v1062 = vpack.c.b16 %v850, %v846
    %v1063 = vpack.c.b16 %v855, %v851
    %v1064 = vpack.c.b16 %v856, %v852
    %v1065 = vpack.c.b16 %v857, %v853
    %v1066 = vpack.c.b16 %v858, %v854
    %v1067 = vpack.c.b16 %v863, %v859
    %v1068 = vpack.c.b16 %v864, %v860
    %v1069 = vpack.c.b16 %v865, %v861
    %v1070 = vpack.c.b16 %v866, %v862
    %v1071 = vpack.c.b16 %v871, %v867
    %v1072 = vpack.c.b16 %v872, %v868
    %v1073 = vpack.c.b16 %v873, %v869
    %v1074 = vpack.c.b16 %v874, %v870
    %v1075 = vpack.c.b16 %v879, %v875
    %v1076 = vpack.c.b16 %v880, %v876
    %v1077 = vpack.c.b16 %v881, %v877
    %v1078 = vpack.c.b16 %v882, %v878
    %vm1275 = vcmask 130048
    %v1277 = vsel %vm1275, %v76, 0
    %1279 = vmatprep.subr.bf16.mxu0 %v912
    %1280 = vmatpush1.bf16.msra.mxu0 %v911
    %1281 = vmatprep.subr.bf16.mxu0 %v908
    %1282 = vmatpush1.bf16.msra.mxu0 %v907
    %1283 = vmatprep.subr.bf16.mxu0 %v904
    %1284 = vmatpush1.bf16.msra.mxu0 %v903
    %1285 = vmatprep.subr.bf16.mxu0 %v900
    %1286 = vmatpush1.bf16.msra.mxu0 %v899
    %1287 = vmatprep.subr.bf16.mxu0 %v896
    %1288 = vmatpush1.bf16.msra.mxu0 %v895
    %1289 = vmatprep.subr.bf16.mxu0 %v892
    %1290 = vmatpush1.bf16.msra.mxu0 %v891
    %1291 = vmatprep.subr.bf16.mxu0 %v888
    %1292 = vmatpush1.bf16.msra.mxu0 %v887
    %1293 = vmatprep.subr.bf16.mxu0 %v884
    %1294 = vmatpush1.bf16.msra.mxu0 %v883
    %1295 = vmatprep.subr.bf16.mxu0 %v944
    %1296 = vmatpush2.bf16.msra.mxu0 %v943
    %1297 = vmatprep.subr.bf16.mxu0 %v940
    %1298 = vmatpush2.bf16.msra.mxu0 %v939
    %1299 = vmatprep.subr.bf16.mxu0 %v936
    %1300 = vmatpush2.bf16.msra.mxu0 %v935
    %1301 = vmatprep.subr.bf16.mxu0 %v932
    %1302 = vmatpush2.bf16.msra.mxu0 %v931
    %1303 = vmatprep.subr.bf16.mxu0 %v928
    %1304 = vmatpush2.bf16.msra.mxu0 %v927
    %1305 = vmatprep.subr.bf16.mxu0 %v924
    %1306 = vmatpush2.bf16.msra.mxu0 %v923
    %1307 = vmatprep.subr.bf16.mxu0 %v920
    %1308 = vmatpush2.bf16.msra.mxu0 %v919
    %1309 = vmatprep.subr.bf16.mxu0 %v916
    %1310 = vmatpush2.bf16.msra.mxu0 %v915
    %1311 = vmatprep.mubr.bf16.mxu0 %v71
    %1312 = vmatmul.mubr.bf16.gmra.mxu0 %v70
    %v1313 = vpop.f32.mrf.mxu0
    %v1314 = vadd.f32 %v278, %v1313
    %v1315 = vpop.f32.mrf.mxu0
    %v1316 = vadd.f32 %v282, %v1315
    %v1317 = vpop.f32.mrf.mxu0
    %v1318 = vpop.f32.mrf.mxu0
    %1319 = vdwg.mxu0
    %1320 = vmatprep.subr.bf16.mxu0 %v976
    %1321 = vmatpush1.bf16.msra.mxu0 %v975
    %1322 = vmatprep.subr.bf16.mxu0 %v972
    %1323 = vmatpush1.bf16.msra.mxu0 %v971
    %1324 = vmatprep.subr.bf16.mxu0 %v968
    %1325 = vmatpush1.bf16.msra.mxu0 %v967
    %1326 = vmatprep.subr.bf16.mxu0 %v964
    %1327 = vmatpush1.bf16.msra.mxu0 %v963
    %1328 = vmatprep.subr.bf16.mxu0 %v960
    %1329 = vmatpush1.bf16.msra.mxu0 %v959
    %1330 = vmatprep.subr.bf16.mxu0 %v956
    %1331 = vmatpush1.bf16.msra.mxu0 %v955
    %1332 = vmatprep.subr.bf16.mxu0 %v952
    %1333 = vmatpush1.bf16.msra.mxu0 %v951
    %1334 = vmatprep.subr.bf16.mxu0 %v948
    %1335 = vmatpush1.bf16.msra.mxu0 %v947
    %1336 = vmatprep.subr.bf16.mxu0 %v1008
    %1337 = vmatpush2.bf16.msra.mxu0 %v1007
    %1338 = vmatprep.subr.bf16.mxu0 %v1004
    %1339 = vmatpush2.bf16.msra.mxu0 %v1003
    %1340 = vmatprep.subr.bf16.mxu0 %v1000
    %1341 = vmatpush2.bf16.msra.mxu0 %v999
    %1342 = vmatprep.subr.bf16.mxu0 %v996
    %1343 = vmatpush2.bf16.msra.mxu0 %v995
    %1344 = vmatprep.subr.bf16.mxu0 %v992
    %1345 = vmatpush2.bf16.msra.mxu0 %v991
    %1346 = vmatprep.subr.bf16.mxu0 %v988
    %1347 = vmatpush2.bf16.msra.mxu0 %v987
    %1348 = vmatprep.subr.bf16.mxu0 %v984
    %1349 = vmatpush2.bf16.msra.mxu0 %v983
    %1350 = vmatprep.subr.bf16.mxu0 %v980
    %1351 = vmatpush2.bf16.msra.mxu0 %v979
    %1352 = vmatprep.mubr.bf16.mxu0 %v73
    %1353 = vmatmul.mubr.bf16.gmra.mxu0 %v72
    %v1354 = vpop.f32.mrf.mxu0
    %v1355 = vadd.f32 %v1314, %v1354
    %v1356 = vpop.f32.mrf.mxu0
    %v1357 = vadd.f32 %v1316, %v1356
    %v1358 = vpop.f32.mrf.mxu0
    %v1359 = vpop.f32.mrf.mxu0
    %1360 = vdwg.mxu0
    %1361 = vmatprep.subr.bf16.mxu0 %v1040
    %1362 = vmatpush1.bf16.msra.mxu0 %v1039
    %1363 = vmatprep.subr.bf16.mxu0 %v1036
    %1364 = vmatpush1.bf16.msra.mxu0 %v1035
    %1365 = vmatprep.subr.bf16.mxu0 %v1032
    %1366 = vmatpush1.bf16.msra.mxu0 %v1031
    %1367 = vmatprep.subr.bf16.mxu0 %v1028
    %1368 = vmatpush1.bf16.msra.mxu0 %v1027
    %1369 = vmatprep.subr.bf16.mxu0 %v1024
    %1370 = vmatpush1.bf16.msra.mxu0 %v1023
    %1371 = vmatprep.subr.bf16.mxu0 %v1020
    %1372 = vmatpush1.bf16.msra.mxu0 %v1019
    %1373 = vmatprep.subr.bf16.mxu0 %v1016
    %1374 = vmatpush1.bf16.msra.mxu0 %v1015
    %1375 = vmatprep.subr.bf16.mxu0 %v1012
    %1376 = vmatpush1.bf16.msra.mxu0 %v1011
    %1377 = vmatprep.subr.bf16.mxu0 %v1072
    %1378 = vmatpush2.bf16.msra.mxu0 %v1071
    %1379 = vmatprep.subr.bf16.mxu0 %v1068
    %1380 = vmatpush2.bf16.msra.mxu0 %v1067
    %1381 = vmatprep.subr.bf16.mxu0 %v1064
    %1382 = vmatpush2.bf16.msra.mxu0 %v1063
    %1383 = vmatprep.subr.bf16.mxu0 %v1060
    %1384 = vmatpush2.bf16.msra.mxu0 %v1059
    %1385 = vmatprep.subr.bf16.mxu0 %v1056
    %1386 = vmatpush2.bf16.msra.mxu0 %v1055
    %1387 = vmatprep.subr.bf16.mxu0 %v1052
    %1388 = vmatpush2.bf16.msra.mxu0 %v1051
    %1389 = vmatprep.subr.bf16.mxu0 %v1048
    %1390 = vmatpush2.bf16.msra.mxu0 %v1047
    %1391 = vmatprep.subr.bf16.mxu0 %v1044
    %1392 = vmatpush2.bf16.msra.mxu0 %v1043
    %1393 = vmatprep.mubr.bf16.mxu0 %v75
    %1394 = vmatmul.mubr.bf16.gmra.mxu0 %v74
    %v1395 = vpop.f32.mrf.mxu0
    %v1396 = vadd.f32 %v1355, %v1395
    %v1397 = vpop.f32.mrf.mxu0
    %v1398 = vadd.f32 %v1357, %v1397
    %v1399 = vpop.f32.mrf.mxu0
    %v1400 = vpop.f32.mrf.mxu0
    %1401 = vdwg.mxu0
    %1402 = vmatprep.subr.bf16.mxu0 0
    %1403 = vmatpush1.bf16.msra.mxu0 0
    %1404 = vmatprep.subr.bf16.mxu0 0
    %1405 = vmatpush1.bf16.msra.mxu0 0
    %1406 = vmatprep.subr.bf16.mxu0 0
    %1407 = vmatpush1.bf16.msra.mxu0 0
    %1408 = vmatprep.subr.bf16.mxu0 0
    %1409 = vmatpush1.bf16.msra.mxu0 0
    %1410 = vmatprep.subr.bf16.mxu0 0
    %1411 = vmatpush1.bf16.msra.mxu0 0
    %1412 = vmatprep.subr.bf16.mxu0 0
    %1413 = vmatpush1.bf16.msra.mxu0 0
    %1414 = vmatprep.subr.bf16.mxu0 0
    %1415 = vmatpush1.bf16.msra.mxu0 0
    %1416 = vmatprep.subr.bf16.mxu0 %v1076
    %1417 = vmatpush1.bf16.msra.mxu0 %v1075
    %1418 = vmatprep.subr.bf16.mxu0 0
    %1419 = vmatpush2.bf16.msra.mxu0 0
    %1420 = vmatprep.subr.bf16.mxu0 0
    %1421 = vmatpush2.bf16.msra.mxu0 0
    %1422 = vmatprep.subr.bf16.mxu0 0
    %1423 = vmatpush2.bf16.msra.mxu0 0
    %1424 = vmatprep.subr.bf16.mxu0 0
    %1425 = vmatpush2.bf16.msra.mxu0 0
    %1426 = vmatprep.subr.bf16.mxu0 0
    %1427 = vmatpush2.bf16.msra.mxu0 0
    %1428 = vmatprep.subr.bf16.mxu0 0
    %1429 = vmatpush2.bf16.msra.mxu0 0
    %1430 = vmatprep.subr.bf16.mxu0 0
    %1431 = vmatpush2.bf16.msra.mxu0 0
    %1432 = vmatprep.subr.bf16.mxu0 0
    %1433 = vmatpush2.bf16.msra.mxu0 0
    %1434 = vmatprep.mubr.bf16.mxu0 0
    %1435 = vmatmul.mubr.bf16.gmra.mxu0 %v1277
    %v1436 = vpop.f32.mrf.mxu0
    %v1437 = vadd.f32 %v1396, %v1436
    %v1438 = vpop.f32.mrf.mxu0
    %v1439 = vadd.f32 %v1398, %v1438
    %v1440 = vpop.f32.mrf.mxu0
    %v1441 = vpop.f32.mrf.mxu0
    %1442 = vdwg.mxu0
    %1443 = vmatprep.subr.bf16.mxu0 %v914
    %1444 = vmatpush1.bf16.msra.mxu0 %v913
    %1445 = vmatprep.subr.bf16.mxu0 %v910
    %1446 = vmatpush1.bf16.msra.mxu0 %v909
    %1447 = vmatprep.subr.bf16.mxu0 %v906
    %1448 = vmatpush1.bf16.msra.mxu0 %v905
    %1449 = vmatprep.subr.bf16.mxu0 %v902
    %1450 = vmatpush1.bf16.msra.mxu0 %v901
    %1451 = vmatprep.subr.bf16.mxu0 %v898
    %1452 = vmatpush1.bf16.msra.mxu0 %v897
    %1453 = vmatprep.subr.bf16.mxu0 %v894
    %1454 = vmatpush1.bf16.msra.mxu0 %v893
    %1455 = vmatprep.subr.bf16.mxu0 %v890
    %1456 = vmatpush1.bf16.msra.mxu0 %v889
    %1457 = vmatprep.subr.bf16.mxu0 %v886
    %1458 = vmatpush1.bf16.msra.mxu0 %v885
    %1459 = vmatprep.subr.bf16.mxu0 %v946
    %1460 = vmatpush2.bf16.msra.mxu0 %v945
    %1461 = vmatprep.subr.bf16.mxu0 %v942
    %1462 = vmatpush2.bf16.msra.mxu0 %v941
    %1463 = vmatprep.subr.bf16.mxu0 %v938
    %1464 = vmatpush2.bf16.msra.mxu0 %v937
    %1465 = vmatprep.subr.bf16.mxu0 %v934
    %1466 = vmatpush2.bf16.msra.mxu0 %v933
    %1467 = vmatprep.subr.bf16.mxu0 %v930
    %1468 = vmatpush2.bf16.msra.mxu0 %v929
    %1469 = vmatprep.subr.bf16.mxu0 %v926
    %1470 = vmatpush2.bf16.msra.mxu0 %v925
    %1471 = vmatprep.subr.bf16.mxu0 %v922
    %1472 = vmatpush2.bf16.msra.mxu0 %v921
    %1473 = vmatprep.subr.bf16.mxu0 %v918
    %1474 = vmatpush2.bf16.msra.mxu0 %v917
    %1475 = vmatprep.mubr.bf16.mxu0 %v71
    %1476 = vmatmul.mubr.bf16.gmra.mxu0 %v70
    %v1477 = vpop.f32.mrf.mxu0
    %v1478 = vadd.f32 %v286, %v1477
    %v1479 = vpop.f32.mrf.mxu0
    %v1480 = vadd.f32 %v290, %v1479
    %v1481 = vpop.f32.mrf.mxu0
    %v1482 = vpop.f32.mrf.mxu0
    %1483 = vdwg.mxu0
    %1484 = vmatprep.subr.bf16.mxu0 %v978
    %1485 = vmatpush1.bf16.msra.mxu0 %v977
    %1486 = vmatprep.subr.bf16.mxu0 %v974
    %1487 = vmatpush1.bf16.msra.mxu0 %v973
    %1488 = vmatprep.subr.bf16.mxu0 %v970
    %1489 = vmatpush1.bf16.msra.mxu0 %v969
    %1490 = vmatprep.subr.bf16.mxu0 %v966
    %1491 = vmatpush1.bf16.msra.mxu0 %v965
    %1492 = vmatprep.subr.bf16.mxu0 %v962
    %1493 = vmatpush1.bf16.msra.mxu0 %v961
    %1494 = vmatprep.subr.bf16.mxu0 %v958
    %1495 = vmatpush1.bf16.msra.mxu0 %v957
    %1496 = vmatprep.subr.bf16.mxu0 %v954
    %1497 = vmatpush1.bf16.msra.mxu0 %v953
    %1498 = vmatprep.subr.bf16.mxu0 %v950
    %1499 = vmatpush1.bf16.msra.mxu0 %v949
    %1500 = vmatprep.subr.bf16.mxu0 %v1010
    %1501 = vmatpush2.bf16.msra.mxu0 %v1009
    %1502 = vmatprep.subr.bf16.mxu0 %v1006
    %1503 = vmatpush2.bf16.msra.mxu0 %v1005
    %1504 = vmatprep.subr.bf16.mxu0 %v1002
    %1505 = vmatpush2.bf16.msra.mxu0 %v1001
    %1506 = vmatprep.subr.bf16.mxu0 %v998
    %1507 = vmatpush2.bf16.msra.mxu0 %v997
    %1508 = vmatprep.subr.bf16.mxu0 %v994
    %1509 = vmatpush2.bf16.msra.mxu0 %v993
    %1510 = vmatprep.subr.bf16.mxu0 %v990
    %1511 = vmatpush2.bf16.msra.mxu0 %v989
    %1512 = vmatprep.subr.bf16.mxu0 %v986
    %1513 = vmatpush2.bf16.msra.mxu0 %v985
    %1514 = vmatprep.subr.bf16.mxu0 %v982
    %1515 = vmatpush2.bf16.msra.mxu0 %v981
    %1516 = vmatprep.mubr.bf16.mxu0 %v73
    %1517 = vmatmul.mubr.bf16.gmra.mxu0 %v72
    %v1518 = vpop.f32.mrf.mxu0
    %v1519 = vadd.f32 %v1478, %v1518
    %v1520 = vpop.f32.mrf.mxu0
    %v1521 = vadd.f32 %v1480, %v1520
    %v1522 = vpop.f32.mrf.mxu0
    %v1523 = vpop.f32.mrf.mxu0
    %1524 = vdwg.mxu0
    %1525 = vmatprep.subr.bf16.mxu0 %v1042
    %1526 = vmatpush1.bf16.msra.mxu0 %v1041
    %1527 = vmatprep.subr.bf16.mxu0 %v1038
    %1528 = vmatpush1.bf16.msra.mxu0 %v1037
    %1529 = vmatprep.subr.bf16.mxu0 %v1034
    %1530 = vmatpush1.bf16.msra.mxu0 %v1033
    %1531 = vmatprep.subr.bf16.mxu0 %v1030
    %1532 = vmatpush1.bf16.msra.mxu0 %v1029
    %1533 = vmatprep.subr.bf16.mxu0 %v1026
    %1534 = vmatpush1.bf16.msra.mxu0 %v1025
    %1535 = vmatprep.subr.bf16.mxu0 %v1022
    %1536 = vmatpush1.bf16.msra.mxu0 %v1021
    %1537 = vmatprep.subr.bf16.mxu0 %v1018
    %1538 = vmatpush1.bf16.msra.mxu0 %v1017
    %1539 = vmatprep.subr.bf16.mxu0 %v1014
    %1540 = vmatpush1.bf16.msra.mxu0 %v1013
    %1541 = vmatprep.subr.bf16.mxu0 %v1074
    %1542 = vmatpush2.bf16.msra.mxu0 %v1073
    %1543 = vmatprep.subr.bf16.mxu0 %v1070
    %1544 = vmatpush2.bf16.msra.mxu0 %v1069
    %1545 = vmatprep.subr.bf16.mxu0 %v1066
    %1546 = vmatpush2.bf16.msra.mxu0 %v1065
    %1547 = vmatprep.subr.bf16.mxu0 %v1062
    %1548 = vmatpush2.bf16.msra.mxu0 %v1061
    %1549 = vmatprep.subr.bf16.mxu0 %v1058
    %1550 = vmatpush2.bf16.msra.mxu0 %v1057
    %1551 = vmatprep.subr.bf16.mxu0 %v1054
    %1552 = vmatpush2.bf16.msra.mxu0 %v1053
    %1553 = vmatprep.subr.bf16.mxu0 %v1050
    %1554 = vmatpush2.bf16.msra.mxu0 %v1049
    %1555 = vmatprep.subr.bf16.mxu0 %v1046
    %1556 = vmatpush2.bf16.msra.mxu0 %v1045
    %1557 = vmatprep.mubr.bf16.mxu0 %v75
    %1558 = vmatmul.mubr.bf16.gmra.mxu0 %v74
    %v1559 = vpop.f32.mrf.mxu0
    %v1560 = vadd.f32 %v1519, %v1559
    %v1561 = vpop.f32.mrf.mxu0
    %v1562 = vadd.f32 %v1521, %v1561
    %v1563 = vpop.f32.mrf.mxu0
    %v1564 = vpop.f32.mrf.mxu0
    %1565 = vdwg.mxu0
    %1566 = vmatprep.subr.bf16.mxu0 0
    %1567 = vmatpush1.bf16.msra.mxu0 0
    %1568 = vmatprep.subr.bf16.mxu0 0
    %1569 = vmatpush1.bf16.msra.mxu0 0
    %1570 = vmatprep.subr.bf16.mxu0 0
    %1571 = vmatpush1.bf16.msra.mxu0 0
    %1572 = vmatprep.subr.bf16.mxu0 0
    %1573 = vmatpush1.bf16.msra.mxu0 0
    %1574 = vmatprep.subr.bf16.mxu0 0
    %1575 = vmatpush1.bf16.msra.mxu0 0
    %1576 = vmatprep.subr.bf16.mxu0 0
    %1577 = vmatpush1.bf16.msra.mxu0 0
    %1578 = vmatprep.subr.bf16.mxu0 0
    %1579 = vmatpush1.bf16.msra.mxu0 0
    %1580 = vmatprep.subr.bf16.mxu0 %v1078
    %1581 = vmatpush1.bf16.msra.mxu0 %v1077
    %1582 = vmatprep.subr.bf16.mxu0 0
    %1583 = vmatpush2.bf16.msra.mxu0 0
    %1584 = vmatprep.subr.bf16.mxu0 0
    %1585 = vmatpush2.bf16.msra.mxu0 0
    %1586 = vmatprep.subr.bf16.mxu0 0
    %1587 = vmatpush2.bf16.msra.mxu0 0
    %1588 = vmatprep.subr.bf16.mxu0 0
    %1589 = vmatpush2.bf16.msra.mxu0 0
    %1590 = vmatprep.subr.bf16.mxu0 0
    %1591 = vmatpush2.bf16.msra.mxu0 0
    %1592 = vmatprep.subr.bf16.mxu0 0
    %1593 = vmatpush2.bf16.msra.mxu0 0
    %1594 = vmatprep.subr.bf16.mxu0 0
    %1595 = vmatpush2.bf16.msra.mxu0 0
    %1596 = vmatprep.subr.bf16.mxu0 0
    %1597 = vmatpush2.bf16.msra.mxu0 0
    %1598 = vmatprep.mubr.bf16.mxu0 0
    %1599 = vmatmul.mubr.bf16.gmra.mxu0 %v1277
    %v1600 = vpop.f32.mrf.mxu0
    %v1601 = vadd.f32 %v1560, %v1600
    %v1602 = vpop.f32.mrf.mxu0
    %v1603 = vadd.f32 %v1562, %v1602
    %v1604 = vpop.f32.mrf.mxu0
    %v1605 = vpop.f32.mrf.mxu0
    %1606 = vdwg.mxu0
    %v1607 = vmax.f32 %v1437, 0.0
    %v1608 = vmax.f32 %v1439, 0.0
    %v1609 = vmax.f32 %v1601, 0.0
    %v1610 = vmax.f32 %v1603, 0.0
    %v1611 = vpack.c.bf16 %v1607, %v1607
    %v1612 = vpack.c.bf16 %v1608, %v1608
    %v1613 = vpack.c.bf16 %v1609, %v1609
    %v1614 = vpack.c.bf16 %v1610, %v1610
    %v1615 = vld [vmem:[%s4] sm:$0xf]
    %v1616 = vld [vmem:[%s4 + $0x4] sm:$0xf]
    %v1617 = vld [vmem:[%s4 + $0x8] sm:$0xf]
    %v1618 = vld [vmem:[%s4 + $0xc] sm:$0xf]
    %v1619 = vld [vmem:[%s4 + $0x10] sm:$0xf]
    %v1620 = vld [vmem:[%s4 + $0x14] sm:$0xf]
    %v1621 = vld [vmem:[%s4 + $0x18] sm:$0xf]
    %v1622 = vld [vmem:[%s4 + $0x1c] sm:$0xf]
    %v1623 = vld [vmem:[%s4 + $0x20] sm:$0xf]
    %v1624 = vld [vmem:[%s4 + $0x24] sm:$0xf]
    %v1625 = vld [vmem:[%s4 + $0x28] sm:$0xf]
    %v1626 = vld [vmem:[%s4 + $0x2c] sm:$0xf]
    %v1627 = vld [vmem:[%s4 + $0x30] sm:$0xf]
    %v1628 = vld [vmem:[%s4 + $0x34] sm:$0xf]
    %v1629 = vld [vmem:[%s4 + $0x38] sm:$0xf]
    %v1630 = vld [vmem:[%s4 + $0x3c] sm:$0xf]
    %v1631 = vld [vmem:[%s4 + $0x40] sm:$0xf]
    %v1632 = vld [vmem:[%s4 + $0x44] sm:$0xf]
    %v1633 = vld [vmem:[%s4 + $0x48] sm:$0xf]
    %v1634 = vld [vmem:[%s4 + $0x4c] sm:$0xf]
    %v1635 = vld [vmem:[%s4 + $0x50] sm:$0xf]
    %v1636 = vld [vmem:[%s4 + $0x54] sm:$0xf]
    %v1637 = vld [vmem:[%s4 + $0x58] sm:$0xf]
    %v1638 = vld [vmem:[%s4 + $0x5c] sm:$0xf]
    %v1639 = vld [vmem:[%s4 + $0x60] sm:$0xf]
    %v1640 = vld [vmem:[%s4 + $0x64] sm:$0xf]
    %v1641 = vld [vmem:[%s4 + $0x68] sm:$0xf]
    %v1642 = vld [vmem:[%s4 + $0x6c] sm:$0xf]
    %v1643 = vld [vmem:[%s4 + $0x70] sm:$0xf]
    %v1644 = vld [vmem:[%s4 + $0x74] sm:$0xf]
    %v1645 = vld [vmem:[%s4 + $0x78] sm:$0xf]
    %v1646 = vld [vmem:[%s4 + $0x7c] sm:$0xf]
    %v1647 = vld [vmem:[%s4 + $0x80] sm:$0xf]
    %v1648 = vld [vmem:[%s4 + $0x84] sm:$0xf]
    %v1649 = vld [vmem:[%s4 + $0x88] sm:$0xf]
    %v1650 = vld [vmem:[%s4 + $0x8c] sm:$0xf]
    %v1651 = vld [vmem:[%s4 + $0x90] sm:$0xf]
    %v1652 = vld [vmem:[%s4 + $0x94] sm:$0xf]
    %v1653 = vld [vmem:[%s4 + $0x98] sm:$0xf]
    %v1654 = vld [vmem:[%s4 + $0x9c] sm:$0xf]
    %v1655 = vld [vmem:[%s4 + $0xa0] sm:$0xf]
    %v1656 = vld [vmem:[%s4 + $0xa4] sm:$0xf]
    %v1657 = vld [vmem:[%s4 + $0xa8] sm:$0xf]
    %v1658 = vld [vmem:[%s4 + $0xac] sm:$0xf]
    %v1659 = vld [vmem:[%s4 + $0xb0] sm:$0xf]
    %v1660 = vld [vmem:[%s4 + $0xb4] sm:$0xf]
    %v1661 = vld [vmem:[%s4 + $0xb8] sm:$0xf]
    %v1662 = vld [vmem:[%s4 + $0xbc] sm:$0xf]
    %v1663 = vld [vmem:[%s4 + $0xc0] sm:$0xf]
    %v1664 = vld [vmem:[%s4 + $0xc4] sm:$0xf]
    %v1665 = vld [vmem:[%s4 + $0xc8] sm:$0xf]
    %v1666 = vld [vmem:[%s4 + $0xcc] sm:$0xf]
    %v1667 = vld [vmem:[%s4 + $0xd0] sm:$0xf]
    %v1668 = vld [vmem:[%s4 + $0xd4] sm:$0xf]
    %v1669 = vld [vmem:[%s4 + $0xd8] sm:$0xf]
    %v1670 = vld [vmem:[%s4 + $0xdc] sm:$0xf]
    %v1671 = vld [vmem:[%s4 + $0xe0] sm:$0xf]
    %v1672 = vld [vmem:[%s4 + $0xe4] sm:$0xf]
    %v1673 = vld [vmem:[%s4 + $0xe8] sm:$0xf]
    %v1674 = vld [vmem:[%s4 + $0xec] sm:$0xf]
    %v1675 = vld [vmem:[%s4 + $0xf0] sm:$0xf]
    %v1676 = vld [vmem:[%s4 + $0xf4] sm:$0xf]
    %v1677 = vld [vmem:[%s4 + $0xf8] sm:$0xf]
    %v1678 = vld [vmem:[%s4 + $0xfc] sm:$0xf]
    %v1679 = vld [vmem:[%s5] sm:$0x1]
    %v1681 = vlaneseq
    %v1682 = vshrl.u32 %v1681, 7
    %v1683 = vsub.s32 0, %v1682
    %v1684 = vrot.slane %v1679, %v1683
    %v1750 = vunpack.c.l.b16 %v1615
    %v1751 = vunpack.c.l.b16 %v1616
    %v1752 = vunpack.c.l.b16 %v1617
    %v1753 = vunpack.c.l.b16 %v1618
    %v1754 = vunpack.c.l.b16 %v1619
    %v1755 = vunpack.c.l.b16 %v1620
    %v1756 = vunpack.c.l.b16 %v1621
    %v1757 = vunpack.c.l.b16 %v1622
    %v1758 = vunpack.c.l.b16 %v1623
    %v1759 = vunpack.c.l.b16 %v1624
    %v1760 = vunpack.c.l.b16 %v1625
    %v1761 = vunpack.c.l.b16 %v1626
    %v1762 = vunpack.c.l.b16 %v1627
    %v1763 = vunpack.c.l.b16 %v1628
    %v1764 = vunpack.c.l.b16 %v1629
    %v1765 = vunpack.c.l.b16 %v1630
    %v1766 = vunpack.c.l.b16 %v1631
    %v1767 = vunpack.c.l.b16 %v1632
    %v1768 = vunpack.c.l.b16 %v1633
    %v1769 = vunpack.c.l.b16 %v1634
    %v1770 = vunpack.c.l.b16 %v1635
    %v1771 = vunpack.c.l.b16 %v1636
    %v1772 = vunpack.c.l.b16 %v1637
    %v1773 = vunpack.c.l.b16 %v1638
    %v1774 = vunpack.c.l.b16 %v1639
    %v1775 = vunpack.c.l.b16 %v1640
    %v1776 = vunpack.c.l.b16 %v1641
    %v1777 = vunpack.c.l.b16 %v1642
    %v1778 = vunpack.c.l.b16 %v1643
    %v1779 = vunpack.c.l.b16 %v1644
    %v1780 = vunpack.c.l.b16 %v1645
    %v1781 = vunpack.c.l.b16 %v1646
    %v1782 = vunpack.c.l.b16 %v1647
    %v1783 = vunpack.c.l.b16 %v1648
    %v1784 = vunpack.c.l.b16 %v1649
    %v1785 = vunpack.c.l.b16 %v1650
    %v1786 = vunpack.c.l.b16 %v1651
    %v1787 = vunpack.c.l.b16 %v1652
    %v1788 = vunpack.c.l.b16 %v1653
    %v1789 = vunpack.c.l.b16 %v1654
    %v1790 = vunpack.c.l.b16 %v1655
    %v1791 = vunpack.c.l.b16 %v1656
    %v1792 = vunpack.c.l.b16 %v1657
    %v1793 = vunpack.c.l.b16 %v1658
    %v1794 = vunpack.c.l.b16 %v1659
    %v1795 = vunpack.c.l.b16 %v1660
    %v1796 = vunpack.c.l.b16 %v1661
    %v1797 = vunpack.c.l.b16 %v1662
    %v1798 = vunpack.c.l.b16 %v1663
    %v1799 = vunpack.c.l.b16 %v1664
    %v1800 = vunpack.c.l.b16 %v1665
    %v1801 = vunpack.c.l.b16 %v1666
    %v1802 = vunpack.c.l.b16 %v1667
    %v1803 = vunpack.c.l.b16 %v1668
    %v1804 = vunpack.c.l.b16 %v1669
    %v1805 = vunpack.c.l.b16 %v1670
    %v1806 = vunpack.c.l.b16 %v1671
    %v1807 = vunpack.c.l.b16 %v1672
    %v1808 = vunpack.c.l.b16 %v1673
    %v1809 = vunpack.c.l.b16 %v1674
    %v1810 = vunpack.c.l.b16 %v1675
    %v1811 = vunpack.c.l.b16 %v1676
    %v1812 = vunpack.c.l.b16 %v1677
    %v1813 = vunpack.c.l.b16 %v1678
    %v1814 = vpack.c.b16 %v1751, %v1750
    %v1815 = vpack.c.b16 %v1753, %v1752
    %v1816 = vpack.c.b16 %v1755, %v1754
    %v1817 = vpack.c.b16 %v1757, %v1756
    %v1818 = vpack.c.b16 %v1759, %v1758
    %v1819 = vpack.c.b16 %v1761, %v1760
    %v1820 = vpack.c.b16 %v1763, %v1762
    %v1821 = vpack.c.b16 %v1765, %v1764
    %v1822 = vpack.c.b16 %v1767, %v1766
    %v1823 = vpack.c.b16 %v1769, %v1768
    %v1824 = vpack.c.b16 %v1771, %v1770
    %v1825 = vpack.c.b16 %v1773, %v1772
    %v1826 = vpack.c.b16 %v1775, %v1774
    %v1827 = vpack.c.b16 %v1777, %v1776
    %v1828 = vpack.c.b16 %v1779, %v1778
    %v1829 = vpack.c.b16 %v1781, %v1780
    %v1830 = vpack.c.b16 %v1783, %v1782
    %v1831 = vpack.c.b16 %v1785, %v1784
    %v1832 = vpack.c.b16 %v1787, %v1786
    %v1833 = vpack.c.b16 %v1789, %v1788
    %v1834 = vpack.c.b16 %v1791, %v1790
    %v1835 = vpack.c.b16 %v1793, %v1792
    %v1836 = vpack.c.b16 %v1795, %v1794
    %v1837 = vpack.c.b16 %v1797, %v1796
    %v1838 = vpack.c.b16 %v1799, %v1798
    %v1839 = vpack.c.b16 %v1801, %v1800
    %v1840 = vpack.c.b16 %v1803, %v1802
    %v1841 = vpack.c.b16 %v1805, %v1804
    %v1842 = vpack.c.b16 %v1807, %v1806
    %v1843 = vpack.c.b16 %v1809, %v1808
    %v1844 = vpack.c.b16 %v1811, %v1810
    %v1845 = vpack.c.b16 %v1813, %v1812
    %1878 = vmatprep.subr.bf16.mxu0 0
    %1879 = vmatpush1.bf16.msra.mxu0 %v1821
    %1880 = vmatprep.subr.bf16.mxu0 0
    %1881 = vmatpush1.bf16.msra.mxu0 %v1820
    %1882 = vmatprep.subr.bf16.mxu0 0
    %1883 = vmatpush1.bf16.msra.mxu0 %v1819
    %1884 = vmatprep.subr.bf16.mxu0 0
    %1885 = vmatpush1.bf16.msra.mxu0 %v1818
    %1886 = vmatprep.subr.bf16.mxu0 0
    %1887 = vmatpush1.bf16.msra.mxu0 %v1817
    %1888 = vmatprep.subr.bf16.mxu0 0
    %1889 = vmatpush1.bf16.msra.mxu0 %v1816
    %1890 = vmatprep.subr.bf16.mxu0 0
    %1891 = vmatpush1.bf16.msra.mxu0 %v1815
    %1892 = vmatprep.subr.bf16.mxu0 0
    %1893 = vmatpush1.bf16.msra.mxu0 %v1814
    %1894 = vmatprep.subr.bf16.mxu0 0
    %1895 = vmatpush2.bf16.msra.mxu0 %v1829
    %1896 = vmatprep.subr.bf16.mxu0 0
    %1897 = vmatpush2.bf16.msra.mxu0 %v1828
    %1898 = vmatprep.subr.bf16.mxu0 0
    %1899 = vmatpush2.bf16.msra.mxu0 %v1827
    %1900 = vmatprep.subr.bf16.mxu0 0
    %1901 = vmatpush2.bf16.msra.mxu0 %v1826
    %1902 = vmatprep.subr.bf16.mxu0 0
    %1903 = vmatpush2.bf16.msra.mxu0 %v1825
    %1904 = vmatprep.subr.bf16.mxu0 0
    %1905 = vmatpush2.bf16.msra.mxu0 %v1824
    %1906 = vmatprep.subr.bf16.mxu0 0
    %1907 = vmatpush2.bf16.msra.mxu0 %v1823
    %1908 = vmatprep.subr.bf16.mxu0 0
    %1909 = vmatpush2.bf16.msra.mxu0 %v1822
    %1910 = vmatprep.mubr.bf16.mxu0 %v1612
    %1911 = vmatmul.mubr.bf16.gmra.mxu0 %v1611
    %v1912 = vpop.f32.mrf.mxu0
    %v1913 = vadd.f32 %v1684, %v1912
    %v1914 = vpop.f32.mrf.mxu0
    %v1915 = vpop.f32.mrf.mxu0
    %v1916 = vpop.f32.mrf.mxu0
    %1917 = vdwg.mxu0
    %1918 = vmatprep.subr.bf16.mxu0 0
    %1919 = vmatpush1.bf16.msra.mxu0 %v1837
    %1920 = vmatprep.subr.bf16.mxu0 0
    %1921 = vmatpush1.bf16.msra.mxu0 %v1836
    %1922 = vmatprep.subr.bf16.mxu0 0
    %1923 = vmatpush1.bf16.msra.mxu0 %v1835
    %1924 = vmatprep.subr.bf16.mxu0 0
    %1925 = vmatpush1.bf16.msra.mxu0 %v1834
    %1926 = vmatprep.subr.bf16.mxu0 0
    %1927 = vmatpush1.bf16.msra.mxu0 %v1833
    %1928 = vmatprep.subr.bf16.mxu0 0
    %1929 = vmatpush1.bf16.msra.mxu0 %v1832
    %1930 = vmatprep.subr.bf16.mxu0 0
    %1931 = vmatpush1.bf16.msra.mxu0 %v1831
    %1932 = vmatprep.subr.bf16.mxu0 0
    %1933 = vmatpush1.bf16.msra.mxu0 %v1830
    %1934 = vmatprep.subr.bf16.mxu0 0
    %1935 = vmatpush2.bf16.msra.mxu0 %v1845
    %1936 = vmatprep.subr.bf16.mxu0 0
    %1937 = vmatpush2.bf16.msra.mxu0 %v1844
    %1938 = vmatprep.subr.bf16.mxu0 0
    %1939 = vmatpush2.bf16.msra.mxu0 %v1843
    %1940 = vmatprep.subr.bf16.mxu0 0
    %1941 = vmatpush2.bf16.msra.mxu0 %v1842
    %1942 = vmatprep.subr.bf16.mxu0 0
    %1943 = vmatpush2.bf16.msra.mxu0 %v1841
    %1944 = vmatprep.subr.bf16.mxu0 0
    %1945 = vmatpush2.bf16.msra.mxu0 %v1840
    %1946 = vmatprep.subr.bf16.mxu0 0
    %1947 = vmatpush2.bf16.msra.mxu0 %v1839
    %1948 = vmatprep.subr.bf16.mxu0 0
    %1949 = vmatpush2.bf16.msra.mxu0 %v1838
    %1950 = vmatprep.mubr.bf16.mxu0 %v1614
    %1951 = vmatmul.mubr.bf16.gmra.mxu0 %v1613
    %v1952 = vpop.f32.mrf.mxu0
    %v1953 = vadd.f32 %v1913, %v1952
    %v1954 = vpop.f32.mrf.mxu0
    %v1955 = vpop.f32.mrf.mxu0
    %v1956 = vpop.f32.mrf.mxu0
    %1957 = vdwg.mxu0
    %v1958 = vmax.f32 %v1953, 0.0
    %v1959 = vpack.c.bf16 %v1958, %v1958
    %v1960 = vld [vmem:[%s6] sm:$0xf]
    %v1961 = vld [vmem:[%s6 + $0x4] sm:$0xf]
    %v1962 = vld [vmem:[%s6 + $0x8] sm:$0xf]
    %v1963 = vld [vmem:[%s6 + $0xc] sm:$0xf]
    %v1964 = vld [vmem:[%s6 + $0x10] sm:$0xf]
    %v1965 = vld [vmem:[%s6 + $0x14] sm:$0xf]
    %v1966 = vld [vmem:[%s6 + $0x18] sm:$0xf]
    %v1967 = vld [vmem:[%s6 + $0x1c] sm:$0xf]
    %v1968 = vld [vmem:[%s6 + $0x20] sm:$0xf]
    %v1969 = vld [vmem:[%s6 + $0x24] sm:$0xf]
    %v1970 = vld [vmem:[%s6 + $0x28] sm:$0xf]
    %v1971 = vld [vmem:[%s6 + $0x2c] sm:$0xf]
    %v1972 = vld [vmem:[%s6 + $0x30] sm:$0xf]
    %v1973 = vld [vmem:[%s6 + $0x34] sm:$0xf]
    %v1974 = vld [vmem:[%s6 + $0x38] sm:$0xf]
    %v1975 = vld [vmem:[%s6 + $0x3c] sm:$0xf]
    %v1976 = vld [vmem:[%s7] sm:$0x1]
    %v1978 = vlaneseq
    %v1979 = vshrl.u32 %v1978, 7
    %v1980 = vsub.s32 0, %v1979
    %v1981 = vrot.slane %v1976, %v1980
    %v1999 = vunpack.c.l.b16 %v1960
    %v2000 = vunpack.c.l.b16 %v1961
    %v2001 = vunpack.c.l.b16 %v1962
    %v2002 = vunpack.c.l.b16 %v1963
    %v2003 = vunpack.c.l.b16 %v1964
    %v2004 = vunpack.c.l.b16 %v1965
    %v2005 = vunpack.c.l.b16 %v1966
    %v2006 = vunpack.c.l.b16 %v1967
    %v2007 = vunpack.c.l.b16 %v1968
    %v2008 = vunpack.c.l.b16 %v1969
    %v2009 = vunpack.c.l.b16 %v1970
    %v2010 = vunpack.c.l.b16 %v1971
    %v2011 = vunpack.c.l.b16 %v1972
    %v2012 = vunpack.c.l.b16 %v1973
    %v2013 = vunpack.c.l.b16 %v1974
    %v2014 = vunpack.c.l.b16 %v1975
    %v2015 = vpack.c.b16 %v2000, %v1999
    %v2016 = vpack.c.b16 %v2002, %v2001
    %v2017 = vpack.c.b16 %v2004, %v2003
    %v2018 = vpack.c.b16 %v2006, %v2005
    %v2019 = vpack.c.b16 %v2008, %v2007
    %v2020 = vpack.c.b16 %v2010, %v2009
    %v2021 = vpack.c.b16 %v2012, %v2011
    %v2022 = vpack.c.b16 %v2014, %v2013
    %2031 = vmatprep.subr.bf16.mxu0 0
    %2032 = vmatpush1.bf16.msra.mxu0 %v2022
    %2033 = vmatprep.subr.bf16.mxu0 0
    %2034 = vmatpush1.bf16.msra.mxu0 %v2021
    %2035 = vmatprep.subr.bf16.mxu0 0
    %2036 = vmatpush1.bf16.msra.mxu0 %v2020
    %2037 = vmatprep.subr.bf16.mxu0 0
    %2038 = vmatpush1.bf16.msra.mxu0 %v2019
    %2039 = vmatprep.subr.bf16.mxu0 0
    %2040 = vmatpush1.bf16.msra.mxu0 %v2018
    %2041 = vmatprep.subr.bf16.mxu0 0
    %2042 = vmatpush1.bf16.msra.mxu0 %v2017
    %2043 = vmatprep.subr.bf16.mxu0 0
    %2044 = vmatpush1.bf16.msra.mxu0 %v2016
    %2045 = vmatprep.subr.bf16.mxu0 0
    %2046 = vmatpush1.bf16.msra.mxu0 %v2015
    %2047 = vmatprep.subr.bf16.mxu0 0
    %2048 = vmatpush2.bf16.msra.mxu0 0
    %2049 = vmatprep.subr.bf16.mxu0 0
    %2050 = vmatpush2.bf16.msra.mxu0 0
    %2051 = vmatprep.subr.bf16.mxu0 0
    %2052 = vmatpush2.bf16.msra.mxu0 0
    %2053 = vmatprep.subr.bf16.mxu0 0
    %2054 = vmatpush2.bf16.msra.mxu0 0
    %2055 = vmatprep.subr.bf16.mxu0 0
    %2056 = vmatpush2.bf16.msra.mxu0 0
    %2057 = vmatprep.subr.bf16.mxu0 0
    %2058 = vmatpush2.bf16.msra.mxu0 0
    %2059 = vmatprep.subr.bf16.mxu0 0
    %2060 = vmatpush2.bf16.msra.mxu0 0
    %2061 = vmatprep.subr.bf16.mxu0 0
    %2062 = vmatpush2.bf16.msra.mxu0 0
    %2063 = vmatprep.mubr.bf16.mxu0 0
    %2064 = vmatmul.mubr.bf16.gmra.mxu0 %v1959
    %v2065 = vpop.f32.mrf.mxu0
    %v2066 = vadd.f32 %v1981, %v2065
    %v2067 = vpop.f32.mrf.mxu0
    %v2068 = vpop.f32.mrf.mxu0
    %v2069 = vpop.f32.mrf.mxu0
    %2070 = vdwg.mxu0
    %v2071 = vmax.f32 %v2066, 0.0
    %v2072 = vpack.c.bf16 %v2071, %v2071
    %v2073 = vld [vmem:[%s8] sm:$0xf]
    %v2074 = vld [vmem:[%s8 + $0x4] sm:$0xf]
    %v2075 = vld [vmem:[%s8 + $0x8] sm:$0xf]
    %v2076 = vld [vmem:[%s8 + $0xc] sm:$0xf]
    %v2077 = vld [vmem:[%s8 + $0x10] sm:$0xf]
    %v2078 = vld [vmem:[%s8 + $0x14] sm:$0xf]
    %v2079 = vld [vmem:[%s8 + $0x18] sm:$0xf]
    %v2080 = vld [vmem:[%s8 + $0x1c] sm:$0xf]
    %v2081 = vld [vmem:[%s9] sm:$0x1]
    %v2083 = vlaneseq
    %v2084 = vshrl.u32 %v2083, 7
    %v2085 = vsub.s32 0, %v2084
    %v2086 = vrot.slane %v2081, %v2085
    %v2096 = vunpack.c.l.b16 %v2073
    %v2097 = vunpack.c.l.b16 %v2074
    %v2098 = vunpack.c.l.b16 %v2075
    %v2099 = vunpack.c.l.b16 %v2076
    %v2100 = vunpack.c.l.b16 %v2077
    %v2101 = vunpack.c.l.b16 %v2078
    %v2102 = vunpack.c.l.b16 %v2079
    %v2103 = vunpack.c.l.b16 %v2080
    %v2104 = vpack.c.b16 %v2097, %v2096
    %v2105 = vpack.c.b16 %v2099, %v2098
    %v2106 = vpack.c.b16 %v2101, %v2100
    %v2107 = vpack.c.b16 %v2103, %v2102
    %vm2112 = vcmask 523264
    %v2114 = vsel %vm2112, %v2072, 0
    %2116 = vmatprep.subr.bf16.mxu0 0
    %2117 = vmatpush1.bf16.msra.mxu0 0
    %2118 = vmatprep.subr.bf16.mxu0 0
    %2119 = vmatpush1.bf16.msra.mxu0 0
    %2120 = vmatprep.subr.bf16.mxu0 0
    %2121 = vmatpush1.bf16.msra.mxu0 0
    %2122 = vmatprep.subr.bf16.mxu0 0
    %2123 = vmatpush1.bf16.msra.mxu0 0
    %2124 = vmatprep.subr.bf16.mxu0 0
    %2125 = vmatpush1.bf16.msra.mxu0 %v2107
    %2126 = vmatprep.subr.bf16.mxu0 0
    %2127 = vmatpush1.bf16.msra.mxu0 %v2106
    %2128 = vmatprep.subr.bf16.mxu0 0
    %2129 = vmatpush1.bf16.msra.mxu0 %v2105
    %2130 = vmatprep.subr.bf16.mxu0 0
    %2131 = vmatpush1.bf16.msra.mxu0 %v2104
    %2132 = vmatprep.subr.bf16.mxu0 0
    %2133 = vmatpush2.bf16.msra.mxu0 0
    %2134 = vmatprep.subr.bf16.mxu0 0
    %2135 = vmatpush2.bf16.msra.mxu0 0
    %2136 = vmatprep.subr.bf16.mxu0 0
    %2137 = vmatpush2.bf16.msra.mxu0 0
    %2138 = vmatprep.subr.bf16.mxu0 0
    %2139 = vmatpush2.bf16.msra.mxu0 0
    %2140 = vmatprep.subr.bf16.mxu0 0
    %2141 = vmatpush2.bf16.msra.mxu0 0
    %2142 = vmatprep.subr.bf16.mxu0 0
    %2143 = vmatpush2.bf16.msra.mxu0 0
    %2144 = vmatprep.subr.bf16.mxu0 0
    %2145 = vmatpush2.bf16.msra.mxu0 0
    %2146 = vmatprep.subr.bf16.mxu0 0
    %2147 = vmatpush2.bf16.msra.mxu0 0
    %2148 = vmatprep.mubr.bf16.mxu0 0
    %2149 = vmatmul.mubr.bf16.gmra.mxu0 %v2114
    %v2150 = vpop.f32.mrf.mxu0
    %v2151 = vadd.f32 %v2086, %v2150
    %v2152 = vpop.f32.mrf.mxu0
    %v2153 = vpop.f32.mrf.mxu0
    %v2154 = vpop.f32.mrf.mxu0
    %2155 = vdwg.mxu0
    %v2156 = vld [vmem:[%s1] sm:$0xff]
    %v2157 = vmul.f32 %v2151, 0.5
    %v2158 = vmul.f32 %v2157, 1.442695
    %v2159 = vpow.pop %v2158
    %2161 = vrot.lane.b32.xlu0 %v2159, 126
    %v2162 = vpop.permute.xlu0 %2161
    %v2164 = vmul.f32 %v2156, %v2162
    %v2165 = vadd.f32 %v2151, %v2164
    %v2166 = vld [vmem:[%s10] sm:$0x1]
    %v2167 = vunpack.c.l.bf16 %v2166
    %2169 = vset.pattern.permute.xlu0 0
    %2170 = vperm.xlu0 %2169, %v2165
    %v2171 = vpop.permute.xlu0 %2170
    %v2173 = vlaneseq
    %v2174 = vshrl.u32 %v2173, 7
    %v2175 = vsub.s32 0, %v2174
    %v2176 = vrot.slane %v2167, %v2175
    %v2177 = vmul.f32 %v2171, %v2176
    %2178 = vset.pattern.permute.xlu0 1
    %2179 = vperm.xlu0 %2178, %v2165
    %v2180 = vpop.permute.xlu0 %2179
    %v2182 = vlaneseq
    %v2183 = vshrl.u32 %v2182, 7
    %v2184 = vsub.s32 1, %v2183
    %v2185 = vrot.slane %v2167, %v2184
    %v2186 = vmul.f32 %v2180, %v2185
    %v2187 = vadd.f32 %v2177, %v2186
    %v2188 = vld [vmem:[%s11] sm:$0x1]
    %v2190 = vlaneseq
    %v2191 = vshrl.u32 %v2190, 7
    %v2192 = vsub.s32 0, %v2191
    %v2193 = vrot.slane %v2188, %v2192
    %v2195 = vadd.f32 %v2187, %v2193
    %v2196 = vmax.f32 %v2195, 0.0
    %v2197 = vpack.c.bf16 %v2196, %v2196
    %v2198 = vld [vmem:[%s12] sm:$0xf]
    %v2199 = vld [vmem:[%s12 + $0x4] sm:$0xf]
    %v2200 = vld [vmem:[%s12 + $0x8] sm:$0xf]
    %v2201 = vld [vmem:[%s12 + $0xc] sm:$0xf]
    %v2202 = vld [vmem:[%s12 + $0x10] sm:$0xf]
    %v2203 = vld [vmem:[%s12 + $0x14] sm:$0xf]
    %v2204 = vld [vmem:[%s12 + $0x18] sm:$0xf]
    %v2205 = vld [vmem:[%s12 + $0x1c] sm:$0xf]
    %v2206 = vld [vmem:[%s13] sm:$0x1]
    %v2208 = vlaneseq
    %v2209 = vshrl.u32 %v2208, 7
    %v2210 = vsub.s32 0, %v2209
    %v2211 = vrot.slane %v2206, %v2210
    %v2221 = vunpack.c.l.b16 %v2198
    %v2222 = vunpack.c.l.b16 %v2199
    %v2223 = vunpack.c.l.b16 %v2200
    %v2224 = vunpack.c.l.b16 %v2201
    %v2225 = vunpack.c.l.b16 %v2202
    %v2226 = vunpack.c.l.b16 %v2203
    %v2227 = vunpack.c.l.b16 %v2204
    %v2228 = vunpack.c.l.b16 %v2205
    %v2229 = vpack.c.b16 %v2222, %v2221
    %v2230 = vpack.c.b16 %v2224, %v2223
    %v2231 = vpack.c.b16 %v2226, %v2225
    %v2232 = vpack.c.b16 %v2228, %v2227
    %v2238 = vsel %vm2112, %v2197, 0
    %2240 = vmatprep.subr.bf16.mxu0 0
    %2241 = vmatpush1.bf16.msra.mxu0 0
    %2242 = vmatprep.subr.bf16.mxu0 0
    %2243 = vmatpush1.bf16.msra.mxu0 0
    %2244 = vmatprep.subr.bf16.mxu0 0
    %2245 = vmatpush1.bf16.msra.mxu0 0
    %2246 = vmatprep.subr.bf16.mxu0 0
    %2247 = vmatpush1.bf16.msra.mxu0 0
    %2248 = vmatprep.subr.bf16.mxu0 0
    %2249 = vmatpush1.bf16.msra.mxu0 %v2232
    %2250 = vmatprep.subr.bf16.mxu0 0
    %2251 = vmatpush1.bf16.msra.mxu0 %v2231
    %2252 = vmatprep.subr.bf16.mxu0 0
    %2253 = vmatpush1.bf16.msra.mxu0 %v2230
    %2254 = vmatprep.subr.bf16.mxu0 0
    %2255 = vmatpush1.bf16.msra.mxu0 %v2229
    %2256 = vmatprep.subr.bf16.mxu0 0
    %2257 = vmatpush2.bf16.msra.mxu0 0
    %2258 = vmatprep.subr.bf16.mxu0 0
    %2259 = vmatpush2.bf16.msra.mxu0 0
    %2260 = vmatprep.subr.bf16.mxu0 0
    %2261 = vmatpush2.bf16.msra.mxu0 0
    %2262 = vmatprep.subr.bf16.mxu0 0
    %2263 = vmatpush2.bf16.msra.mxu0 0
    %2264 = vmatprep.subr.bf16.mxu0 0
    %2265 = vmatpush2.bf16.msra.mxu0 0
    %2266 = vmatprep.subr.bf16.mxu0 0
    %2267 = vmatpush2.bf16.msra.mxu0 0
    %2268 = vmatprep.subr.bf16.mxu0 0
    %2269 = vmatpush2.bf16.msra.mxu0 0
    %2270 = vmatprep.subr.bf16.mxu0 0
    %2271 = vmatpush2.bf16.msra.mxu0 0
    %2272 = vmatprep.mubr.bf16.mxu0 0
    %2273 = vmatmul.mubr.bf16.gmra.mxu0 %v2238
    %v2274 = vpop.f32.mrf.mxu0
    %v2275 = vadd.f32 %v2211, %v2274
    %v2276 = vpop.f32.mrf.mxu0
    %v2277 = vpop.f32.mrf.mxu0
    %v2278 = vpop.f32.mrf.mxu0
    %2279 = vdwg.mxu0
    %v2280 = vmax.f32 %v2275, 0.0
    %v2281 = vpack.c.bf16 %v2280, %v2280
    %v2282 = vld [vmem:[%s14] sm:$0xff]
    %v2283 = vld [vmem:[%s14 + $0x8] sm:$0xff]
    %v2284 = vld [vmem:[%s14 + $0x10] sm:$0xff]
    %v2285 = vld [vmem:[%s14 + $0x18] sm:$0xff]
    %v2286 = vld [vmem:[%s14 + $0x20] sm:$0xff]
    %v2287 = vld [vmem:[%s14 + $0x28] sm:$0xff]
    %v2288 = vld [vmem:[%s14 + $0x30] sm:$0xff]
    %v2289 = vld [vmem:[%s14 + $0x38] sm:$0xff]
    %v2290 = vld [vmem:[%s14 + $0x40] sm:$0xff]
    %v2291 = vld [vmem:[%s14 + $0x48] sm:$0xff]
    %v2292 = vld [vmem:[%s14 + $0x50] sm:$0xff]
    %v2293 = vld [vmem:[%s14 + $0x58] sm:$0xff]
    %v2294 = vld [vmem:[%s14 + $0x60] sm:$0xff]
    %v2295 = vld [vmem:[%s14 + $0x68] sm:$0xff]
    %v2296 = vld [vmem:[%s14 + $0x70] sm:$0xff]
    %v2297 = vld [vmem:[%s14 + $0x78] sm:$0xff]
    %v2298 = vld [vmem:[%s14 + $0x80] sm:$0xff]
    %v2299 = vld [vmem:[%s14 + $0x88] sm:$0xff]
    %v2300 = vld [vmem:[%s14 + $0x90] sm:$0xff]
    %v2301 = vld [vmem:[%s14 + $0x98] sm:$0xff]
    %v2302 = vld [vmem:[%s14 + $0xa0] sm:$0xff]
    %v2303 = vld [vmem:[%s14 + $0xa8] sm:$0xff]
    %v2304 = vld [vmem:[%s14 + $0xb0] sm:$0xff]
    %v2305 = vld [vmem:[%s14 + $0xb8] sm:$0xff]
    %v2306 = vld [vmem:[%s14 + $0xc0] sm:$0xff]
    %v2307 = vld [vmem:[%s14 + $0xc8] sm:$0xff]
    %v2308 = vld [vmem:[%s14 + $0xd0] sm:$0xff]
    %v2309 = vld [vmem:[%s14 + $0xd8] sm:$0xff]
    %v2310 = vld [vmem:[%s14 + $0xe0] sm:$0xff]
    %v2311 = vld [vmem:[%s14 + $0xe8] sm:$0xff]
    %v2312 = vld [vmem:[%s14 + $0xf0] sm:$0xff]
    %v2313 = vld [vmem:[%s14 + $0xf8] sm:$0xff]
    %v2314 = vld [vmem:[%s15] sm:$0xf]
    %v2316 = vlaneseq
    %v2317 = vshrl.u32 %v2316, 7
    %v2318 = vsub.s32 0, %v2317
    %v2319 = vrot.slane %v2314, %v2318
    %v2320 = vlaneseq
    %v2321 = vshrl.u32 %v2320, 7
    %v2322 = vsub.s32 1, %v2321
    %v2323 = vrot.slane %v2314, %v2322
    %v2324 = vlaneseq
    %v2325 = vshrl.u32 %v2324, 7
    %v2326 = vsub.s32 2, %v2325
    %v2327 = vrot.slane %v2314, %v2326
    %v2328 = vlaneseq
    %v2329 = vshrl.u32 %v2328, 7
    %v2330 = vsub.s32 3, %v2329
    %v2331 = vrot.slane %v2314, %v2330
    %v2368 = vunpack.c.l.b16 %v2282
    %v2369 = vunpack.c.h.b16 %v2282
    %v2370 = vunpack.c.l.b16 %v2283
    %v2371 = vunpack.c.h.b16 %v2283
    %v2372 = vunpack.c.l.b16 %v2284
    %v2373 = vunpack.c.h.b16 %v2284
    %v2374 = vunpack.c.l.b16 %v2285
    %v2375 = vunpack.c.h.b16 %v2285
    %v2376 = vunpack.c.l.b16 %v2286
    %v2377 = vunpack.c.h.b16 %v2286
    %v2378 = vunpack.c.l.b16 %v2287
    %v2379 = vunpack.c.h.b16 %v2287
    %v2380 = vunpack.c.l.b16 %v2288
    %v2381 = vunpack.c.h.b16 %v2288
    %v2382 = vunpack.c.l.b16 %v2289
    %v2383 = vunpack.c.h.b16 %v2289
    %v2384 = vunpack.c.l.b16 %v2290
    %v2385 = vunpack.c.h.b16 %v2290
    %v2386 = vunpack.c.l.b16 %v2291
    %v2387 = vunpack.c.h.b16 %v2291
    %v2388 = vunpack.c.l.b16 %v2292
    %v2389 = vunpack.c.h.b16 %v2292
    %v2390 = vunpack.c.l.b16 %v2293
    %v2391 = vunpack.c.h.b16 %v2293
    %v2392 = vunpack.c.l.b16 %v2294
    %v2393 = vunpack.c.h.b16 %v2294
    %v2394 = vunpack.c.l.b16 %v2295
    %v2395 = vunpack.c.h.b16 %v2295
    %v2396 = vunpack.c.l.b16 %v2296
    %v2397 = vunpack.c.h.b16 %v2296
    %v2398 = vunpack.c.l.b16 %v2297
    %v2399 = vunpack.c.h.b16 %v2297
    %v2400 = vunpack.c.l.b16 %v2298
    %v2401 = vunpack.c.h.b16 %v2298
    %v2402 = vunpack.c.l.b16 %v2299
    %v2403 = vunpack.c.h.b16 %v2299
    %v2404 = vunpack.c.l.b16 %v2300
    %v2405 = vunpack.c.h.b16 %v2300
    %v2406 = vunpack.c.l.b16 %v2301
    %v2407 = vunpack.c.h.b16 %v2301
    %v2408 = vunpack.c.l.b16 %v2302
    %v2409 = vunpack.c.h.b16 %v2302
    %v2410 = vunpack.c.l.b16 %v2303
    %v2411 = vunpack.c.h.b16 %v2303
    %v2412 = vunpack.c.l.b16 %v2304
    %v2413 = vunpack.c.h.b16 %v2304
    %v2414 = vunpack.c.l.b16 %v2305
    %v2415 = vunpack.c.h.b16 %v2305
    %v2416 = vunpack.c.l.b16 %v2306
    %v2417 = vunpack.c.h.b16 %v2306
    %v2418 = vunpack.c.l.b16 %v2307
    %v2419 = vunpack.c.h.b16 %v2307
    %v2420 = vunpack.c.l.b16 %v2308
    %v2421 = vunpack.c.h.b16 %v2308
    %v2422 = vunpack.c.l.b16 %v2309
    %v2423 = vunpack.c.h.b16 %v2309
    %v2424 = vunpack.c.l.b16 %v2310
    %v2425 = vunpack.c.h.b16 %v2310
    %v2426 = vunpack.c.l.b16 %v2311
    %v2427 = vunpack.c.h.b16 %v2311
    %v2428 = vunpack.c.l.b16 %v2312
    %v2429 = vunpack.c.h.b16 %v2312
    %v2430 = vunpack.c.l.b16 %v2313
    %v2431 = vunpack.c.h.b16 %v2313
    %v2432 = vpack.c.b16 %v2372, %v2368
    %v2433 = vpack.c.b16 %v2373, %v2369
    %v2434 = vpack.c.b16 %v2374, %v2370
    %v2435 = vpack.c.b16 %v2375, %v2371
    %v2436 = vpack.c.b16 %v2380, %v2376
    %v2437 = vpack.c.b16 %v2381, %v2377
    %v2438 = vpack.c.b16 %v2382, %v2378
    %v2439 = vpack.c.b16 %v2383, %v2379
    %v2440 = vpack.c.b16 %v2388, %v2384
    %v2441 = vpack.c.b16 %v2389, %v2385
    %v2442 = vpack.c.b16 %v2390, %v2386
    %v2443 = vpack.c.b16 %v2391, %v2387
    %v2444 = vpack.c.b16 %v2396, %v2392
    %v2445 = vpack.c.b16 %v2397, %v2393
    %v2446 = vpack.c.b16 %v2398, %v2394
    %v2447 = vpack.c.b16 %v2399, %v2395
    %v2448 = vpack.c.b16 %v2404, %v2400
    %v2449 = vpack.c.b16 %v2405, %v2401
    %v2450 = vpack.c.b16 %v2406, %v2402
    %v2451 = vpack.c.b16 %v2407, %v2403
    %v2452 = vpack.c.b16 %v2412, %v2408
    %v2453 = vpack.c.b16 %v2413, %v2409
    %v2454 = vpack.c.b16 %v2414, %v2410
    %v2455 = vpack.c.b16 %v2415, %v2411
    %v2456 = vpack.c.b16 %v2420, %v2416
    %v2457 = vpack.c.b16 %v2421, %v2417
    %v2458 = vpack.c.b16 %v2422, %v2418
    %v2459 = vpack.c.b16 %v2423, %v2419
    %v2460 = vpack.c.b16 %v2428, %v2424
    %v2461 = vpack.c.b16 %v2429, %v2425
    %v2462 = vpack.c.b16 %v2430, %v2426
    %v2463 = vpack.c.b16 %v2431, %v2427
    %2496 = vmatprep.subr.bf16.mxu0 %v2461
    %2497 = vmatpush1.bf16.msra.mxu0 %v2460
    %2498 = vmatprep.subr.bf16.mxu0 %v2457
    %2499 = vmatpush1.bf16.msra.mxu0 %v2456
    %2500 = vmatprep.subr.bf16.mxu0 %v2453
    %2501 = vmatpush1.bf16.msra.mxu0 %v2452
    %2502 = vmatprep.subr.bf16.mxu0 %v2449
    %2503 = vmatpush1.bf16.msra.mxu0 %v2448
    %2504 = vmatprep.subr.bf16.mxu0 %v2445
    %2505 = vmatpush1.bf16.msra.mxu0 %v2444
    %2506 = vmatprep.subr.bf16.mxu0 %v2441
    %2507 = vmatpush1.bf16.msra.mxu0 %v2440
    %2508 = vmatprep.subr.bf16.mxu0 %v2437
    %2509 = vmatpush1.bf16.msra.mxu0 %v2436
    %2510 = vmatprep.subr.bf16.mxu0 %v2433
    %2511 = vmatpush1.bf16.msra.mxu0 %v2432
    %2512 = vmatprep.subr.bf16.mxu0 0
    %2513 = vmatpush2.bf16.msra.mxu0 0
    %2514 = vmatprep.subr.bf16.mxu0 0
    %2515 = vmatpush2.bf16.msra.mxu0 0
    %2516 = vmatprep.subr.bf16.mxu0 0
    %2517 = vmatpush2.bf16.msra.mxu0 0
    %2518 = vmatprep.subr.bf16.mxu0 0
    %2519 = vmatpush2.bf16.msra.mxu0 0
    %2520 = vmatprep.subr.bf16.mxu0 0
    %2521 = vmatpush2.bf16.msra.mxu0 0
    %2522 = vmatprep.subr.bf16.mxu0 0
    %2523 = vmatpush2.bf16.msra.mxu0 0
    %2524 = vmatprep.subr.bf16.mxu0 0
    %2525 = vmatpush2.bf16.msra.mxu0 0
    %2526 = vmatprep.subr.bf16.mxu0 0
    %2527 = vmatpush2.bf16.msra.mxu0 0
    %2528 = vmatprep.mubr.bf16.mxu0 0
    %2529 = vmatmul.mubr.bf16.gmra.mxu0 %v2281
    %v2530 = vpop.f32.mrf.mxu0
    %v2531 = vadd.f32 %v2319, %v2530
    %v2532 = vpop.f32.mrf.mxu0
    %v2533 = vadd.f32 %v2323, %v2532
    %v2534 = vpop.f32.mrf.mxu0
    %v2535 = vpop.f32.mrf.mxu0
    %2536 = vdwg.mxu0
    %2537 = vmatprep.subr.bf16.mxu0 %v2463
    %2538 = vmatpush1.bf16.msra.mxu0 %v2462
    %2539 = vmatprep.subr.bf16.mxu0 %v2459
    %2540 = vmatpush1.bf16.msra.mxu0 %v2458
    %2541 = vmatprep.subr.bf16.mxu0 %v2455
    %2542 = vmatpush1.bf16.msra.mxu0 %v2454
    %2543 = vmatprep.subr.bf16.mxu0 %v2451
    %2544 = vmatpush1.bf16.msra.mxu0 %v2450
    %2545 = vmatprep.subr.bf16.mxu0 %v2447
    %2546 = vmatpush1.bf16.msra.mxu0 %v2446
    %2547 = vmatprep.subr.bf16.mxu0 %v2443
    %2548 = vmatpush1.bf16.msra.mxu0 %v2442
    %2549 = vmatprep.subr.bf16.mxu0 %v2439
    %2550 = vmatpush1.bf16.msra.mxu0 %v2438
    %2551 = vmatprep.subr.bf16.mxu0 %v2435
    %2552 = vmatpush1.bf16.msra.mxu0 %v2434
    %2553 = vmatprep.subr.bf16.mxu0 0
    %2554 = vmatpush2.bf16.msra.mxu0 0
    %2555 = vmatprep.subr.bf16.mxu0 0
    %2556 = vmatpush2.bf16.msra.mxu0 0
    %2557 = vmatprep.subr.bf16.mxu0 0
    %2558 = vmatpush2.bf16.msra.mxu0 0
    %2559 = vmatprep.subr.bf16.mxu0 0
    %2560 = vmatpush2.bf16.msra.mxu0 0
    %2561 = vmatprep.subr.bf16.mxu0 0
    %2562 = vmatpush2.bf16.msra.mxu0 0
    %2563 = vmatprep.subr.bf16.mxu0 0
    %2564 = vmatpush2.bf16.msra.mxu0 0
    %2565 = vmatprep.subr.bf16.mxu0 0
    %2566 = vmatpush2.bf16.msra.mxu0 0
    %2567 = vmatprep.subr.bf16.mxu0 0
    %2568 = vmatpush2.bf16.msra.mxu0 0
    %2569 = vmatprep.mubr.bf16.mxu0 0
    %2570 = vmatmul.mubr.bf16.gmra.mxu0 %v2281
    %v2571 = vpop.f32.mrf.mxu0
    %v2572 = vadd.f32 %v2327, %v2571
    %v2573 = vpop.f32.mrf.mxu0
    %v2574 = vadd.f32 %v2331, %v2573
    %v2575 = vpop.f32.mrf.mxu0
    %v2576 = vpop.f32.mrf.mxu0
    %2577 = vdwg.mxu0
    %v2578 = vmax.f32 %v2531, 0.0
    %v2579 = vmax.f32 %v2533, 0.0
    %v2580 = vmax.f32 %v2572, 0.0
    %v2581 = vmax.f32 %v2574, 0.0
    %v2582 = vpack.c.bf16 %v2578, %v2578
    %v2583 = vpack.c.bf16 %v2579, %v2579
    %v2584 = vpack.c.bf16 %v2580, %v2580
    %v2585 = vpack.c.bf16 %v2581, %v2581
    %v2586 = vld [vmem:[%s16] sm:$0xff]
    %v2587 = vld [vmem:[%s16 + $0x8] sm:$0xff]
    %v2588 = vld [vmem:[%s16 + $0x10] sm:$0xff]
    %v2589 = vld [vmem:[%s16 + $0x18] sm:$0xf]
    %v2590 = vld [vmem:[%s16 + $0x1c] sm:$0xff]
    %v2591 = vld [vmem:[%s16 + $0x24] sm:$0xff]
    %v2592 = vld [vmem:[%s16 + $0x2c] sm:$0xff]
    %v2593 = vld [vmem:[%s16 + $0x34] sm:$0xf]
    %v2594 = vld [vmem:[%s16 + $0x38] sm:$0xff]
    %v2595 = vld [vmem:[%s16 + $0x40] sm:$0xff]
    %v2596 = vld [vmem:[%s16 + $0x48] sm:$0xff]
    %v2597 = vld [vmem:[%s16 + $0x50] sm:$0xf]
    %v2598 = vld [vmem:[%s16 + $0x54] sm:$0xff]
    %v2599 = vld [vmem:[%s16 + $0x5c] sm:$0xff]
    %v2600 = vld [vmem:[%s16 + $0x64] sm:$0xff]
    %v2601 = vld [vmem:[%s16 + $0x6c] sm:$0xf]
    %v2602 = vld [vmem:[%s16 + $0x70] sm:$0xff]
    %v2603 = vld [vmem:[%s16 + $0x78] sm:$0xff]
    %v2604 = vld [vmem:[%s16 + $0x80] sm:$0xff]
    %v2605 = vld [vmem:[%s16 + $0x88] sm:$0xf]
    %v2606 = vld [vmem:[%s16 + $0x8c] sm:$0xff]
    %v2607 = vld [vmem:[%s16 + $0x94] sm:$0xff]
    %v2608 = vld [vmem:[%s16 + $0x9c] sm:$0xff]
    %v2609 = vld [vmem:[%s16 + $0xa4] sm:$0xf]
    %v2610 = vld [vmem:[%s16 + $0xa8] sm:$0xff]
    %v2611 = vld [vmem:[%s16 + $0xb0] sm:$0xff]
    %v2612 = vld [vmem:[%s16 + $0xb8] sm:$0xff]
    %v2613 = vld [vmem:[%s16 + $0xc0] sm:$0xf]
    %v2614 = vld [vmem:[%s16 + $0xc4] sm:$0xff]
    %v2615 = vld [vmem:[%s16 + $0xcc] sm:$0xff]
    %v2616 = vld [vmem:[%s16 + $0xd4] sm:$0xff]
    %v2617 = vld [vmem:[%s16 + $0xdc] sm:$0xf]
    %v2618 = vld [vmem:[%s16 + $0xe0] sm:$0xff]
    %v2619 = vld [vmem:[%s16 + $0xe8] sm:$0xff]
    %v2620 = vld [vmem:[%s16 + $0xf0] sm:$0xff]
    %v2621 = vld [vmem:[%s16 + $0xf8] sm:$0xf]
    %v2622 = vld [vmem:[%s16 + $0xfc] sm:$0xff]
    %v2623 = vld [vmem:[%s16 + $0x104] sm:$0xff]
    %v2624 = vld [vmem:[%s16 + $0x10c] sm:$0xff]
    %v2625 = vld [vmem:[%s16 + $0x114] sm:$0xf]
    %v2626 = vld [vmem:[%s16 + $0x118] sm:$0xff]
    %v2627 = vld [vmem:[%s16 + $0x120] sm:$0xff]
    %v2628 = vld [vmem:[%s16 + $0x128] sm:$0xff]
    %v2629 = vld [vmem:[%s16 + $0x130] sm:$0xf]
    %v2630 = vld [vmem:[%s16 + $0x134] sm:$0xff]
    %v2631 = vld [vmem:[%s16 + $0x13c] sm:$0xff]
    %v2632 = vld [vmem:[%s16 + $0x144] sm:$0xff]
    %v2633 = vld [vmem:[%s16 + $0x14c] sm:$0xf]
    %v2634 = vld [vmem:[%s16 + $0x150] sm:$0xff]
    %v2635 = vld [vmem:[%s16 + $0x158] sm:$0xff]
    %v2636 = vld [vmem:[%s16 + $0x160] sm:$0xff]
    %v2637 = vld [vmem:[%s16 + $0x168] sm:$0xf]
    %v2638 = vld [vmem:[%s16 + $0x16c] sm:$0xff]
    %v2639 = vld [vmem:[%s16 + $0x174] sm:$0xff]
    %v2640 = vld [vmem:[%s16 + $0x17c] sm:$0xff]
    %v2641 = vld [vmem:[%s16 + $0x184] sm:$0xf]
    %v2642 = vld [vmem:[%s16 + $0x188] sm:$0xff]
    %v2643 = vld [vmem:[%s16 + $0x190] sm:$0xff]
    %v2644 = vld [vmem:[%s16 + $0x198] sm:$0xff]
    %v2645 = vld [vmem:[%s16 + $0x1a0] sm:$0xf]
    %v2646 = vld [vmem:[%s16 + $0x1a4] sm:$0xff]
    %v2647 = vld [vmem:[%s16 + $0x1ac] sm:$0xff]
    %v2648 = vld [vmem:[%s16 + $0x1b4] sm:$0xff]
    %v2649 = vld [vmem:[%s16 + $0x1bc] sm:$0xf]
    %v2650 = vld [vmem:[%s16 + $0x1c0] sm:$0xff]
    %v2651 = vld [vmem:[%s16 + $0x1c8] sm:$0xff]
    %v2652 = vld [vmem:[%s16 + $0x1d0] sm:$0xff]
    %v2653 = vld [vmem:[%s16 + $0x1d8] sm:$0xf]
    %v2654 = vld [vmem:[%s16 + $0x1dc] sm:$0xff]
    %v2655 = vld [vmem:[%s16 + $0x1e4] sm:$0xff]
    %v2656 = vld [vmem:[%s16 + $0x1ec] sm:$0xff]
    %v2657 = vld [vmem:[%s16 + $0x1f4] sm:$0xf]
    %v2658 = vld [vmem:[%s16 + $0x1f8] sm:$0xff]
    %v2659 = vld [vmem:[%s16 + $0x200] sm:$0xff]
    %v2660 = vld [vmem:[%s16 + $0x208] sm:$0xff]
    %v2661 = vld [vmem:[%s16 + $0x210] sm:$0xf]
    %v2662 = vld [vmem:[%s16 + $0x214] sm:$0xff]
    %v2663 = vld [vmem:[%s16 + $0x21c] sm:$0xff]
    %v2664 = vld [vmem:[%s16 + $0x224] sm:$0xff]
    %v2665 = vld [vmem:[%s16 + $0x22c] sm:$0xf]
    %v2666 = vld [vmem:[%s16 + $0x230] sm:$0xff]
    %v2667 = vld [vmem:[%s16 + $0x238] sm:$0xff]
    %v2668 = vld [vmem:[%s16 + $0x240] sm:$0xff]
    %v2669 = vld [vmem:[%s16 + $0x248] sm:$0xf]
    %v2670 = vld [vmem:[%s16 + $0x24c] sm:$0xff]
    %v2671 = vld [vmem:[%s16 + $0x254] sm:$0xff]
    %v2672 = vld [vmem:[%s16 + $0x25c] sm:$0xff]
    %v2673 = vld [vmem:[%s16 + $0x264] sm:$0xf]
    %v2674 = vld [vmem:[%s16 + $0x268] sm:$0xff]
    %v2675 = vld [vmem:[%s16 + $0x270] sm:$0xff]
    %v2676 = vld [vmem:[%s16 + $0x278] sm:$0xff]
    %v2677 = vld [vmem:[%s16 + $0x280] sm:$0xf]
    %v2678 = vld [vmem:[%s16 + $0x284] sm:$0xff]
    %v2679 = vld [vmem:[%s16 + $0x28c] sm:$0xff]
    %v2680 = vld [vmem:[%s16 + $0x294] sm:$0xff]
    %v2681 = vld [vmem:[%s16 + $0x29c] sm:$0xf]
    %v2682 = vld [vmem:[%s16 + $0x2a0] sm:$0xff]
    %v2683 = vld [vmem:[%s16 + $0x2a8] sm:$0xff]
    %v2684 = vld [vmem:[%s16 + $0x2b0] sm:$0xff]
    %v2685 = vld [vmem:[%s16 + $0x2b8] sm:$0xf]
    %v2686 = vld [vmem:[%s16 + $0x2bc] sm:$0xff]
    %v2687 = vld [vmem:[%s16 + $0x2c4] sm:$0xff]
    %v2688 = vld [vmem:[%s16 + $0x2cc] sm:$0xff]
    %v2689 = vld [vmem:[%s16 + $0x2d4] sm:$0xf]
    %v2690 = vld [vmem:[%s16 + $0x2d8] sm:$0xff]
    %v2691 = vld [vmem:[%s16 + $0x2e0] sm:$0xff]
    %v2692 = vld [vmem:[%s16 + $0x2e8] sm:$0xff]
    %v2693 = vld [vmem:[%s16 + $0x2f0] sm:$0xf]
    %v2694 = vld [vmem:[%s16 + $0x2f4] sm:$0xff]
    %v2695 = vld [vmem:[%s16 + $0x2fc] sm:$0xff]
    %v2696 = vld [vmem:[%s16 + $0x304] sm:$0xff]
    %v2697 = vld [vmem:[%s16 + $0x30c] sm:$0xf]
    %v2698 = vld [vmem:[%s16 + $0x310] sm:$0xff]
    %v2699 = vld [vmem:[%s16 + $0x318] sm:$0xff]
    %v2700 = vld [vmem:[%s16 + $0x320] sm:$0xff]
    %v2701 = vld [vmem:[%s16 + $0x328] sm:$0xf]
    %v2702 = vld [vmem:[%s16 + $0x32c] sm:$0xff]
    %v2703 = vld [vmem:[%s16 + $0x334] sm:$0xff]
    %v2704 = vld [vmem:[%s16 + $0x33c] sm:$0xff]
    %v2705 = vld [vmem:[%s16 + $0x344] sm:$0xf]
    %v2706 = vld [vmem:[%s16 + $0x348] sm:$0xff]
    %v2707 = vld [vmem:[%s16 + $0x350] sm:$0xff]
    %v2708 = vld [vmem:[%s16 + $0x358] sm:$0xff]
    %v2709 = vld [vmem:[%s16 + $0x360] sm:$0xf]
    %v2710 = vld [vmem:[%s16 + $0x364] sm:$0xff]
    %v2711 = vld [vmem:[%s16 + $0x36c] sm:$0xff]
    %v2712 = vld [vmem:[%s16 + $0x374] sm:$0xff]
    %v2713 = vld [vmem:[%s16 + $0x37c] sm:$0xf]
    %v2714 = vld [vmem:[%s16 + $0x380] sm:$0xff]
    %v2715 = vld [vmem:[%s16 + $0x388] sm:$0xff]
    %v2716 = vld [vmem:[%s16 + $0x390] sm:$0xff]
    %v2717 = vld [vmem:[%s16 + $0x398] sm:$0xf]
    %v2718 = vld [vmem:[%s16 + $0x39c] sm:$0xff]
    %v2719 = vld [vmem:[%s16 + $0x3a4] sm:$0xff]
    %v2720 = vld [vmem:[%s16 + $0x3ac] sm:$0xff]
    %v2721 = vld [vmem:[%s16 + $0x3b4] sm:$0xf]
    %v2722 = vld [vmem:[%s16 + $0x3b8] sm:$0xff]
    %v2723 = vld [vmem:[%s16 + $0x3c0] sm:$0xff]
    %v2724 = vld [vmem:[%s16 + $0x3c8] sm:$0xff]
    %v2725 = vld [vmem:[%s16 + $0x3d0] sm:$0xf]
    %v2726 = vld [vmem:[%s16 + $0x3d4] sm:$0xff]
    %v2727 = vld [vmem:[%s16 + $0x3dc] sm:$0xff]
    %v2728 = vld [vmem:[%s16 + $0x3e4] sm:$0xff]
    %v2729 = vld [vmem:[%s16 + $0x3ec] sm:$0xf]
    %v2730 = vld [vmem:[%s16 + $0x3f0] sm:$0xff]
    %v2731 = vld [vmem:[%s16 + $0x3f8] sm:$0xff]
    %v2732 = vld [vmem:[%s16 + $0x400] sm:$0xff]
    %v2733 = vld [vmem:[%s16 + $0x408] sm:$0xf]
    %v2734 = vld [vmem:[%s16 + $0x40c] sm:$0xff]
    %v2735 = vld [vmem:[%s16 + $0x414] sm:$0xff]
    %v2736 = vld [vmem:[%s16 + $0x41c] sm:$0xff]
    %v2737 = vld [vmem:[%s16 + $0x424] sm:$0xf]
    %v2738 = vld [vmem:[%s16 + $0x428] sm:$0xff]
    %v2739 = vld [vmem:[%s16 + $0x430] sm:$0xff]
    %v2740 = vld [vmem:[%s16 + $0x438] sm:$0xff]
    %v2741 = vld [vmem:[%s16 + $0x440] sm:$0xf]
    %v2742 = vld [vmem:[%s16 + $0x444] sm:$0xff]
    %v2743 = vld [vmem:[%s16 + $0x44c] sm:$0xff]
    %v2744 = vld [vmem:[%s16 + $0x454] sm:$0xff]
    %v2745 = vld [vmem:[%s16 + $0x45c] sm:$0xf]
    %v2746 = vld [vmem:[%s16 + $0x460] sm:$0xff]
    %v2747 = vld [vmem:[%s16 + $0x468] sm:$0xff]
    %v2748 = vld [vmem:[%s16 + $0x470] sm:$0xff]
    %v2749 = vld [vmem:[%s16 + $0x478] sm:$0xf]
    %v2750 = vld [vmem:[%s16 + $0x47c] sm:$0xff]
    %v2751 = vld [vmem:[%s16 + $0x484] sm:$0xff]
    %v2752 = vld [vmem:[%s16 + $0x48c] sm:$0xff]
    %v2753 = vld [vmem:[%s16 + $0x494] sm:$0xf]
    %v2754 = vld [vmem:[%s16 + $0x498] sm:$0xff]
    %v2755 = vld [vmem:[%s16 + $0x4a0] sm:$0xff]
    %v2756 = vld [vmem:[%s16 + $0x4a8] sm:$0xff]
    %v2757 = vld [vmem:[%s16 + $0x4b0] sm:$0xf]
    %v2758 = vld [vmem:[%s16 + $0x4b4] sm:$0xff]
    %v2759 = vld [vmem:[%s16 + $0x4bc] sm:$0xff]
    %v2760 = vld [vmem:[%s16 + $0x4c4] sm:$0xff]
    %v2761 = vld [vmem:[%s16 + $0x4cc] sm:$0xf]
    %v2762 = vld [vmem:[%s16 + $0x4d0] sm:$0xff]
    %v2763 = vld [vmem:[%s16 + $0x4d8] sm:$0xff]
    %v2764 = vld [vmem:[%s16 + $0x4e0] sm:$0xff]
    %v2765 = vld [vmem:[%s16 + $0x4e8] sm:$0xf]
    %v2766 = vld [vmem:[%s16 + $0x4ec] sm:$0xff]
    %v2767 = vld [vmem:[%s16 + $0x4f4] sm:$0xff]
    %v2768 = vld [vmem:[%s16 + $0x4fc] sm:$0xff]
    %v2769 = vld [vmem:[%s16 + $0x504] sm:$0xf]
    %v2770 = vld [vmem:[%s16 + $0x508] sm:$0xff]
    %v2771 = vld [vmem:[%s16 + $0x510] sm:$0xff]
    %v2772 = vld [vmem:[%s16 + $0x518] sm:$0xff]
    %v2773 = vld [vmem:[%s16 + $0x520] sm:$0xf]
    %v2774 = vld [vmem:[%s16 + $0x524] sm:$0xff]
    %v2775 = vld [vmem:[%s16 + $0x52c] sm:$0xff]
    %v2776 = vld [vmem:[%s16 + $0x534] sm:$0xff]
    %v2777 = vld [vmem:[%s16 + $0x53c] sm:$0xf]
    %v2778 = vld [vmem:[%s16 + $0x540] sm:$0xff]
    %v2779 = vld [vmem:[%s16 + $0x548] sm:$0xff]
    %v2780 = vld [vmem:[%s16 + $0x550] sm:$0xff]
    %v2781 = vld [vmem:[%s16 + $0x558] sm:$0xf]
    %v2782 = vld [vmem:[%s16 + $0x55c] sm:$0xff]
    %v2783 = vld [vmem:[%s16 + $0x564] sm:$0xff]
    %v2784 = vld [vmem:[%s16 + $0x56c] sm:$0xff]
    %v2785 = vld [vmem:[%s16 + $0x574] sm:$0xf]
    %v2786 = vld [vmem:[%s16 + $0x578] sm:$0xff]
    %v2787 = vld [vmem:[%s16 + $0x580] sm:$0xff]
    %v2788 = vld [vmem:[%s16 + $0x588] sm:$0xff]
    %v2789 = vld [vmem:[%s16 + $0x590] sm:$0xf]
    %v2790 = vld [vmem:[%s16 + $0x594] sm:$0xff]
    %v2791 = vld [vmem:[%s16 + $0x59c] sm:$0xff]
    %v2792 = vld [vmem:[%s16 + $0x5a4] sm:$0xff]
    %v2793 = vld [vmem:[%s16 + $0x5ac] sm:$0xf]
    %v2794 = vld [vmem:[%s16 + $0x5b0] sm:$0xff]
    %v2795 = vld [vmem:[%s16 + $0x5b8] sm:$0xff]
    %v2796 = vld [vmem:[%s16 + $0x5c0] sm:$0xff]
    %v2797 = vld [vmem:[%s16 + $0x5c8] sm:$0xf]
    %v2798 = vld [vmem:[%s16 + $0x5cc] sm:$0xff]
    %v2799 = vld [vmem:[%s16 + $0x5d4] sm:$0xff]
    %v2800 = vld [vmem:[%s16 + $0x5dc] sm:$0xff]
    %v2801 = vld [vmem:[%s16 + $0x5e4] sm:$0xf]
    %v2802 = vld [vmem:[%s16 + $0x5e8] sm:$0xff]
    %v2803 = vld [vmem:[%s16 + $0x5f0] sm:$0xff]
    %v2804 = vld [vmem:[%s16 + $0x5f8] sm:$0xff]
    %v2805 = vld [vmem:[%s16 + $0x600] sm:$0xf]
    %v2806 = vld [vmem:[%s16 + $0x604] sm:$0xff]
    %v2807 = vld [vmem:[%s16 + $0x60c] sm:$0xff]
    %v2808 = vld [vmem:[%s16 + $0x614] sm:$0xff]
    %v2809 = vld [vmem:[%s16 + $0x61c] sm:$0xf]
    %v2810 = vld [vmem:[%s16 + $0x620] sm:$0xff]
    %v2811 = vld [vmem:[%s16 + $0x628] sm:$0xff]
    %v2812 = vld [vmem:[%s16 + $0x630] sm:$0xff]
    %v2813 = vld [vmem:[%s16 + $0x638] sm:$0xf]
    %v2814 = vld [vmem:[%s16 + $0x63c] sm:$0xff]
    %v2815 = vld [vmem:[%s16 + $0x644] sm:$0xff]
    %v2816 = vld [vmem:[%s16 + $0x64c] sm:$0xff]
    %v2817 = vld [vmem:[%s16 + $0x654] sm:$0xf]
    %v2818 = vld [vmem:[%s16 + $0x658] sm:$0xff]
    %v2819 = vld [vmem:[%s16 + $0x660] sm:$0xff]
    %v2820 = vld [vmem:[%s16 + $0x668] sm:$0xff]
    %v2821 = vld [vmem:[%s16 + $0x670] sm:$0xf]
    %v2822 = vld [vmem:[%s16 + $0x674] sm:$0xff]
    %v2823 = vld [vmem:[%s16 + $0x67c] sm:$0xff]
    %v2824 = vld [vmem:[%s16 + $0x684] sm:$0xff]
    %v2825 = vld [vmem:[%s16 + $0x68c] sm:$0xf]
    %v2826 = vld [vmem:[%s16 + $0x690] sm:$0xff]
    %v2827 = vld [vmem:[%s16 + $0x698] sm:$0xff]
    %v2828 = vld [vmem:[%s16 + $0x6a0] sm:$0xff]
    %v2829 = vld [vmem:[%s16 + $0x6a8] sm:$0xf]
    %v2830 = vld [vmem:[%s16 + $0x6ac] sm:$0xff]
    %v2831 = vld [vmem:[%s16 + $0x6b4] sm:$0xff]
    %v2832 = vld [vmem:[%s16 + $0x6bc] sm:$0xff]
    %v2833 = vld [vmem:[%s16 + $0x6c4] sm:$0xf]
    %v2834 = vld [vmem:[%s16 + $0x6c8] sm:$0xff]
    %v2835 = vld [vmem:[%s16 + $0x6d0] sm:$0xff]
    %v2836 = vld [vmem:[%s16 + $0x6d8] sm:$0xff]
    %v2837 = vld [vmem:[%s16 + $0x6e0] sm:$0xf]
    %v2838 = vld [vmem:[%s16 + $0x6e4] sm:$0xff]
    %v2839 = vld [vmem:[%s16 + $0x6ec] sm:$0xff]
    %v2840 = vld [vmem:[%s16 + $0x6f4] sm:$0xff]
    %v2841 = vld [vmem:[%s16 + $0x6fc] sm:$0xf]
    %v2842 = vld [vmem:[%s17] sm:$0x7f]
    %v2844 = vlaneseq
    %v2845 = vshrl.u32 %v2844, 7
    %v2846 = vsub.s32 0, %v2845
    %v2847 = vrot.slane %v2842, %v2846
    %v2848 = vlaneseq
    %v2849 = vshrl.u32 %v2848, 7
    %v2850 = vsub.s32 1, %v2849
    %v2851 = vrot.slane %v2842, %v2850
    %v2852 = vlaneseq
    %v2853 = vshrl.u32 %v2852, 7
    %v2854 = vsub.s32 2, %v2853
    %v2855 = vrot.slane %v2842, %v2854
    %v2856 = vlaneseq
    %v2857 = vshrl.u32 %v2856, 7
    %v2858 = vsub.s32 3, %v2857
    %v2859 = vrot.slane %v2842, %v2858
    %v2860 = vlaneseq
    %v2861 = vshrl.u32 %v2860, 7
    %v2862 = vsub.s32 4, %v2861
    %v2863 = vrot.slane %v2842, %v2862
    %v2864 = vlaneseq
    %v2865 = vshrl.u32 %v2864, 7
    %v2866 = vsub.s32 5, %v2865
    %v2867 = vrot.slane %v2842, %v2866
    %v2868 = vlaneseq
    %v2869 = vshrl.u32 %v2868, 7
    %v2870 = vsub.s32 6, %v2869
    %v2871 = vrot.slane %v2842, %v2870
    %v3135 = vunpack.c.l.b16 %v2586
    %v3136 = vunpack.c.h.b16 %v2586
    %v3137 = vunpack.c.l.b16 %v2587
    %v3138 = vunpack.c.h.b16 %v2587
    %v3139 = vunpack.c.l.b16 %v2588
    %v3140 = vunpack.c.h.b16 %v2588
    %v3141 = vunpack.c.l.b16 %v2589
    %v3142 = vunpack.c.l.b16 %v2590
    %v3143 = vunpack.c.h.b16 %v2590
    %v3144 = vunpack.c.l.b16 %v2591
    %v3145 = vunpack.c.h.b16 %v2591
    %v3146 = vunpack.c.l.b16 %v2592
    %v3147 = vunpack.c.h.b16 %v2592
    %v3148 = vunpack.c.l.b16 %v2593
    %v3149 = vunpack.c.l.b16 %v2594
    %v3150 = vunpack.c.h.b16 %v2594
    %v3151 = vunpack.c.l.b16 %v2595
    %v3152 = vunpack.c.h.b16 %v2595
    %v3153 = vunpack.c.l.b16 %v2596
    %v3154 = vunpack.c.h.b16 %v2596
    %v3155 = vunpack.c.l.b16 %v2597
    %v3156 = vunpack.c.l.b16 %v2598
    %v3157 = vunpack.c.h.b16 %v2598
    %v3158 = vunpack.c.l.b16 %v2599
    %v3159 = vunpack.c.h.b16 %v2599
    %v3160 = vunpack.c.l.b16 %v2600
    %v3161 = vunpack.c.h.b16 %v2600
    %v3162 = vunpack.c.l.b16 %v2601
    %v3163 = vunpack.c.l.b16 %v2602
    %v3164 = vunpack.c.h.b16 %v2602
    %v3165 = vunpack.c.l.b16 %v2603
    %v3166 = vunpack.c.h.b16 %v2603
    %v3167 = vunpack.c.l.b16 %v2604
    %v3168 = vunpack.c.h.b16 %v2604
    %v3169 = vunpack.c.l.b16 %v2605
    %v3170 = vunpack.c.l.b16 %v2606
    %v3171 = vunpack.c.h.b16 %v2606
    %v3172 = vunpack.c.l.b16 %v2607
    %v3173 = vunpack.c.h.b16 %v2607
    %v3174 = vunpack.c.l.b16 %v2608
    %v3175 = vunpack.c.h.b16 %v2608
    %v3176 = vunpack.c.l.b16 %v2609
    %v3177 = vunpack.c.l.b16 %v2610
    %v3178 = vunpack.c.h.b16 %v2610
    %v3179 = vunpack.c.l.b16 %v2611
    %v3180 = vunpack.c.h.b16 %v2611
    %v3181 = vunpack.c.l.b16 %v2612
    %v3182 = vunpack.c.h.b16 %v2612
    %v3183 = vunpack.c.l.b16 %v2613
    %v3184 = vunpack.c.l.b16 %v2614
    %v3185 = vunpack.c.h.b16 %v2614
    %v3186 = vunpack.c.l.b16 %v2615
    %v3187 = vunpack.c.h.b16 %v2615
    %v3188 = vunpack.c.l.b16 %v2616
    %v3189 = vunpack.c.h.b16 %v2616
    %v3190 = vunpack.c.l.b16 %v2617
    %v3191 = vunpack.c.l.b16 %v2618
    %v3192 = vunpack.c.h.b16 %v2618
    %v3193 = vunpack.c.l.b16 %v2619
    %v3194 = vunpack.c.h.b16 %v2619
    %v3195 = vunpack.c.l.b16 %v2620
    %v3196 = vunpack.c.h.b16 %v2620
    %v3197 = vunpack.c.l.b16 %v2621
    %v3198 = vunpack.c.l.b16 %v2622
    %v3199 = vunpack.c.h.b16 %v2622
    %v3200 = vunpack.c.l.b16 %v2623
    %v3201 = vunpack.c.h.b16 %v2623
    %v3202 = vunpack.c.l.b16 %v2624
    %v3203 = vunpack.c.h.b16 %v2624
    %v3204 = vunpack.c.l.b16 %v2625
    %v3205 = vunpack.c.l.b16 %v2626
    %v3206 = vunpack.c.h.b16 %v2626
    %v3207 = vunpack.c.l.b16 %v2627
    %v3208 = vunpack.c.h.b16 %v2627
    %v3209 = vunpack.c.l.b16 %v2628
    %v3210 = vunpack.c.h.b16 %v2628
    %v3211 = vunpack.c.l.b16 %v2629
    %v3212 = vunpack.c.l.b16 %v2630
    %v3213 = vunpack.c.h.b16 %v2630
    %v3214 = vunpack.c.l.b16 %v2631
    %v3215 = vunpack.c.h.b16 %v2631
    %v3216 = vunpack.c.l.b16 %v2632
    %v3217 = vunpack.c.h.b16 %v2632
    %v3218 = vunpack.c.l.b16 %v2633
    %v3219 = vunpack.c.l.b16 %v2634
    %v3220 = vunpack.c.h.b16 %v2634
    %v3221 = vunpack.c.l.b16 %v2635
    %v3222 = vunpack.c.h.b16 %v2635
    %v3223 = vunpack.c.l.b16 %v2636
    %v3224 = vunpack.c.h.b16 %v2636
    %v3225 = vunpack.c.l.b16 %v2637
    %v3226 = vunpack.c.l.b16 %v2638
    %v3227 = vunpack.c.h.b16 %v2638
    %v3228 = vunpack.c.l.b16 %v2639
    %v3229 = vunpack.c.h.b16 %v2639
    %v3230 = vunpack.c.l.b16 %v2640
    %v3231 = vunpack.c.h.b16 %v2640
    %v3232 = vunpack.c.l.b16 %v2641
    %v3233 = vunpack.c.l.b16 %v2642
    %v3234 = vunpack.c.h.b16 %v2642
    %v3235 = vunpack.c.l.b16 %v2643
    %v3236 = vunpack.c.h.b16 %v2643
    %v3237 = vunpack.c.l.b16 %v2644
    %v3238 = vunpack.c.h.b16 %v2644
    %v3239 = vunpack.c.l.b16 %v2645
    %v3240 = vunpack.c.l.b16 %v2646
    %v3241 = vunpack.c.h.b16 %v2646
    %v3242 = vunpack.c.l.b16 %v2647
    %v3243 = vunpack.c.h.b16 %v2647
    %v3244 = vunpack.c.l.b16 %v2648
    %v3245 = vunpack.c.h.b16 %v2648
    %v3246 = vunpack.c.l.b16 %v2649
    %v3247 = vunpack.c.l.b16 %v2650
    %v3248 = vunpack.c.h.b16 %v2650
    %v3249 = vunpack.c.l.b16 %v2651
    %v3250 = vunpack.c.h.b16 %v2651
    %v3251 = vunpack.c.l.b16 %v2652
    %v3252 = vunpack.c.h.b16 %v2652
    %v3253 = vunpack.c.l.b16 %v2653
    %v3254 = vunpack.c.l.b16 %v2654
    %v3255 = vunpack.c.h.b16 %v2654
    %v3256 = vunpack.c.l.b16 %v2655
    %v3257 = vunpack.c.h.b16 %v2655
    %v3258 = vunpack.c.l.b16 %v2656
    %v3259 = vunpack.c.h.b16 %v2656
    %v3260 = vunpack.c.l.b16 %v2657
    %v3261 = vunpack.c.l.b16 %v2658
    %v3262 = vunpack.c.h.b16 %v2658
    %v3263 = vunpack.c.l.b16 %v2659
    %v3264 = vunpack.c.h.b16 %v2659
    %v3265 = vunpack.c.l.b16 %v2660
    %v3266 = vunpack.c.h.b16 %v2660
    %v3267 = vunpack.c.l.b16 %v2661
    %v3268 = vunpack.c.l.b16 %v2662
    %v3269 = vunpack.c.h.b16 %v2662
    %v3270 = vunpack.c.l.b16 %v2663
    %v3271 = vunpack.c.h.b16 %v2663
    %v3272 = vunpack.c.l.b16 %v2664
    %v3273 = vunpack.c.h.b16 %v2664
    %v3274 = vunpack.c.l.b16 %v2665
    %v3275 = vunpack.c.l.b16 %v2666
    %v3276 = vunpack.c.h.b16 %v2666
    %v3277 = vunpack.c.l.b16 %v2667
    %v3278 = vunpack.c.h.b16 %v2667
    %v3279 = vunpack.c.l.b16 %v2668
    %v3280 = vunpack.c.h.b16 %v2668
    %v3281 = vunpack.c.l.b16 %v2669
    %v3282 = vunpack.c.l.b16 %v2670
    %v3283 = vunpack.c.h.b16 %v2670
    %v3284 = vunpack.c.l.b16 %v2671
    %v3285 = vunpack.c.h.b16 %v2671
    %v3286 = vunpack.c.l.b16 %v2672
    %v3287 = vunpack.c.h.b16 %v2672
    %v3288 = vunpack.c.l.b16 %v2673
    %v3289 = vunpack.c.l.b16 %v2674
    %v3290 = vunpack.c.h.b16 %v2674
    %v3291 = vunpack.c.l.b16 %v2675
    %v3292 = vunpack.c.h.b16 %v2675
    %v3293 = vunpack.c.l.b16 %v2676
    %v3294 = vunpack.c.h.b16 %v2676
    %v3295 = vunpack.c.l.b16 %v2677
    %v3296 = vunpack.c.l.b16 %v2678
    %v3297 = vunpack.c.h.b16 %v2678
    %v3298 = vunpack.c.l.b16 %v2679
    %v3299 = vunpack.c.h.b16 %v2679
    %v3300 = vunpack.c.l.b16 %v2680
    %v3301 = vunpack.c.h.b16 %v2680
    %v3302 = vunpack.c.l.b16 %v2681
    %v3303 = vunpack.c.l.b16 %v2682
    %v3304 = vunpack.c.h.b16 %v2682
    %v3305 = vunpack.c.l.b16 %v2683
    %v3306 = vunpack.c.h.b16 %v2683
    %v3307 = vunpack.c.l.b16 %v2684
    %v3308 = vunpack.c.h.b16 %v2684
    %v3309 = vunpack.c.l.b16 %v2685
    %v3310 = vunpack.c.l.b16 %v2686
    %v3311 = vunpack.c.h.b16 %v2686
    %v3312 = vunpack.c.l.b16 %v2687
    %v3313 = vunpack.c.h.b16 %v2687
    %v3314 = vunpack.c.l.b16 %v2688
    %v3315 = vunpack.c.h.b16 %v2688
    %v3316 = vunpack.c.l.b16 %v2689
    %v3317 = vunpack.c.l.b16 %v2690
    %v3318 = vunpack.c.h.b16 %v2690
    %v3319 = vunpack.c.l.b16 %v2691
    %v3320 = vunpack.c.h.b16 %v2691
    %v3321 = vunpack.c.l.b16 %v2692
    %v3322 = vunpack.c.h.b16 %v2692
    %v3323 = vunpack.c.l.b16 %v2693
    %v3324 = vunpack.c.l.b16 %v2694
    %v3325 = vunpack.c.h.b16 %v2694
    %v3326 = vunpack.c.l.b16 %v2695
    %v3327 = vunpack.c.h.b16 %v2695
    %v3328 = vunpack.c.l.b16 %v2696
    %v3329 = vunpack.c.h.b16 %v2696
    %v3330 = vunpack.c.l.b16 %v2697
    %v3331 = vunpack.c.l.b16 %v2698
    %v3332 = vunpack.c.h.b16 %v2698
    %v3333 = vunpack.c.l.b16 %v2699
    %v3334 = vunpack.c.h.b16 %v2699
    %v3335 = vunpack.c.l.b16 %v2700
    %v3336 = vunpack.c.h.b16 %v2700
    %v3337 = vunpack.c.l.b16 %v2701
    %v3338 = vunpack.c.l.b16 %v2702
    %v3339 = vunpack.c.h.b16 %v2702
    %v3340 = vunpack.c.l.b16 %v2703
    %v3341 = vunpack.c.h.b16 %v2703
    %v3342 = vunpack.c.l.b16 %v2704
    %v3343 = vunpack.c.h.b16 %v2704
    %v3344 = vunpack.c.l.b16 %v2705
    %v3345 = vunpack.c.l.b16 %v2706
    %v3346 = vunpack.c.h.b16 %v2706
    %v3347 = vunpack.c.l.b16 %v2707
    %v3348 = vunpack.c.h.b16 %v2707
    %v3349 = vunpack.c.l.b16 %v2708
    %v3350 = vunpack.c.h.b16 %v2708
    %v3351 = vunpack.c.l.b16 %v2709
    %v3352 = vunpack.c.l.b16 %v2710
    %v3353 = vunpack.c.h.b16 %v2710
    %v3354 = vunpack.c.l.b16 %v2711
    %v3355 = vunpack.c.h.b16 %v2711
    %v3356 = vunpack.c.l.b16 %v2712
    %v3357 = vunpack.c.h.b16 %v2712
    %v3358 = vunpack.c.l.b16 %v2713
    %v3359 = vunpack.c.l.b16 %v2714
    %v3360 = vunpack.c.h.b16 %v2714
    %v3361 = vunpack.c.l.b16 %v2715
    %v3362 = vunpack.c.h.b16 %v2715
    %v3363 = vunpack.c.l.b16 %v2716
    %v3364 = vunpack.c.h.b16 %v2716
    %v3365 = vunpack.c.l.b16 %v2717
    %v3366 = vunpack.c.l.b16 %v2718
    %v3367 = vunpack.c.h.b16 %v2718
    %v3368 = vunpack.c.l.b16 %v2719
    %v3369 = vunpack.c.h.b16 %v2719
    %v3370 = vunpack.c.l.b16 %v2720
    %v3371 = vunpack.c.h.b16 %v2720
    %v3372 = vunpack.c.l.b16 %v2721
    %v3373 = vunpack.c.l.b16 %v2722
    %v3374 = vunpack.c.h.b16 %v2722
    %v3375 = vunpack.c.l.b16 %v2723
    %v3376 = vunpack.c.h.b16 %v2723
    %v3377 = vunpack.c.l.b16 %v2724
    %v3378 = vunpack.c.h.b16 %v2724
    %v3379 = vunpack.c.l.b16 %v2725
    %v3380 = vunpack.c.l.b16 %v2726
    %v3381 = vunpack.c.h.b16 %v2726
    %v3382 = vunpack.c.l.b16 %v2727
    %v3383 = vunpack.c.h.b16 %v2727
    %v3384 = vunpack.c.l.b16 %v2728
    %v3385 = vunpack.c.h.b16 %v2728
    %v3386 = vunpack.c.l.b16 %v2729
    %v3387 = vunpack.c.l.b16 %v2730
    %v3388 = vunpack.c.h.b16 %v2730
    %v3389 = vunpack.c.l.b16 %v2731
    %v3390 = vunpack.c.h.b16 %v2731
    %v3391 = vunpack.c.l.b16 %v2732
    %v3392 = vunpack.c.h.b16 %v2732
    %v3393 = vunpack.c.l.b16 %v2733
    %v3394 = vunpack.c.l.b16 %v2734
    %v3395 = vunpack.c.h.b16 %v2734
    %v3396 = vunpack.c.l.b16 %v2735
    %v3397 = vunpack.c.h.b16 %v2735
    %v3398 = vunpack.c.l.b16 %v2736
    %v3399 = vunpack.c.h.b16 %v2736
    %v3400 = vunpack.c.l.b16 %v2737
    %v3401 = vunpack.c.l.b16 %v2738
    %v3402 = vunpack.c.h.b16 %v2738
    %v3403 = vunpack.c.l.b16 %v2739
    %v3404 = vunpack.c.h.b16 %v2739
    %v3405 = vunpack.c.l.b16 %v2740
    %v3406 = vunpack.c.h.b16 %v2740
    %v3407 = vunpack.c.l.b16 %v2741
    %v3408 = vunpack.c.l.b16 %v2742
    %v3409 = vunpack.c.h.b16 %v2742
    %v3410 = vunpack.c.l.b16 %v2743
    %v3411 = vunpack.c.h.b16 %v2743
    %v3412 = vunpack.c.l.b16 %v2744
    %v3413 = vunpack.c.h.b16 %v2744
    %v3414 = vunpack.c.l.b16 %v2745
    %v3415 = vunpack.c.l.b16 %v2746
    %v3416 = vunpack.c.h.b16 %v2746
    %v3417 = vunpack.c.l.b16 %v2747
    %v3418 = vunpack.c.h.b16 %v2747
    %v3419 = vunpack.c.l.b16 %v2748
    %v3420 = vunpack.c.h.b16 %v2748
    %v3421 = vunpack.c.l.b16 %v2749
    %v3422 = vunpack.c.l.b16 %v2750
    %v3423 = vunpack.c.h.b16 %v2750
    %v3424 = vunpack.c.l.b16 %v2751
    %v3425 = vunpack.c.h.b16 %v2751
    %v3426 = vunpack.c.l.b16 %v2752
    %v3427 = vunpack.c.h.b16 %v2752
    %v3428 = vunpack.c.l.b16 %v2753
    %v3429 = vunpack.c.l.b16 %v2754
    %v3430 = vunpack.c.h.b16 %v2754
    %v3431 = vunpack.c.l.b16 %v2755
    %v3432 = vunpack.c.h.b16 %v2755
    %v3433 = vunpack.c.l.b16 %v2756
    %v3434 = vunpack.c.h.b16 %v2756
    %v3435 = vunpack.c.l.b16 %v2757
    %v3436 = vunpack.c.l.b16 %v2758
    %v3437 = vunpack.c.h.b16 %v2758
    %v3438 = vunpack.c.l.b16 %v2759
    %v3439 = vunpack.c.h.b16 %v2759
    %v3440 = vunpack.c.l.b16 %v2760
    %v3441 = vunpack.c.h.b16 %v2760
    %v3442 = vunpack.c.l.b16 %v2761
    %v3443 = vunpack.c.l.b16 %v2762
    %v3444 = vunpack.c.h.b16 %v2762
    %v3445 = vunpack.c.l.b16 %v2763
    %v3446 = vunpack.c.h.b16 %v2763
    %v3447 = vunpack.c.l.b16 %v2764
    %v3448 = vunpack.c.h.b16 %v2764
    %v3449 = vunpack.c.l.b16 %v2765
    %v3450 = vunpack.c.l.b16 %v2766
    %v3451 = vunpack.c.h.b16 %v2766
    %v3452 = vunpack.c.l.b16 %v2767
    %v3453 = vunpack.c.h.b16 %v2767
    %v3454 = vunpack.c.l.b16 %v2768
    %v3455 = vunpack.c.h.b16 %v2768
    %v3456 = vunpack.c.l.b16 %v2769
    %v3457 = vunpack.c.l.b16 %v2770
    %v3458 = vunpack.c.h.b16 %v2770
    %v3459 = vunpack.c.l.b16 %v2771
    %v3460 = vunpack.c.h.b16 %v2771
    %v3461 = vunpack.c.l.b16 %v2772
    %v3462 = vunpack.c.h.b16 %v2772
    %v3463 = vunpack.c.l.b16 %v2773
    %v3464 = vunpack.c.l.b16 %v2774
    %v3465 = vunpack.c.h.b16 %v2774
    %v3466 = vunpack.c.l.b16 %v2775
    %v3467 = vunpack.c.h.b16 %v2775
    %v3468 = vunpack.c.l.b16 %v2776
    %v3469 = vunpack.c.h.b16 %v2776
    %v3470 = vunpack.c.l.b16 %v2777
    %v3471 = vunpack.c.l.b16 %v2778
    %v3472 = vunpack.c.h.b16 %v2778
    %v3473 = vunpack.c.l.b16 %v2779
    %v3474 = vunpack.c.h.b16 %v2779
    %v3475 = vunpack.c.l.b16 %v2780
    %v3476 = vunpack.c.h.b16 %v2780
    %v3477 = vunpack.c.l.b16 %v2781
    %v3478 = vunpack.c.l.b16 %v2782
    %v3479 = vunpack.c.h.b16 %v2782
    %v3480 = vunpack.c.l.b16 %v2783
    %v3481 = vunpack.c.h.b16 %v2783
    %v3482 = vunpack.c.l.b16 %v2784
    %v3483 = vunpack.c.h.b16 %v2784
    %v3484 = vunpack.c.l.b16 %v2785
    %v3485 = vunpack.c.l.b16 %v2786
    %v3486 = vunpack.c.h.b16 %v2786
    %v3487 = vunpack.c.l.b16 %v2787
    %v3488 = vunpack.c.h.b16 %v2787
    %v3489 = vunpack.c.l.b16 %v2788
    %v3490 = vunpack.c.h.b16 %v2788
    %v3491 = vunpack.c.l.b16 %v2789
    %v3492 = vunpack.c.l.b16 %v2790
    %v3493 = vunpack.c.h.b16 %v2790
    %v3494 = vunpack.c.l.b16 %v2791
    %v3495 = vunpack.c.h.b16 %v2791
    %v3496 = vunpack.c.l.b16 %v2792
    %v3497 = vunpack.c.h.b16 %v2792
    %v3498 = vunpack.c.l.b16 %v2793
    %v3499 = vunpack.c.l.b16 %v2794
    %v3500 = vunpack.c.h.b16 %v2794
    %v3501 = vunpack.c.l.b16 %v2795
    %v3502 = vunpack.c.h.b16 %v2795
    %v3503 = vunpack.c.l.b16 %v2796
    %v3504 = vunpack.c.h.b16 %v2796
    %v3505 = vunpack.c.l.b16 %v2797
    %v3506 = vunpack.c.l.b16 %v2798
    %v3507 = vunpack.c.h.b16 %v2798
    %v3508 = vunpack.c.l.b16 %v2799
    %v3509 = vunpack.c.h.b16 %v2799
    %v3510 = vunpack.c.l.b16 %v2800
    %v3511 = vunpack.c.h.b16 %v2800
    %v3512 = vunpack.c.l.b16 %v2801
    %v3513 = vunpack.c.l.b16 %v2802
    %v3514 = vunpack.c.h.b16 %v2802
    %v3515 = vunpack.c.l.b16 %v2803
    %v3516 = vunpack.c.h.b16 %v2803
    %v3517 = vunpack.c.l.b16 %v2804
    %v3518 = vunpack.c.h.b16 %v2804
    %v3519 = vunpack.c.l.b16 %v2805
    %v3520 = vunpack.c.l.b16 %v2806
    %v3521 = vunpack.c.h.b16 %v2806
    %v3522 = vunpack.c.l.b16 %v2807
    %v3523 = vunpack.c.h.b16 %v2807
    %v3524 = vunpack.c.l.b16 %v2808
    %v3525 = vunpack.c.h.b16 %v2808
    %v3526 = vunpack.c.l.b16 %v2809
    %v3527 = vunpack.c.l.b16 %v2810
    %v3528 = vunpack.c.h.b16 %v2810
    %v3529 = vunpack.c.l.b16 %v2811
    %v3530 = vunpack.c.h.b16 %v2811
    %v3531 = vunpack.c.l.b16 %v2812
    %v3532 = vunpack.c.h.b16 %v2812
    %v3533 = vunpack.c.l.b16 %v2813
    %v3534 = vunpack.c.l.b16 %v2814
    %v3535 = vunpack.c.h.b16 %v2814
    %v3536 = vunpack.c.l.b16 %v2815
    %v3537 = vunpack.c.h.b16 %v2815
    %v3538 = vunpack.c.l.b16 %v2816
    %v3539 = vunpack.c.h.b16 %v2816
    %v3540 = vunpack.c.l.b16 %v2817
    %v3541 = vunpack.c.l.b16 %v2818
    %v3542 = vunpack.c.h.b16 %v2818
    %v3543 = vunpack.c.l.b16 %v2819
    %v3544 = vunpack.c.h.b16 %v2819
    %v3545 = vunpack.c.l.b16 %v2820
    %v3546 = vunpack.c.h.b16 %v2820
    %v3547 = vunpack.c.l.b16 %v2821
    %v3548 = vunpack.c.l.b16 %v2822
    %v3549 = vunpack.c.h.b16 %v2822
    %v3550 = vunpack.c.l.b16 %v2823
    %v3551 = vunpack.c.h.b16 %v2823
    %v3552 = vunpack.c.l.b16 %v2824
    %v3553 = vunpack.c.h.b16 %v2824
    %v3554 = vunpack.c.l.b16 %v2825
    %v3555 = vunpack.c.l.b16 %v2826
    %v3556 = vunpack.c.h.b16 %v2826
    %v3557 = vunpack.c.l.b16 %v2827
    %v3558 = vunpack.c.h.b16 %v2827
    %v3559 = vunpack.c.l.b16 %v2828
    %v3560 = vunpack.c.h.b16 %v2828
    %v3561 = vunpack.c.l.b16 %v2829
    %v3562 = vunpack.c.l.b16 %v2830
    %v3563 = vunpack.c.h.b16 %v2830
    %v3564 = vunpack.c.l.b16 %v2831
    %v3565 = vunpack.c.h.b16 %v2831
    %v3566 = vunpack.c.l.b16 %v2832
    %v3567 = vunpack.c.h.b16 %v2832
    %v3568 = vunpack.c.l.b16 %v2833
    %v3569 = vunpack.c.l.b16 %v2834
    %v3570 = vunpack.c.h.b16 %v2834
    %v3571 = vunpack.c.l.b16 %v2835
    %v3572 = vunpack.c.h.b16 %v2835
    %v3573 = vunpack.c.l.b16 %v2836
    %v3574 = vunpack.c.h.b16 %v2836
    %v3575 = vunpack.c.l.b16 %v2837
    %v3576 = vunpack.c.l.b16 %v2838
    %v3577 = vunpack.c.h.b16 %v2838
    %v3578 = vunpack.c.l.b16 %v2839
    %v3579 = vunpack.c.h.b16 %v2839
    %v3580 = vunpack.c.l.b16 %v2840
    %v3581 = vunpack.c.h.b16 %v2840
    %v3582 = vunpack.c.l.b16 %v2841
    %v3583 = vpack.c.b16 %v3142, %v3135
    %v3584 = vpack.c.b16 %v3143, %v3136
    %v3585 = vpack.c.b16 %v3144, %v3137
    %v3586 = vpack.c.b16 %v3145, %v3138
    %v3587 = vpack.c.b16 %v3146, %v3139
    %v3588 = vpack.c.b16 %v3147, %v3140
    %v3589 = vpack.c.b16 %v3148, %v3141
    %v3590 = vpack.c.b16 %v3156, %v3149
    %v3591 = vpack.c.b16 %v3157, %v3150
    %v3592 = vpack.c.b16 %v3158, %v3151
    %v3593 = vpack.c.b16 %v3159, %v3152
    %v3594 = vpack.c.b16 %v3160, %v3153
    %v3595 = vpack.c.b16 %v3161, %v3154
    %v3596 = vpack.c.b16 %v3162, %v3155
    %v3597 = vpack.c.b16 %v3170, %v3163
    %v3598 = vpack.c.b16 %v3171, %v3164
    %v3599 = vpack.c.b16 %v3172, %v3165
    %v3600 = vpack.c.b16 %v3173, %v3166
    %v3601 = vpack.c.b16 %v3174, %v3167
    %v3602 = vpack.c.b16 %v3175, %v3168
    %v3603 = vpack.c.b16 %v3176, %v3169
    %v3604 = vpack.c.b16 %v3184, %v3177
    %v3605 = vpack.c.b16 %v3185, %v3178
    %v3606 = vpack.c.b16 %v3186, %v3179
    %v3607 = vpack.c.b16 %v3187, %v3180
    %v3608 = vpack.c.b16 %v3188, %v3181
    %v3609 = vpack.c.b16 %v3189, %v3182
    %v3610 = vpack.c.b16 %v3190, %v3183
    %v3611 = vpack.c.b16 %v3198, %v3191
    %v3612 = vpack.c.b16 %v3199, %v3192
    %v3613 = vpack.c.b16 %v3200, %v3193
    %v3614 = vpack.c.b16 %v3201, %v3194
    %v3615 = vpack.c.b16 %v3202, %v3195
    %v3616 = vpack.c.b16 %v3203, %v3196
    %v3617 = vpack.c.b16 %v3204, %v3197
    %v3618 = vpack.c.b16 %v3212, %v3205
    %v3619 = vpack.c.b16 %v3213, %v3206
    %v3620 = vpack.c.b16 %v3214, %v3207
    %v3621 = vpack.c.b16 %v3215, %v3208
    %v3622 = vpack.c.b16 %v3216, %v3209
    %v3623 = vpack.c.b16 %v3217, %v3210
    %v3624 = vpack.c.b16 %v3218, %v3211
    %v3625 = vpack.c.b16 %v3226, %v3219
    %v3626 = vpack.c.b16 %v3227, %v3220
    %v3627 = vpack.c.b16 %v3228, %v3221
    %v3628 = vpack.c.b16 %v3229, %v3222
    %v3629 = vpack.c.b16 %v3230, %v3223
    %v3630 = vpack.c.b16 %v3231, %v3224
    %v3631 = vpack.c.b16 %v3232, %v3225
    %v3632 = vpack.c.b16 %v3240, %v3233
    %v3633 = vpack.c.b16 %v3241, %v3234
    %v3634 = vpack.c.b16 %v3242, %v3235
    %v3635 = vpack.c.b16 %v3243, %v3236
    %v3636 = vpack.c.b16 %v3244, %v3237
    %v3637 = vpack.c.b16 %v3245, %v3238
    %v3638 = vpack.c.b16 %v3246, %v3239
    %v3639 = vpack.c.b16 %v3254, %v3247
    %v3640 = vpack.c.b16 %v3255, %v3248
    %v3641 = vpack.c.b16 %v3256, %v3249
    %v3642 = vpack.c.b16 %v3257, %v3250
    %v3643 = vpack.c.b16 %v3258, %v3251
    %v3644 = vpack.c.b16 %v3259, %v3252
    %v3645 = vpack.c.b16 %v3260, %v3253
    %v3646 = vpack.c.b16 %v3268, %v3261
    %v3647 = vpack.c.b16 %v3269, %v3262
    %v3648 = vpack.c.b16 %v3270, %v3263
    %v3649 = vpack.c.b16 %v3271, %v3264
    %v3650 = vpack.c.b16 %v3272, %v3265
    %v3651 = vpack.c.b16 %v3273, %v3266
    %v3652 = vpack.c.b16 %v3274, %v3267
    %v3653 = vpack.c.b16 %v3282, %v3275
    %v3654 = vpack.c.b16 %v3283, %v3276
    %v3655 = vpack.c.b16 %v3284, %v3277
    %v3656 = vpack.c.b16 %v3285, %v3278
    %v3657 = vpack.c.b16 %v3286, %v3279
    %v3658 = vpack.c.b16 %v3287, %v3280
    %v3659 = vpack.c.b16 %v3288, %v3281
    %v3660 = vpack.c.b16 %v3296, %v3289
    %v3661 = vpack.c.b16 %v3297, %v3290
    %v3662 = vpack.c.b16 %v3298, %v3291
    %v3663 = vpack.c.b16 %v3299, %v3292
    %v3664 = vpack.c.b16 %v3300, %v3293
    %v3665 = vpack.c.b16 %v3301, %v3294
    %v3666 = vpack.c.b16 %v3302, %v3295
    %v3667 = vpack.c.b16 %v3310, %v3303
    %v3668 = vpack.c.b16 %v3311, %v3304
    %v3669 = vpack.c.b16 %v3312, %v3305
    %v3670 = vpack.c.b16 %v3313, %v3306
    %v3671 = vpack.c.b16 %v3314, %v3307
    %v3672 = vpack.c.b16 %v3315, %v3308
    %v3673 = vpack.c.b16 %v3316, %v3309
    %v3674 = vpack.c.b16 %v3324, %v3317
    %v3675 = vpack.c.b16 %v3325, %v3318
    %v3676 = vpack.c.b16 %v3326, %v3319
    %v3677 = vpack.c.b16 %v3327, %v3320
    %v3678 = vpack.c.b16 %v3328, %v3321
    %v3679 = vpack.c.b16 %v3329, %v3322
    %v3680 = vpack.c.b16 %v3330, %v3323
    %v3681 = vpack.c.b16 %v3338, %v3331
    %v3682 = vpack.c.b16 %v3339, %v3332
    %v3683 = vpack.c.b16 %v3340, %v3333
    %v3684 = vpack.c.b16 %v3341, %v3334
    %v3685 = vpack.c.b16 %v3342, %v3335
    %v3686 = vpack.c.b16 %v3343, %v3336
    %v3687 = vpack.c.b16 %v3344, %v3337
    %v3688 = vpack.c.b16 %v3352, %v3345
    %v3689 = vpack.c.b16 %v3353, %v3346
    %v3690 = vpack.c.b16 %v3354, %v3347
    %v3691 = vpack.c.b16 %v3355, %v3348
    %v3692 = vpack.c.b16 %v3356, %v3349
    %v3693 = vpack.c.b16 %v3357, %v3350
    %v3694 = vpack.c.b16 %v3358, %v3351
    %v3695 = vpack.c.b16 %v3366, %v3359
    %v3696 = vpack.c.b16 %v3367, %v3360
    %v3697 = vpack.c.b16 %v3368, %v3361
    %v3698 = vpack.c.b16 %v3369, %v3362
    %v3699 = vpack.c.b16 %v3370, %v3363
    %v3700 = vpack.c.b16 %v3371, %v3364
    %v3701 = vpack.c.b16 %v3372, %v3365
    %v3702 = vpack.c.b16 %v3380, %v3373
    %v3703 = vpack.c.b16 %v3381, %v3374
    %v3704 = vpack.c.b16 %v3382, %v3375
    %v3705 = vpack.c.b16 %v3383, %v3376
    %v3706 = vpack.c.b16 %v3384, %v3377
    %v3707 = vpack.c.b16 %v3385, %v3378
    %v3708 = vpack.c.b16 %v3386, %v3379
    %v3709 = vpack.c.b16 %v3394, %v3387
    %v3710 = vpack.c.b16 %v3395, %v3388
    %v3711 = vpack.c.b16 %v3396, %v3389
    %v3712 = vpack.c.b16 %v3397, %v3390
    %v3713 = vpack.c.b16 %v3398, %v3391
    %v3714 = vpack.c.b16 %v3399, %v3392
    %v3715 = vpack.c.b16 %v3400, %v3393
    %v3716 = vpack.c.b16 %v3408, %v3401
    %v3717 = vpack.c.b16 %v3409, %v3402
    %v3718 = vpack.c.b16 %v3410, %v3403
    %v3719 = vpack.c.b16 %v3411, %v3404
    %v3720 = vpack.c.b16 %v3412, %v3405
    %v3721 = vpack.c.b16 %v3413, %v3406
    %v3722 = vpack.c.b16 %v3414, %v3407
    %v3723 = vpack.c.b16 %v3422, %v3415
    %v3724 = vpack.c.b16 %v3423, %v3416
    %v3725 = vpack.c.b16 %v3424, %v3417
    %v3726 = vpack.c.b16 %v3425, %v3418
    %v3727 = vpack.c.b16 %v3426, %v3419
    %v3728 = vpack.c.b16 %v3427, %v3420
    %v3729 = vpack.c.b16 %v3428, %v3421
    %v3730 = vpack.c.b16 %v3436, %v3429
    %v3731 = vpack.c.b16 %v3437, %v3430
    %v3732 = vpack.c.b16 %v3438, %v3431
    %v3733 = vpack.c.b16 %v3439, %v3432
    %v3734 = vpack.c.b16 %v3440, %v3433
    %v3735 = vpack.c.b16 %v3441, %v3434
    %v3736 = vpack.c.b16 %v3442, %v3435
    %v3737 = vpack.c.b16 %v3450, %v3443
    %v3738 = vpack.c.b16 %v3451, %v3444
    %v3739 = vpack.c.b16 %v3452, %v3445
    %v3740 = vpack.c.b16 %v3453, %v3446
    %v3741 = vpack.c.b16 %v3454, %v3447
    %v3742 = vpack.c.b16 %v3455, %v3448
    %v3743 = vpack.c.b16 %v3456, %v3449
    %v3744 = vpack.c.b16 %v3464, %v3457
    %v3745 = vpack.c.b16 %v3465, %v3458
    %v3746 = vpack.c.b16 %v3466, %v3459
    %v3747 = vpack.c.b16 %v3467, %v3460
    %v3748 = vpack.c.b16 %v3468, %v3461
    %v3749 = vpack.c.b16 %v3469, %v3462
    %v3750 = vpack.c.b16 %v3470, %v3463
    %v3751 = vpack.c.b16 %v3478, %v3471
    %v3752 = vpack.c.b16 %v3479, %v3472
    %v3753 = vpack.c.b16 %v3480, %v3473
    %v3754 = vpack.c.b16 %v3481, %v3474
    %v3755 = vpack.c.b16 %v3482, %v3475
    %v3756 = vpack.c.b16 %v3483, %v3476
    %v3757 = vpack.c.b16 %v3484, %v3477
    %v3758 = vpack.c.b16 %v3492, %v3485
    %v3759 = vpack.c.b16 %v3493, %v3486
    %v3760 = vpack.c.b16 %v3494, %v3487
    %v3761 = vpack.c.b16 %v3495, %v3488
    %v3762 = vpack.c.b16 %v3496, %v3489
    %v3763 = vpack.c.b16 %v3497, %v3490
    %v3764 = vpack.c.b16 %v3498, %v3491
    %v3765 = vpack.c.b16 %v3506, %v3499
    %v3766 = vpack.c.b16 %v3507, %v3500
    %v3767 = vpack.c.b16 %v3508, %v3501
    %v3768 = vpack.c.b16 %v3509, %v3502
    %v3769 = vpack.c.b16 %v3510, %v3503
    %v3770 = vpack.c.b16 %v3511, %v3504
    %v3771 = vpack.c.b16 %v3512, %v3505
    %v3772 = vpack.c.b16 %v3520, %v3513
    %v3773 = vpack.c.b16 %v3521, %v3514
    %v3774 = vpack.c.b16 %v3522, %v3515
    %v3775 = vpack.c.b16 %v3523, %v3516
    %v3776 = vpack.c.b16 %v3524, %v3517
    %v3777 = vpack.c.b16 %v3525, %v3518
    %v3778 = vpack.c.b16 %v3526, %v3519
    %v3779 = vpack.c.b16 %v3534, %v3527
    %v3780 = vpack.c.b16 %v3535, %v3528
    %v3781 = vpack.c.b16 %v3536, %v3529
    %v3782 = vpack.c.b16 %v3537, %v3530
    %v3783 = vpack.c.b16 %v3538, %v3531
    %v3784 = vpack.c.b16 %v3539, %v3532
    %v3785 = vpack.c.b16 %v3540, %v3533
    %v3786 = vpack.c.b16 %v3548, %v3541
    %v3787 = vpack.c.b16 %v3549, %v3542
    %v3788 = vpack.c.b16 %v3550, %v3543
    %v3789 = vpack.c.b16 %v3551, %v3544
    %v3790 = vpack.c.b16 %v3552, %v3545
    %v3791 = vpack.c.b16 %v3553, %v3546
    %v3792 = vpack.c.b16 %v3554, %v3547
    %v3793 = vpack.c.b16 %v3562, %v3555
    %v3794 = vpack.c.b16 %v3563, %v3556
    %v3795 = vpack.c.b16 %v3564, %v3557
    %v3796 = vpack.c.b16 %v3565, %v3558
    %v3797 = vpack.c.b16 %v3566, %v3559
    %v3798 = vpack.c.b16 %v3567, %v3560
    %v3799 = vpack.c.b16 %v3568, %v3561
    %v3800 = vpack.c.b16 %v3576, %v3569
    %v3801 = vpack.c.b16 %v3577, %v3570
    %v3802 = vpack.c.b16 %v3578, %v3571
    %v3803 = vpack.c.b16 %v3579, %v3572
    %v3804 = vpack.c.b16 %v3580, %v3573
    %v3805 = vpack.c.b16 %v3581, %v3574
    %v3806 = vpack.c.b16 %v3582, %v3575
    %4031 = vmatprep.subr.bf16.mxu0 %v3633
    %4032 = vmatpush1.bf16.msra.mxu0 %v3632
    %4033 = vmatprep.subr.bf16.mxu0 %v3626
    %4034 = vmatpush1.bf16.msra.mxu0 %v3625
    %4035 = vmatprep.subr.bf16.mxu0 %v3619
    %4036 = vmatpush1.bf16.msra.mxu0 %v3618
    %4037 = vmatprep.subr.bf16.mxu0 %v3612
    %4038 = vmatpush1.bf16.msra.mxu0 %v3611
    %4039 = vmatprep.subr.bf16.mxu0 %v3605
    %4040 = vmatpush1.bf16.msra.mxu0 %v3604
    %4041 = vmatprep.subr.bf16.mxu0 %v3598
    %4042 = vmatpush1.bf16.msra.mxu0 %v3597
    %4043 = vmatprep.subr.bf16.mxu0 %v3591
    %4044 = vmatpush1.bf16.msra.mxu0 %v3590
    %4045 = vmatprep.subr.bf16.mxu0 %v3584
    %4046 = vmatpush1.bf16.msra.mxu0 %v3583
    %4047 = vmatprep.subr.bf16.mxu0 %v3689
    %4048 = vmatpush2.bf16.msra.mxu0 %v3688
    %4049 = vmatprep.subr.bf16.mxu0 %v3682
    %4050 = vmatpush2.bf16.msra.mxu0 %v3681
    %4051 = vmatprep.subr.bf16.mxu0 %v3675
    %4052 = vmatpush2.bf16.msra.mxu0 %v3674
    %4053 = vmatprep.subr.bf16.mxu0 %v3668
    %4054 = vmatpush2.bf16.msra.mxu0 %v3667
    %4055 = vmatprep.subr.bf16.mxu0 %v3661
    %4056 = vmatpush2.bf16.msra.mxu0 %v3660
    %4057 = vmatprep.subr.bf16.mxu0 %v3654
    %4058 = vmatpush2.bf16.msra.mxu0 %v3653
    %4059 = vmatprep.subr.bf16.mxu0 %v3647
    %4060 = vmatpush2.bf16.msra.mxu0 %v3646
    %4061 = vmatprep.subr.bf16.mxu0 %v3640
    %4062 = vmatpush2.bf16.msra.mxu0 %v3639
    %4063 = vmatprep.mubr.bf16.mxu0 %v2583
    %4064 = vmatmul.mubr.bf16.gmra.mxu0 %v2582
    %v4065 = vpop.f32.mrf.mxu0
    %v4066 = vadd.f32 %v2847, %v4065
    %v4067 = vpop.f32.mrf.mxu0
    %v4068 = vadd.f32 %v2851, %v4067
    %v4069 = vpop.f32.mrf.mxu0
    %v4070 = vpop.f32.mrf.mxu0
    %4071 = vdwg.mxu0
    %4072 = vmatprep.subr.bf16.mxu0 %v3745
    %4073 = vmatpush1.bf16.msra.mxu0 %v3744
    %4074 = vmatprep.subr.bf16.mxu0 %v3738
    %4075 = vmatpush1.bf16.msra.mxu0 %v3737
    %4076 = vmatprep.subr.bf16.mxu0 %v3731
    %4077 = vmatpush1.bf16.msra.mxu0 %v3730
    %4078 = vmatprep.subr.bf16.mxu0 %v3724
    %4079 = vmatpush1.bf16.msra.mxu0 %v3723
    %4080 = vmatprep.subr.bf16.mxu0 %v3717
    %4081 = vmatpush1.bf16.msra.mxu0 %v3716
    %4082 = vmatprep.subr.bf16.mxu0 %v3710
    %4083 = vmatpush1.bf16.msra.mxu0 %v3709
    %4084 = vmatprep.subr.bf16.mxu0 %v3703
    %4085 = vmatpush1.bf16.msra.mxu0 %v3702
    %4086 = vmatprep.subr.bf16.mxu0 %v3696
    %4087 = vmatpush1.bf16.msra.mxu0 %v3695
    %4088 = vmatprep.subr.bf16.mxu0 %v3801
    %4089 = vmatpush2.bf16.msra.mxu0 %v3800
    %4090 = vmatprep.subr.bf16.mxu0 %v3794
    %4091 = vmatpush2.bf16.msra.mxu0 %v3793
    %4092 = vmatprep.subr.bf16.mxu0 %v3787
    %4093 = vmatpush2.bf16.msra.mxu0 %v3786
    %4094 = vmatprep.subr.bf16.mxu0 %v3780
    %4095 = vmatpush2.bf16.msra.mxu0 %v3779
    %4096 = vmatprep.subr.bf16.mxu0 %v3773
    %4097 = vmatpush2.bf16.msra.mxu0 %v3772
    %4098 = vmatprep.subr.bf16.mxu0 %v3766
    %4099 = vmatpush2.bf16.msra.mxu0 %v3765
    %4100 = vmatprep.subr.bf16.mxu0 %v3759
    %4101 = vmatpush2.bf16.msra.mxu0 %v3758
    %4102 = vmatprep.subr.bf16.mxu0 %v3752
    %4103 = vmatpush2.bf16.msra.mxu0 %v3751
    %4104 = vmatprep.mubr.bf16.mxu0 %v2585
    %4105 = vmatmul.mubr.bf16.gmra.mxu0 %v2584
    %v4106 = vpop.f32.mrf.mxu0
    %v4107 = vadd.f32 %v4066, %v4106
    %v4108 = vpop.f32.mrf.mxu0
    %v4109 = vadd.f32 %v4068, %v4108
    %v4110 = vpop.f32.mrf.mxu0
    %v4111 = vpop.f32.mrf.mxu0
    %4112 = vdwg.mxu0
    %4113 = vmatprep.subr.bf16.mxu0 %v3635
    %4114 = vmatpush1.bf16.msra.mxu0 %v3634
    %4115 = vmatprep.subr.bf16.mxu0 %v3628
    %4116 = vmatpush1.bf16.msra.mxu0 %v3627
    %4117 = vmatprep.subr.bf16.mxu0 %v3621
    %4118 = vmatpush1.bf16.msra.mxu0 %v3620
    %4119 = vmatprep.subr.bf16.mxu0 %v3614
    %4120 = vmatpush1.bf16.msra.mxu0 %v3613
    %4121 = vmatprep.subr.bf16.mxu0 %v3607
    %4122 = vmatpush1.bf16.msra.mxu0 %v3606
    %4123 = vmatprep.subr.bf16.mxu0 %v3600
    %4124 = vmatpush1.bf16.msra.mxu0 %v3599
    %4125 = vmatprep.subr.bf16.mxu0 %v3593
    %4126 = vmatpush1.bf16.msra.mxu0 %v3592
    %4127 = vmatprep.subr.bf16.mxu0 %v3586
    %4128 = vmatpush1.bf16.msra.mxu0 %v3585
    %4129 = vmatprep.subr.bf16.mxu0 %v3691
    %4130 = vmatpush2.bf16.msra.mxu0 %v3690
    %4131 = vmatprep.subr.bf16.mxu0 %v3684
    %4132 = vmatpush2.bf16.msra.mxu0 %v3683
    %4133 = vmatprep.subr.bf16.mxu0 %v3677
    %4134 = vmatpush2.bf16.msra.mxu0 %v3676
    %4135 = vmatprep.subr.bf16.mxu0 %v3670
    %4136 = vmatpush2.bf16.msra.mxu0 %v3669
    %4137 = vmatprep.subr.bf16.mxu0 %v3663
    %4138 = vmatpush2.bf16.msra.mxu0 %v3662
    %4139 = vmatprep.subr.bf16.mxu0 %v3656
    %4140 = vmatpush2.bf16.msra.mxu0 %v3655
    %4141 = vmatprep.subr.bf16.mxu0 %v3649
    %4142 = vmatpush2.bf16.msra.mxu0 %v3648
    %4143 = vmatprep.subr.bf16.mxu0 %v3642
    %4144 = vmatpush2.bf16.msra.mxu0 %v3641
    %4145 = vmatprep.mubr.bf16.mxu0 %v2583
    %4146 = vmatmul.mubr.bf16.gmra.mxu0 %v2582
    %v4147 = vpop.f32.mrf.mxu0
    %v4148 = vadd.f32 %v2855, %v4147
    %v4149 = vpop.f32.mrf.mxu0
    %v4150 = vadd.f32 %v2859, %v4149
    %v4151 = vpop.f32.mrf.mxu0
    %v4152 = vpop.f32.mrf.mxu0
    %4153 = vdwg.mxu0
    %4154 = vmatprep.subr.bf16.mxu0 %v3747
    %4155 = vmatpush1.bf16.msra.mxu0 %v3746
    %4156 = vmatprep.subr.bf16.mxu0 %v3740
    %4157 = vmatpush1.bf16.msra.mxu0 %v3739
    %4158 = vmatprep.subr.bf16.mxu0 %v3733
    %4159 = vmatpush1.bf16.msra.mxu0 %v3732
    %4160 = vmatprep.subr.bf16.mxu0 %v3726
    %4161 = vmatpush1.bf16.msra.mxu0 %v3725
    %4162 = vmatprep.subr.bf16.mxu0 %v3719
    %4163 = vmatpush1.bf16.msra.mxu0 %v3718
    %4164 = vmatprep.subr.bf16.mxu0 %v3712
    %4165 = vmatpush1.bf16.msra.mxu0 %v3711
    %4166 = vmatprep.subr.bf16.mxu0 %v3705
    %4167 = vmatpush1.bf16.msra.mxu0 %v3704
    %4168 = vmatprep.subr.bf16.mxu0 %v3698
    %4169 = vmatpush1.bf16.msra.mxu0 %v3697
    %4170 = vmatprep.subr.bf16.mxu0 %v3803
    %4171 = vmatpush2.bf16.msra.mxu0 %v3802
    %4172 = vmatprep.subr.bf16.mxu0 %v3796
    %4173 = vmatpush2.bf16.msra.mxu0 %v3795
    %4174 = vmatprep.subr.bf16.mxu0 %v3789
    %4175 = vmatpush2.bf16.msra.mxu0 %v3788
    %4176 = vmatprep.subr.bf16.mxu0 %v3782
    %4177 = vmatpush2.bf16.msra.mxu0 %v3781
    %4178 = vmatprep.subr.bf16.mxu0 %v3775
    %4179 = vmatpush2.bf16.msra.mxu0 %v3774
    %4180 = vmatprep.subr.bf16.mxu0 %v3768
    %4181 = vmatpush2.bf16.msra.mxu0 %v3767
    %4182 = vmatprep.subr.bf16.mxu0 %v3761
    %4183 = vmatpush2.bf16.msra.mxu0 %v3760
    %4184 = vmatprep.subr.bf16.mxu0 %v3754
    %4185 = vmatpush2.bf16.msra.mxu0 %v3753
    %4186 = vmatprep.mubr.bf16.mxu0 %v2585
    %4187 = vmatmul.mubr.bf16.gmra.mxu0 %v2584
    %v4188 = vpop.f32.mrf.mxu0
    %v4189 = vadd.f32 %v4148, %v4188
    %v4190 = vpop.f32.mrf.mxu0
    %v4191 = vadd.f32 %v4150, %v4190
    %v4192 = vpop.f32.mrf.mxu0
    %v4193 = vpop.f32.mrf.mxu0
    %4194 = vdwg.mxu0
    %4195 = vmatprep.subr.bf16.mxu0 %v3637
    %4196 = vmatpush1.bf16.msra.mxu0 %v3636
    %4197 = vmatprep.subr.bf16.mxu0 %v3630
    %4198 = vmatpush1.bf16.msra.mxu0 %v3629
    %4199 = vmatprep.subr.bf16.mxu0 %v3623
    %4200 = vmatpush1.bf16.msra.mxu0 %v3622
    %4201 = vmatprep.subr.bf16.mxu0 %v3616
    %4202 = vmatpush1.bf16.msra.mxu0 %v3615
    %4203 = vmatprep.subr.bf16.mxu0 %v3609
    %4204 = vmatpush1.bf16.msra.mxu0 %v3608
    %4205 = vmatprep.subr.bf16.mxu0 %v3602
    %4206 = vmatpush1.bf16.msra.mxu0 %v3601
    %4207 = vmatprep.subr.bf16.mxu0 %v3595
    %4208 = vmatpush1.bf16.msra.mxu0 %v3594
    %4209 = vmatprep.subr.bf16.mxu0 %v3588
    %4210 = vmatpush1.bf16.msra.mxu0 %v3587
    %4211 = vmatprep.subr.bf16.mxu0 %v3693
    %4212 = vmatpush2.bf16.msra.mxu0 %v3692
    %4213 = vmatprep.subr.bf16.mxu0 %v3686
    %4214 = vmatpush2.bf16.msra.mxu0 %v3685
    %4215 = vmatprep.subr.bf16.mxu0 %v3679
    %4216 = vmatpush2.bf16.msra.mxu0 %v3678
    %4217 = vmatprep.subr.bf16.mxu0 %v3672
    %4218 = vmatpush2.bf16.msra.mxu0 %v3671
    %4219 = vmatprep.subr.bf16.mxu0 %v3665
    %4220 = vmatpush2.bf16.msra.mxu0 %v3664
    %4221 = vmatprep.subr.bf16.mxu0 %v3658
    %4222 = vmatpush2.bf16.msra.mxu0 %v3657
    %4223 = vmatprep.subr.bf16.mxu0 %v3651
    %4224 = vmatpush2.bf16.msra.mxu0 %v3650
    %4225 = vmatprep.subr.bf16.mxu0 %v3644
    %4226 = vmatpush2.bf16.msra.mxu0 %v3643
    %4227 = vmatprep.mubr.bf16.mxu0 %v2583
    %4228 = vmatmul.mubr.bf16.gmra.mxu0 %v2582
    %v4229 = vpop.f32.mrf.mxu0
    %v4230 = vadd.f32 %v2863, %v4229
    %v4231 = vpop.f32.mrf.mxu0
    %v4232 = vadd.f32 %v2867, %v4231
    %v4233 = vpop.f32.mrf.mxu0
    %v4234 = vpop.f32.mrf.mxu0
    %4235 = vdwg.mxu0
    %4236 = vmatprep.subr.bf16.mxu0 %v3749
    %4237 = vmatpush1.bf16.msra.mxu0 %v3748
    %4238 = vmatprep.subr.bf16.mxu0 %v3742
    %4239 = vmatpush1.bf16.msra.mxu0 %v3741
    %4240 = vmatprep.subr.bf16.mxu0 %v3735
    %4241 = vmatpush1.bf16.msra.mxu0 %v3734
    %4242 = vmatprep.subr.bf16.mxu0 %v3728
    %4243 = vmatpush1.bf16.msra.mxu0 %v3727
    %4244 = vmatprep.subr.bf16.mxu0 %v3721
    %4245 = vmatpush1.bf16.msra.mxu0 %v3720
    %4246 = vmatprep.subr.bf16.mxu0 %v3714
    %4247 = vmatpush1.bf16.msra.mxu0 %v3713
    %4248 = vmatprep.subr.bf16.mxu0 %v3707
    %4249 = vmatpush1.bf16.msra.mxu0 %v3706
    %4250 = vmatprep.subr.bf16.mxu0 %v3700
    %4251 = vmatpush1.bf16.msra.mxu0 %v3699
    %4252 = vmatprep.subr.bf16.mxu0 %v3805
    %4253 = vmatpush2.bf16.msra.mxu0 %v3804
    %4254 = vmatprep.subr.bf16.mxu0 %v3798
    %4255 = vmatpush2.bf16.msra.mxu0 %v3797
    %4256 = vmatprep.subr.bf16.mxu0 %v3791
    %4257 = vmatpush2.bf16.msra.mxu0 %v3790
    %4258 = vmatprep.subr.bf16.mxu0 %v3784
    %4259 = vmatpush2.bf16.msra.mxu0 %v3783
    %4260 = vmatprep.subr.bf16.mxu0 %v3777
    %4261 = vmatpush2.bf16.msra.mxu0 %v3776
    %4262 = vmatprep.subr.bf16.mxu0 %v3770
    %4263 = vmatpush2.bf16.msra.mxu0 %v3769
    %4264 = vmatprep.subr.bf16.mxu0 %v3763
    %4265 = vmatpush2.bf16.msra.mxu0 %v3762
    %4266 = vmatprep.subr.bf16.mxu0 %v3756
    %4267 = vmatpush2.bf16.msra.mxu0 %v3755
    %4268 = vmatprep.mubr.bf16.mxu0 %v2585
    %4269 = vmatmul.mubr.bf16.gmra.mxu0 %v2584
    %v4270 = vpop.f32.mrf.mxu0
    %v4271 = vadd.f32 %v4230, %v4270
    %v4272 = vpop.f32.mrf.mxu0
    %v4273 = vadd.f32 %v4232, %v4272
    %v4274 = vpop.f32.mrf.mxu0
    %v4275 = vpop.f32.mrf.mxu0
    %4276 = vdwg.mxu0
    %4277 = vmatprep.subr.bf16.mxu0 0
    %4278 = vmatpush1.bf16.msra.mxu0 %v3638
    %4279 = vmatprep.subr.bf16.mxu0 0
    %4280 = vmatpush1.bf16.msra.mxu0 %v3631
    %4281 = vmatprep.subr.bf16.mxu0 0
    %4282 = vmatpush1.bf16.msra.mxu0 %v3624
    %4283 = vmatprep.subr.bf16.mxu0 0
    %4284 = vmatpush1.bf16.msra.mxu0 %v3617
    %4285 = vmatprep.subr.bf16.mxu0 0
    %4286 = vmatpush1.bf16.msra.mxu0 %v3610
    %4287 = vmatprep.subr.bf16.mxu0 0
    %4288 = vmatpush1.bf16.msra.mxu0 %v3603
    %4289 = vmatprep.subr.bf16.mxu0 0
    %4290 = vmatpush1.bf16.msra.mxu0 %v3596
    %4291 = vmatprep.subr.bf16.mxu0 0
    %4292 = vmatpush1.bf16.msra.mxu0 %v3589
    %4293 = vmatprep.subr.bf16.mxu0 0
    %4294 = vmatpush2.bf16.msra.mxu0 %v3694
    %4295 = vmatprep.subr.bf16.mxu0 0
    %4296 = vmatpush2.bf16.msra.mxu0 %v3687
    %4297 = vmatprep.subr.bf16.mxu0 0
    %4298 = vmatpush2.bf16.msra.mxu0 %v3680
    %4299 = vmatprep.subr.bf16.mxu0 0
    %4300 = vmatpush2.bf16.msra.mxu0 %v3673
    %4301 = vmatprep.subr.bf16.mxu0 0
    %4302 = vmatpush2.bf16.msra.mxu0 %v3666
    %4303 = vmatprep.subr.bf16.mxu0 0
    %4304 = vmatpush2.bf16.msra.mxu0 %v3659
    %4305 = vmatprep.subr.bf16.mxu0 0
    %4306 = vmatpush2.bf16.msra.mxu0 %v3652
    %4307 = vmatprep.subr.bf16.mxu0 0
    %4308 = vmatpush2.bf16.msra.mxu0 %v3645
    %4309 = vmatprep.mubr.bf16.mxu0 %v2583
    %4310 = vmatmul.mubr.bf16.gmra.mxu0 %v2582
    %v4311 = vpop.f32.mrf.mxu0
    %v4312 = vadd.f32 %v2871, %v4311
    %v4313 = vpop.f32.mrf.mxu0
    %v4314 = vpop.f32.mrf.mxu0
    %v4315 = vpop.f32.mrf.mxu0
    %4316 = vdwg.mxu0
    %4317 = vmatprep.subr.bf16.mxu0 0
    %4318 = vmatpush1.bf16.msra.mxu0 %v3750
    %4319 = vmatprep.subr.bf16.mxu0 0
    %4320 = vmatpush1.bf16.msra.mxu0 %v3743
    %4321 = vmatprep.subr.bf16.mxu0 0
    %4322 = vmatpush1.bf16.msra.mxu0 %v3736
    %4323 = vmatprep.subr.bf16.mxu0 0
    %4324 = vmatpush1.bf16.msra.mxu0 %v3729
    %4325 = vmatprep.subr.bf16.mxu0 0
    %4326 = vmatpush1.bf16.msra.mxu0 %v3722
    %4327 = vmatprep.subr.bf16.mxu0 0
    %4328 = vmatpush1.bf16.msra.mxu0 %v3715
    %4329 = vmatprep.subr.bf16.mxu0 0
    %4330 = vmatpush1.bf16.msra.mxu0 %v3708
    %4331 = vmatprep.subr.bf16.mxu0 0
    %4332 = vmatpush1.bf16.msra.mxu0 %v3701
    %4333 = vmatprep.subr.bf16.mxu0 0
    %4334 = vmatpush2.bf16.msra.mxu0 %v3806
    %4335 = vmatprep.subr.bf16.mxu0 0
    %4336 = vmatpush2.bf16.msra.mxu0 %v3799
    %4337 = vmatprep.subr.bf16.mxu0 0
    %4338 = vmatpush2.bf16.msra.mxu0 %v3792
    %4339 = vmatprep.subr.bf16.mxu0 0
    %4340 = vmatpush2.bf16.msra.mxu0 %v3785
    %4341 = vmatprep.subr.bf16.mxu0 0
    %4342 = vmatpush2.bf16.msra.mxu0 %v3778
    %4343 = vmatprep.subr.bf16.mxu0 0
    %4344 = vmatpush2.bf16.msra.mxu0 %v3771
    %4345 = vmatprep.subr.bf16.mxu0 0
    %4346 = vmatpush2.bf16.msra.mxu0 %v3764
    %4347 = vmatprep.subr.bf16.mxu0 0
    %4348 = vmatpush2.bf16.msra.mxu0 %v3757
    %4349 = vmatprep.mubr.bf16.mxu0 %v2585
    %4350 = vmatmul.mubr.bf16.gmra.mxu0 %v2584
    %v4351 = vpop.f32.mrf.mxu0
    %v4352 = vadd.f32 %v4312, %v4351
    %v4353 = vpop.f32.mrf.mxu0
    %v4354 = vpop.f32.mrf.mxu0
    %v4355 = vpop.f32.mrf.mxu0
    %4356 = vdwg.mxu0
    %v4357 = vsub.f32 0.0, %v4107
    %v4358 = vsub.f32 0.0, %v4109
    %v4359 = vsub.f32 0.0, %v4189
    %v4360 = vsub.f32 0.0, %v4191
    %v4361 = vsub.f32 0.0, %v4271
    %v4362 = vsub.f32 0.0, %v4273
    %v4363 = vsub.f32 0.0, %v4352
    %v4364 = vmul.f32 %v4357, 1.442695
    %v4365 = vpow.pop %v4364
    %v4366 = vmul.f32 %v4358, 1.442695
    %v4367 = vpow.pop %v4366
    %v4368 = vmul.f32 %v4359, 1.442695
    %v4369 = vpow.pop %v4368
    %v4370 = vmul.f32 %v4360, 1.442695
    %v4371 = vpow.pop %v4370
    %v4372 = vmul.f32 %v4361, 1.442695
    %v4373 = vpow.pop %v4372
    %v4374 = vmul.f32 %v4362, 1.442695
    %v4375 = vpow.pop %v4374
    %v4376 = vmul.f32 %v4363, 1.442695
    %v4377 = vpow.pop %v4376
    %v4378 = vadd.f32 %v4365, 1.0
    %v4379 = vadd.f32 %v4367, 1.0
    %v4380 = vadd.f32 %v4369, 1.0
    %v4381 = vadd.f32 %v4371, 1.0
    %v4382 = vadd.f32 %v4373, 1.0
    %v4383 = vadd.f32 %v4375, 1.0
    %v4384 = vadd.f32 %v4377, 1.0
    %v4385 = vrcp.pop %v4378
    %v4386 = vrcp.pop %v4379
    %v4387 = vrcp.pop %v4380
    %v4388 = vrcp.pop %v4381
    %v4389 = vrcp.pop %v4382
    %v4390 = vrcp.pop %v4383
    %v4391 = vrcp.pop %v4384
    %4392 = vst [vmem:[#allocation2] sm:$0xff] %v4385
    %4393 = vst [vmem:[#allocation2 + $0x8] sm:$0xff] %v4386
    %4394 = vst [vmem:[#allocation2 + $0x10] sm:$0xff] %v4387
    %4395 = vst [vmem:[#allocation2 + $0x18] sm:$0xff] %v4388
    %4396 = vst [vmem:[#allocation2 + $0x20] sm:$0xff] %v4389
    %4397 = vst [vmem:[#allocation2 + $0x28] sm:$0xff] %v4390
    %4398 = vst.msk [vmem:[#allocation2 + $0x30] sm:$0xff] %vm1275, %v4391
    %vm4399 = vcmask 31744
    %4400 = vst.msk [vmem:[%s19] sm:$0xff] %vm4399, %v2151
    // Predicated region
    $region74: #{tpu_custom_call.1} parent=1 // pred_check
      _
    $region75: #{tpu_custom_call.1} parent=1 // pred_check_branch
      %4402 = sbr.rel (0) target = $region77
    $region76: #{tpu_custom_call.1} parent=1 // pred_region
      %s4404 = ssub.s32 896, 896
      %4405 = vsyncadd [#allocation3], %s4404
      %s4407 = sshll.u32 [#allocation2], 4
      %s4408 = int_to_ptr.vmem [resolvable:$true] %s4407
      %4410 = dma.vmem_to_hbm [thread:$0]  %s4408, 896, %s18, [#allocation3]
    $region77: #{tpu_custom_call.1} parent=1 // pred_fallthru
      _
    // Predicated region
    $region78: #{tpu_custom_call.1} parent=1 // pred_check
      _
    $region79: #{tpu_custom_call.1} parent=1 // pred_check_branch
      %4412 = sbr.rel (0) target = $region81
    $region80: #{tpu_custom_call.1} parent=1 // pred_region
      _
    $region81: #{tpu_custom_call.1} parent=1 // pred_fallthru
      _
    // Predicated region
    $region82: #{tpu_custom_call.1} parent=1 // pred_check
      _
    $region83: #{tpu_custom_call.1} parent=1 // pred_check_branch
      %4414 = sbr.rel (0) target = $region85
    $region84: #{tpu_custom_call.1} parent=1 // pred_region
      %4415 = dma.done [#allocation3], 896
    $region85: #{tpu_custom_call.1} parent=1 // pred_fallthru
      _
    // Predicated region
    $region86: #{tpu_custom_call.1} parent=1 // pred_check
      _
    $region87: #{tpu_custom_call.1} parent=1 // pred_check_branch
      %4417 = sbr.rel (0) target = $region89
    $region88: #{tpu_custom_call.1} parent=1 // pred_region
      _
    $region89: #{tpu_custom_call.1} parent=1 // pred_fallthru
      _
    %4418 = vsyncpa [#allocation3], 1

</llo_original>
